<compile_context>
chip_gen: v7x
topology: tpu7x:2x2x1
jax: 0.10.0
libtpu: 0.0.40
codegen_flags: <defaults>
</compile_context>

<pallas_src>
import functools

import jax
import jax.numpy as jnp
from jax import lax
from jax.experimental import pallas as pl
from jax.experimental.pallas import tpu as pltpu
import numpy as np

INPUT_DIM = 16
HIDDEN_DIM = 32
OUTPUT_DIM = 8
NUM_LAYERS = 2
BATCH = 2
SEQ = 8


# --------------------------------------------------------------------------
# Fused kernel: full forward in a single program (no grid).
#
# ref layout: [x2d] + [wih, bih, whh, bhh] * L + [wf, bf, wb, bb, wfc, bfc]
#             + [attn_out(B*T,2H), fc_out(B*T,OUT)]              (outputs)
#             + [seq_f_tm, seq_b_tm, seq_f_out, seq_b_out]       (VMEM scratch)
#   x2d : (T*B, Din0)  time-major rows (row = t*B + b)
#   wih : (Din_l, 6H)  columns [fwd r,z,n | bwd r,z,n], pre-transposed
#   bih : (1, 6H)      same column order as wih
#   whh : (2H, 6H)     per-gate block-diag(fwd, bwd); column blocks [r | z | n] (2H each)
#   bhh : (1, 6H)      columns [r_f r_b | z_f z_b | n_f n_b]  (matches gh layout)
# --------------------------------------------------------------------------
def _fused_gru_attn_fc_kernel(*refs, B, T, H, L):
    x_ref = refs[0]
    layer_refs = refs[1:1 + 4 * L]
    wf_ref, bf_ref, wb_ref, bb_ref, wfc_ref, bfc_ref = refs[1 + 4 * L:1 + 4 * L + 6]
    attn_ref, fc_ref = refs[1 + 4 * L + 6:1 + 4 * L + 8]
    seq_f_tm, seq_b_tm, seq_f_out, seq_b_out = refs[1 + 4 * L + 8:]

    H2 = 2 * H

    for l in range(L):
        wih = layer_refs[4 * l][...]
        bih = layer_refs[4 * l + 1][...]
        whh = layer_refs[4 * l + 2][...]
        bhh = layer_refs[4 * l + 3][...]

        # Layer input (time-major, row = t*B + b). The time-major scratch written by the
        # previous layer is fully consumed here before this layer's loop runs.
        if l == 0:
            x_cur = x_ref[...]
        else:
            x_cur = jnp.concatenate([seq_f_tm[...], seq_b_tm[...]], axis=1)   # (T*B, 2H)

        # Hoisted input projection: both directions, all timesteps, one MXU matmul.
        gi_all = jnp.dot(x_cur, wih, preferred_element_type=jnp.float32) + bih  # (T*B, 6H)
        gif = gi_all[:, :3 * H]          # fwd [r | z | n]
        gib = gi_all[:, 3 * H:]          # bwd [r | z | n]

        # Hoisted time-reversal of the bwd input projection (static slices, outside the
        # serial recurrence). Row t*B+b of gib_rev = bwd gi at abs time T-1-t, batch b.
        gib_rev = jnp.concatenate(
            [gib[(T - 1 - t) * B:(T - t) * B, :] for t in range(T)], axis=0)    # (T*B, 3H)

        # Gate-aligned layout [r_f r_b | z_f z_b | n_f n_b] matching gh / bhh columns.
        gi_comb = jnp.concatenate(
            [gif[:, 0 * H:1 * H], gib_rev[:, 0 * H:1 * H],
             gif[:, 1 * H:2 * H], gib_rev[:, 1 * H:2 * H],
             gif[:, 2 * H:3 * H], gib_rev[:, 2 * H:3 * H]], axis=1)              # (T*B, 6H)

        # Recurrence: h = [h_fwd | h_bwd] (B, 2H). Fwd consumes abs time t,
        # bwd consumes abs time T-1-t. Fully unrolled (static trip count).
        is_last = (l == L - 1)
        out_f = seq_f_out if is_last else seq_f_tm
        out_b = seq_b_out if is_last else seq_b_tm

        h = jnp.zeros((B, H2), jnp.float32)
        for t in range(T):
            g = gi_comb[t * B:(t + 1) * B, :]                                    # (B, 6H)
            # Single MXU matmul on the critical path per step.
            gh = jnp.dot(h, whh, preferred_element_type=jnp.float32) + bhh       # (B, 6H)

            r = jax.nn.sigmoid(g[:, 0 * H2:1 * H2] + gh[:, 0 * H2:1 * H2])
            z = jax.nn.sigmoid(g[:, 1 * H2:2 * H2] + gh[:, 1 * H2:2 * H2])
            n = jnp.tanh(g[:, 2 * H2:3 * H2] + r * gh[:, 2 * H2:3 * H2])
            h = (1.0 - z) * n + z * h

            # Time-major staging (row = abs_time * B + b).
            out_f[t * B:(t + 1) * B, :] = h[:, :H]               # fwd hidden at abs time t
            out_b[(T - 1 - t) * B:(T - t) * B, :] = h[:, H:]     # bwd hidden at abs time T-1-t

    # -------------------- attention + fc (B=2, unrolled) --------------------
    wf = wf_ref[...]; bf = bf_ref[...]
    wb = wb_ref[...]; bb = bb_ref[...]
    wfc = wfc_ref[...]; bfc = bfc_ref[...]
    dn = (((1,), (1,)), ((), ()))          # P @ P^T (contract last dim of both)

    def softmax_axis0(a):                  # torch F.softmax(attn, dim=1) per batch element
        m = jnp.max(a, axis=0, keepdims=True)
        e = jnp.exp(a - m)
        return e / jnp.sum(e, axis=0, keepdims=True)

    for b in range(B):
        # Gather batch b's sequence (abs-time ascending) from time-major scratch.
        of = jnp.concatenate(
            [seq_f_out[t * B + b:t * B + b + 1, :] for t in range(T)], axis=0)   # (T, H)
        ob = jnp.concatenate(
            [seq_b_out[t * B + b:t * B + b + 1, :] for t in range(T)], axis=0)   # (T, H)

        pf = jnp.dot(of, wf, preferred_element_type=jnp.float32) + bf            # (T, H)
        pb = jnp.dot(ob, wb, preferred_element_type=jnp.float32) + bb
        af = softmax_axis0(lax.dot_general(pf, pf, dn, preferred_element_type=jnp.float32))
        ab = softmax_axis0(lax.dot_general(pb, pb, dn, preferred_element_type=jnp.float32))
        oaf = jnp.dot(af, pf, preferred_element_type=jnp.float32)                # (T, H)
        oab = jnp.dot(ab, pb, preferred_element_type=jnp.float32)
        oa = jnp.concatenate([oaf, oab], axis=1)                                 # (T, 2H)
        attn_ref[b * T:(b + 1) * T, :] = oa.astype(attn_ref.dtype)
        fcv = jnp.dot(oa, wfc, preferred_element_type=jnp.float32) + bfc         # (T, OUT)
        fc_ref[b * T:(b + 1) * T, :] = fcv.astype(fc_ref.dtype)


# --------------------------------------------------------------------------
# Wrapper: one pallas_call for the entire forward.
# --------------------------------------------------------------------------
def gru_model_forward(x, packed):
    B, T, in_dim = x.shape
    H = HIDDEN_DIM
    x2d = jnp.transpose(x, (1, 0, 2)).reshape(T * B, in_dim)   # time-major rows

    flat = [x2d]
    for layer in packed['layers']:
        flat.extend(layer)
    flat.extend([packed['wf'], packed['bf'], packed['wb'], packed['bb'],
                 packed['wfc'], packed['bfc']])

    kernel = functools.partial(_fused_gru_attn_fc_kernel, B=B, T=T, H=H, L=NUM_LAYERS)
    attn2d, fc2d = pl.pallas_call(
        kernel,
        out_shape=[jax.ShapeDtypeStruct((B * T, 2 * H), jnp.float32),
                   jax.ShapeDtypeStruct((B * T, OUTPUT_DIM), jnp.float32)],
        scratch_shapes=[pltpu.VMEM((T * B, H), jnp.float32),   # seq_f_tm  (inter-layer)
                        pltpu.VMEM((T * B, H), jnp.float32),   # seq_b_tm  (inter-layer)
                        pltpu.VMEM((T * B, H), jnp.float32),   # seq_f_out (last layer)
                        pltpu.VMEM((T * B, H), jnp.float32)],  # seq_b_out (last layer)
    )(*flat)
    return attn2d.reshape(B, T, 2 * H), fc2d.reshape(B, T, OUTPUT_DIM)


# --------------------------------------------------------------------------
# Parameter init (torch-style shapes, deterministic uniform(-1/sqrt(H), 1/sqrt(H)))
# --------------------------------------------------------------------------
def init_params(key):
    k = 1.0 / np.sqrt(HIDDEN_DIM)
    keys = jax.random.split(key, 64)
    ki = [0]

    def u(shape, scale=k):
        out = jax.random.uniform(keys[ki[0]], shape, jnp.float32, -scale, scale)
        ki[0] += 1
        return out

    params = {'gru': []}
    for l in range(NUM_LAYERS):
        in_l = INPUT_DIM if l == 0 else 2 * HIDDEN_DIM
        layer = {}
        for d in ('fwd', 'bwd'):
            layer[d] = dict(
                w_ih=u((3 * HIDDEN_DIM, in_l)),       # rows [r; z; n], torch layout
                w_hh=u((3 * HIDDEN_DIM, HIDDEN_DIM)),
                b_ih=u((3 * HIDDEN_DIM,)),
                b_hh=u((3 * HIDDEN_DIM,)),
            )
        params['gru'].append(layer)
    params['atten_f_w'] = u((HIDDEN_DIM, HIDDEN_DIM))
    params['atten_f_b'] = u((HIDDEN_DIM,))
    params['atten_b_w'] = u((HIDDEN_DIM, HIDDEN_DIM))
    params['atten_b_b'] = u((HIDDEN_DIM,))
    kfc = 1.0 / np.sqrt(2 * HIDDEN_DIM)
    params['fc_w'] = u((OUTPUT_DIM, 2 * HIDDEN_DIM), kfc)
    params['fc_b'] = u((OUTPUT_DIM,), kfc)
    return params


# Pack torch-style params into the fused-kernel layout (done once, tiny arrays).
def pack_params(p):
    H = HIDDEN_DIM
    layers = []
    for l in range(NUM_LAYERS):
        pf, pb = p['gru'][l]['fwd'], p['gru'][l]['bwd']
        wih = jnp.concatenate([pf['w_ih'].T, pb['w_ih'].T], axis=1)          # (Din, 6H)
        bih = jnp.concatenate([pf['b_ih'], pb['b_ih']])[None, :]             # (1, 6H)
        zero = jnp.zeros((H, H), jnp.float32)
        whh_blocks, bhh_parts = [], []
        for g in range(3):                                                   # r, z, n
            wfg = pf['w_hh'][g * H:(g + 1) * H].T                            # (H, H)
            wbg = pb['w_hh'][g * H:(g + 1) * H].T
            block = jnp.concatenate(
                [jnp.concatenate([wfg, zero], axis=1),
                 jnp.concatenate([zero, wbg], axis=1)], axis=0)              # (2H, 2H)
            whh_blocks.append(block)
            bhh_parts.append(jnp.concatenate(
                [pf['b_hh'][g * H:(g + 1) * H], pb['b_hh'][g * H:(g + 1) * H]]))
        whh = jnp.concatenate(whh_blocks, axis=1)                            # (2H, 6H)
        bhh = jnp.concatenate(bhh_parts)[None, :]                            # (1, 6H)
        layers.append((wih, bih, whh, bhh))
    return dict(
        layers=layers,
        wf=p['atten_f_w'].T, bf=p['atten_f_b'][None, :],
        wb=p['atten_b_w'].T, bb=p['atten_b_b'][None, :],
        wfc=p['fc_w'].T, bfc=p['fc_b'][None, :],
    )


# --------------------------------------------------------------------------
# Pure-JAX reference (PyTorch semantics) for correctness checking.
# --------------------------------------------------------------------------
def ref_forward(x, p):
    H = HIDDEN_DIM

    def one_dir(xt, pd):
        T_, B_, _ = xt.shape
        h = jnp.zeros((B_, H), jnp.float32)
        outs = []
        for t in range(T_):
            gi = xt[t] @ pd['w_ih'].T + pd['b_ih']
            gh = h @ pd['w_hh'].T + pd['b_hh']
            r = jax.nn.sigmoid(gi[:, :H] + gh[:, :H])
            z = jax.nn.sigmoid(gi[:, H:2 * H] + gh[:, H:2 * H])
            n = jnp.tanh(gi[:, 2 * H:] + r * gh[:, 2 * H:])
            h = (1.0 - z) * n + z * h
            outs.append(h)
        return jnp.stack(outs, 0)

    xt = jnp.transpose(x, (1, 0, 2))
    for l in range(NUM_LAYERS):
        hf = one_dir(xt, p['gru'][l]['fwd'])
        hb = one_dir(xt[::-1], p['gru'][l]['bwd'])[::-1]
        xt = jnp.concatenate([hf, hb], axis=-1)
    out = jnp.transpose(xt, (1, 0, 2))                         # (B, T, 2H)
    of = out[:, :, :H] @ p['atten_f_w'].T + p['atten_f_b']
    ob = out[:, :, H:] @ p['atten_b_w'].T + p['atten_b_b']
    fa = jax.nn.softmax(jnp.einsum('bik,bjk->bij', of, of), axis=1)
    ba = jax.nn.softmax(jnp.einsum('bik,bjk->bij', ob, ob), axis=1)
    oaf = jnp.einsum('bij,bjk->bik', fa, of)
    oab = jnp.einsum('bij,bjk->bik', ba, ob)
    oa = jnp.concatenate([oaf, oab], axis=-1)
    fc = oa @ p['fc_w'].T + p['fc_b']
    return oa, fc


if __name__ == "__main__":
    key = jax.random.PRNGKey(0)
    kx, kp = jax.random.split(key)
    x = jax.random.normal(kx, (BATCH, SEQ, INPUT_DIM), jnp.float32)
    params = init_params(kp)
    packed = pack_params(params)

    fwd = jax.jit(gru_model_forward)
    attn_out, fc_out = fwd(x, packed)
    attn_out = jax.block_until_ready(attn_out)
    fc_out = jax.block_until_ready(fc_out)

    ref_attn, ref_fc = ref_forward(x, params)
    np.testing.assert_allclose(np.asarray(attn_out), np.asarray(ref_attn), rtol=5e-3, atol=5e-3)
    np.testing.assert_allclose(np.asarray(fc_out), np.asarray(ref_fc), rtol=5e-3, atol=5e-3)

    assert attn_out.shape == (BATCH, SEQ, 2 * HIDDEN_DIM)
    assert fc_out.shape == (BATCH, SEQ, OUTPUT_DIM)
    print("KERNEL_OK")
</pallas_src>

<mosaic_0001>
module attributes {stable_mosaic.version = 11 : i64} {
  func.func @_fused_gru_attn_fc_kernel(%arg0: memref<16x16xf32, #tpu.memory_space<vmem>>, %arg1: memref<16x192xf32, #tpu.memory_space<vmem>>, %arg2: memref<1x192xf32, #tpu.memory_space<vmem>>, %arg3: memref<64x192xf32, #tpu.memory_space<vmem>>, %arg4: memref<1x192xf32, #tpu.memory_space<vmem>>, %arg5: memref<64x192xf32, #tpu.memory_space<vmem>>, %arg6: memref<1x192xf32, #tpu.memory_space<vmem>>, %arg7: memref<64x192xf32, #tpu.memory_space<vmem>>, %arg8: memref<1x192xf32, #tpu.memory_space<vmem>>, %arg9: memref<32x32xf32, #tpu.memory_space<vmem>>, %arg10: memref<1x32xf32, #tpu.memory_space<vmem>>, %arg11: memref<32x32xf32, #tpu.memory_space<vmem>>, %arg12: memref<1x32xf32, #tpu.memory_space<vmem>>, %arg13: memref<64x8xf32, #tpu.memory_space<vmem>>, %arg14: memref<1x8xf32, #tpu.memory_space<vmem>>, %arg15: memref<16x64xf32, #tpu.memory_space<vmem>>, %arg16: memref<16x8xf32, #tpu.memory_space<vmem>>, %arg17: memref<16x32xf32, #tpu.memory_space<vmem>>, %arg18: memref<16x32xf32, #tpu.memory_space<vmem>>, %arg19: memref<16x32xf32, #tpu.memory_space<vmem>>, %arg20: memref<16x32xf32, #tpu.memory_space<vmem>>) attributes {dimension_semantics = [], scalar_prefetch = 0 : i64, scratch_operands = 4 : i64, tpu.core_type = #tpu.core_type<tc>} {
    %c0 = arith.constant 0 : index
    %c0_0 = arith.constant 0 : index
    %0 = vector.load %arg1[%c0, %c0_0] : memref<16x192xf32, #tpu.memory_space<vmem>>, vector<16x192xf32>
    %c0_1 = arith.constant 0 : index
    %c0_2 = arith.constant 0 : index
    %1 = vector.load %arg2[%c0_1, %c0_2] : memref<1x192xf32, #tpu.memory_space<vmem>>, vector<1x192xf32>
    %c0_3 = arith.constant 0 : index
    %c0_4 = arith.constant 0 : index
    %2 = vector.load %arg3[%c0_3, %c0_4] : memref<64x192xf32, #tpu.memory_space<vmem>>, vector<64x192xf32>
    %c0_5 = arith.constant 0 : index
    %c0_6 = arith.constant 0 : index
    %3 = vector.load %arg4[%c0_5, %c0_6] : memref<1x192xf32, #tpu.memory_space<vmem>>, vector<1x192xf32>
    %c0_7 = arith.constant 0 : index
    %c0_8 = arith.constant 0 : index
    %4 = vector.load %arg0[%c0_7, %c0_8] : memref<16x16xf32, #tpu.memory_space<vmem>>, vector<16x16xf32>
    %cst = arith.constant dense<0.000000e+00> : vector<16x192xf32>
    %5 = tpu.matmul %4, %0, %cst {dimension_numbers = #tpu.dot_dimension_numbers<[1], [0], [0], [1], [0, 0, 1, 1], [], []>} : vector<16x16xf32>, vector<16x192xf32>, vector<16x192xf32> -> vector<16x192xf32>
    %6 = vector.broadcast %1 : vector<1x192xf32> to vector<16x192xf32>
    %7 = arith.addf %5, %6 : vector<16x192xf32>
    %8 = vector.extract_strided_slice %7 {offsets = [0, 0], sizes = [16, 96], strides = [1, 1]} : vector<16x192xf32> to vector<16x96xf32>
    %9 = vector.extract_strided_slice %7 {offsets = [0, 96], sizes = [16, 96], strides = [1, 1]} : vector<16x192xf32> to vector<16x96xf32>
    %10 = vector.extract_strided_slice %9 {offsets = [14, 0], sizes = [2, 96], strides = [1, 1]} : vector<16x96xf32> to vector<2x96xf32>
    %11 = vector.extract_strided_slice %9 {offsets = [12, 0], sizes = [2, 96], strides = [1, 1]} : vector<16x96xf32> to vector<2x96xf32>
    %12 = vector.extract_strided_slice %9 {offsets = [10, 0], sizes = [2, 96], strides = [1, 1]} : vector<16x96xf32> to vector<2x96xf32>
    %13 = vector.extract_strided_slice %9 {offsets = [8, 0], sizes = [2, 96], strides = [1, 1]} : vector<16x96xf32> to vector<2x96xf32>
    %14 = vector.extract_strided_slice %9 {offsets = [6, 0], sizes = [2, 96], strides = [1, 1]} : vector<16x96xf32> to vector<2x96xf32>
    %15 = vector.extract_strided_slice %9 {offsets = [4, 0], sizes = [2, 96], strides = [1, 1]} : vector<16x96xf32> to vector<2x96xf32>
    %16 = vector.extract_strided_slice %9 {offsets = [2, 0], sizes = [2, 96], strides = [1, 1]} : vector<16x96xf32> to vector<2x96xf32>
    %17 = vector.extract_strided_slice %9 {offsets = [0, 0], sizes = [2, 96], strides = [1, 1]} : vector<16x96xf32> to vector<2x96xf32>
    %18 = tpu.concatenate %10, %11, %12, %13, %14, %15, %16, %17 in 0 : vector<2x96xf32>, vector<2x96xf32>, vector<2x96xf32>, vector<2x96xf32>, vector<2x96xf32>, vector<2x96xf32>, vector<2x96xf32>, vector<2x96xf32> -> vector<16x96xf32>
    %19 = vector.extract_strided_slice %8 {offsets = [0, 0], sizes = [16, 32], strides = [1, 1]} : vector<16x96xf32> to vector<16x32xf32>
    %20 = vector.extract_strided_slice %18 {offsets = [0, 0], sizes = [16, 32], strides = [1, 1]} : vector<16x96xf32> to vector<16x32xf32>
    %21 = vector.extract_strided_slice %8 {offsets = [0, 32], sizes = [16, 32], strides = [1, 1]} : vector<16x96xf32> to vector<16x32xf32>
    %22 = vector.extract_strided_slice %18 {offsets = [0, 32], sizes = [16, 32], strides = [1, 1]} : vector<16x96xf32> to vector<16x32xf32>
    %23 = vector.extract_strided_slice %8 {offsets = [0, 64], sizes = [16, 32], strides = [1, 1]} : vector<16x96xf32> to vector<16x32xf32>
    %24 = vector.extract_strided_slice %18 {offsets = [0, 64], sizes = [16, 32], strides = [1, 1]} : vector<16x96xf32> to vector<16x32xf32>
    %25 = tpu.concatenate %19, %20, %21, %22, %23, %24 in 1 : vector<16x32xf32>, vector<16x32xf32>, vector<16x32xf32>, vector<16x32xf32>, vector<16x32xf32>, vector<16x32xf32> -> vector<16x192xf32>
    %cst_9 = arith.constant 0.000000e+00 : f32
    %26 = vector.broadcast %cst_9 : f32 to vector<2x64xf32>
    %27 = vector.extract_strided_slice %25 {offsets = [0, 0], sizes = [2, 192], strides = [1, 1]} : vector<16x192xf32> to vector<2x192xf32>
    %cst_10 = arith.constant dense<0.000000e+00> : vector<2x192xf32>
    %28 = tpu.matmul %26, %2, %cst_10 {dimension_numbers = #tpu.dot_dimension_numbers<[1], [0], [0], [1], [0, 0, 1, 1], [], []>} : vector<2x64xf32>, vector<64x192xf32>, vector<2x192xf32> -> vector<2x192xf32>
    %29 = vector.broadcast %3 : vector<1x192xf32> to vector<2x192xf32>
    %30 = arith.addf %28, %29 : vector<2x192xf32>
    %31 = vector.extract_strided_slice %27 {offsets = [0, 0], sizes = [2, 64], strides = [1, 1]} : vector<2x192xf32> to vector<2x64xf32>
    %32 = vector.extract_strided_slice %30 {offsets = [0, 0], sizes = [2, 64], strides = [1, 1]} : vector<2x192xf32> to vector<2x64xf32>
    %33 = arith.addf %31, %32 : vector<2x64xf32>
    %34 = arith.negf %33 : vector<2x64xf32>
    %35 = math.exp %34 : vector<2x64xf32>
    %cst_11 = arith.constant 1.000000e+00 : f32
    %36 = vector.broadcast %cst_11 : f32 to vector<2x64xf32>
    %37 = arith.addf %36, %35 : vector<2x64xf32>
    %38 = arith.divf %36, %37 : vector<2x64xf32>
    %39 = vector.extract_strided_slice %27 {offsets = [0, 64], sizes = [2, 64], strides = [1, 1]} : vector<2x192xf32> to vector<2x64xf32>
    %40 = vector.extract_strided_slice %30 {offsets = [0, 64], sizes = [2, 64], strides = [1, 1]} : vector<2x192xf32> to vector<2x64xf32>
    %41 = arith.addf %39, %40 : vector<2x64xf32>
    %42 = arith.negf %41 : vector<2x64xf32>
    %43 = math.exp %42 : vector<2x64xf32>
    %cst_12 = arith.constant 1.000000e+00 : f32
    %44 = vector.broadcast %cst_12 : f32 to vector<2x64xf32>
    %45 = arith.addf %44, %43 : vector<2x64xf32>
    %46 = arith.divf %44, %45 : vector<2x64xf32>
    %47 = vector.extract_strided_slice %27 {offsets = [0, 128], sizes = [2, 64], strides = [1, 1]} : vector<2x192xf32> to vector<2x64xf32>
    %48 = vector.extract_strided_slice %30 {offsets = [0, 128], sizes = [2, 64], strides = [1, 1]} : vector<2x192xf32> to vector<2x64xf32>
    %49 = arith.mulf %38, %48 : vector<2x64xf32>
    %50 = arith.addf %47, %49 : vector<2x64xf32>
    %51 = math.tanh %50 : vector<2x64xf32>
    %cst_13 = arith.constant 1.000000e+00 : f32
    %52 = vector.broadcast %cst_13 : f32 to vector<2x64xf32>
    %53 = arith.subf %52, %46 : vector<2x64xf32>
    %54 = arith.mulf %53, %51 : vector<2x64xf32>
    %55 = arith.mulf %46, %26 : vector<2x64xf32>
    %56 = arith.addf %54, %55 : vector<2x64xf32>
    %57 = vector.extract_strided_slice %56 {offsets = [0, 0], sizes = [2, 32], strides = [1, 1]} : vector<2x64xf32> to vector<2x32xf32>
    %c0_14 = arith.constant 0 : index
    %c0_15 = arith.constant 0 : index
    %58 = vector.load %arg17[%c0_14, %c0_15] : memref<16x32xf32, #tpu.memory_space<vmem>>, vector<2x32xf32>
    tpu.vector_store %arg17[%c0_14, %c0_15], %57 {strides = array<i32>} : memref<16x32xf32, #tpu.memory_space<vmem>>, vector<2x32xf32>,
    %59 = vector.extract_strided_slice %56 {offsets = [0, 32], sizes = [2, 32], strides = [1, 1]} : vector<2x64xf32> to vector<2x32xf32>
    %c14 = arith.constant 14 : index
    %c0_16 = arith.constant 0 : index
    %60 = vector.load %arg18[%c14, %c0_16] : memref<16x32xf32, #tpu.memory_space<vmem>>, vector<2x32xf32>
    tpu.vector_store %arg18[%c14, %c0_16], %59 {strides = array<i32>} : memref<16x32xf32, #tpu.memory_space<vmem>>, vector<2x32xf32>,
    %61 = vector.extract_strided_slice %25 {offsets = [2, 0], sizes = [2, 192], strides = [1, 1]} : vector<16x192xf32> to vector<2x192xf32>
    %cst_17 = arith.constant dense<0.000000e+00> : vector<2x192xf32>
    %62 = tpu.matmul %56, %2, %cst_17 {dimension_numbers = #tpu.dot_dimension_numbers<[1], [0], [0], [1], [0, 0, 1, 1], [], []>} : vector<2x64xf32>, vector<64x192xf32>, vector<2x192xf32> -> vector<2x192xf32>
    %63 = vector.broadcast %3 : vector<1x192xf32> to vector<2x192xf32>
    %64 = arith.addf %62, %63 : vector<2x192xf32>
    %65 = vector.extract_strided_slice %61 {offsets = [0, 0], sizes = [2, 64], strides = [1, 1]} : vector<2x192xf32> to vector<2x64xf32>
    %66 = vector.extract_strided_slice %64 {offsets = [0, 0], sizes = [2, 64], strides = [1, 1]} : vector<2x192xf32> to vector<2x64xf32>
    %67 = arith.addf %65, %66 : vector<2x64xf32>
    %68 = arith.negf %67 : vector<2x64xf32>
    %69 = math.exp %68 : vector<2x64xf32>
    %cst_18 = arith.constant 1.000000e+00 : f32
    %70 = vector.broadcast %cst_18 : f32 to vector<2x64xf32>
    %71 = arith.addf %70, %69 : vector<2x64xf32>
    %72 = arith.divf %70, %71 : vector<2x64xf32>
    %73 = vector.extract_strided_slice %61 {offsets = [0, 64], sizes = [2, 64], strides = [1, 1]} : vector<2x192xf32> to vector<2x64xf32>
    %74 = vector.extract_strided_slice %64 {offsets = [0, 64], sizes = [2, 64], strides = [1, 1]} : vector<2x192xf32> to vector<2x64xf32>
    %75 = arith.addf %73, %74 : vector<2x64xf32>
    %76 = arith.negf %75 : vector<2x64xf32>
    %77 = math.exp %76 : vector<2x64xf32>
    %cst_19 = arith.constant 1.000000e+00 : f32
    %78 = vector.broadcast %cst_19 : f32 to vector<2x64xf32>
    %79 = arith.addf %78, %77 : vector<2x64xf32>
    %80 = arith.divf %78, %79 : vector<2x64xf32>
    %81 = vector.extract_strided_slice %61 {offsets = [0, 128], sizes = [2, 64], strides = [1, 1]} : vector<2x192xf32> to vector<2x64xf32>
    %82 = vector.extract_strided_slice %64 {offsets = [0, 128], sizes = [2, 64], strides = [1, 1]} : vector<2x192xf32> to vector<2x64xf32>
    %83 = arith.mulf %72, %82 : vector<2x64xf32>
    %84 = arith.addf %81, %83 : vector<2x64xf32>
    %85 = math.tanh %84 : vector<2x64xf32>
    %cst_20 = arith.constant 1.000000e+00 : f32
    %86 = vector.broadcast %cst_20 : f32 to vector<2x64xf32>
    %87 = arith.subf %86, %80 : vector<2x64xf32>
    %88 = arith.mulf %87, %85 : vector<2x64xf32>
    %89 = arith.mulf %80, %56 : vector<2x64xf32>
    %90 = arith.addf %88, %89 : vector<2x64xf32>
    %91 = vector.extract_strided_slice %90 {offsets = [0, 0], sizes = [2, 32], strides = [1, 1]} : vector<2x64xf32> to vector<2x32xf32>
    %c2 = arith.constant 2 : index
    %c0_21 = arith.constant 0 : index
    %92 = vector.load %arg17[%c2, %c0_21] : memref<16x32xf32, #tpu.memory_space<vmem>>, vector<2x32xf32>
    tpu.vector_store %arg17[%c2, %c0_21], %91 {strides = array<i32>} : memref<16x32xf32, #tpu.memory_space<vmem>>, vector<2x32xf32>,
    %93 = vector.extract_strided_slice %90 {offsets = [0, 32], sizes = [2, 32], strides = [1, 1]} : vector<2x64xf32> to vector<2x32xf32>
    %c12 = arith.constant 12 : index
    %c0_22 = arith.constant 0 : index
    %94 = vector.load %arg18[%c12, %c0_22] : memref<16x32xf32, #tpu.memory_space<vmem>>, vector<2x32xf32>
    tpu.vector_store %arg18[%c12, %c0_22], %93 {strides = array<i32>} : memref<16x32xf32, #tpu.memory_space<vmem>>, vector<2x32xf32>,
    %95 = vector.extract_strided_slice %25 {offsets = [4, 0], sizes = [2, 192], strides = [1, 1]} : vector<16x192xf32> to vector<2x192xf32>
    %cst_23 = arith.constant dense<0.000000e+00> : vector<2x192xf32>
    %96 = tpu.matmul %90, %2, %cst_23 {dimension_numbers = #tpu.dot_dimension_numbers<[1], [0], [0], [1], [0, 0, 1, 1], [], []>} : vector<2x64xf32>, vector<64x192xf32>, vector<2x192xf32> -> vector<2x192xf32>
    %97 = vector.broadcast %3 : vector<1x192xf32> to vector<2x192xf32>
    %98 = arith.addf %96, %97 : vector<2x192xf32>
    %99 = vector.extract_strided_slice %95 {offsets = [0, 0], sizes = [2, 64], strides = [1, 1]} : vector<2x192xf32> to vector<2x64xf32>
    %100 = vector.extract_strided_slice %98 {offsets = [0, 0], sizes = [2, 64], strides = [1, 1]} : vector<2x192xf32> to vector<2x64xf32>
    %101 = arith.addf %99, %100 : vector<2x64xf32>
    %102 = arith.negf %101 : vector<2x64xf32>
    %103 = math.exp %102 : vector<2x64xf32>
    %cst_24 = arith.constant 1.000000e+00 : f32
    %104 = vector.broadcast %cst_24 : f32 to vector<2x64xf32>
    %105 = arith.addf %104, %103 : vector<2x64xf32>
    %106 = arith.divf %104, %105 : vector<2x64xf32>
    %107 = vector.extract_strided_slice %95 {offsets = [0, 64], sizes = [2, 64], strides = [1, 1]} : vector<2x192xf32> to vector<2x64xf32>
    %108 = vector.extract_strided_slice %98 {offsets = [0, 64], sizes = [2, 64], strides = [1, 1]} : vector<2x192xf32> to vector<2x64xf32>
    %109 = arith.addf %107, %108 : vector<2x64xf32>
    %110 = arith.negf %109 : vector<2x64xf32>
    %111 = math.exp %110 : vector<2x64xf32>
    %cst_25 = arith.constant 1.000000e+00 : f32
    %112 = vector.broadcast %cst_25 : f32 to vector<2x64xf32>
    %113 = arith.addf %112, %111 : vector<2x64xf32>
    %114 = arith.divf %112, %113 : vector<2x64xf32>
    %115 = vector.extract_strided_slice %95 {offsets = [0, 128], sizes = [2, 64], strides = [1, 1]} : vector<2x192xf32> to vector<2x64xf32>
    %116 = vector.extract_strided_slice %98 {offsets = [0, 128], sizes = [2, 64], strides = [1, 1]} : vector<2x192xf32> to vector<2x64xf32>
    %117 = arith.mulf %106, %116 : vector<2x64xf32>
    %118 = arith.addf %115, %117 : vector<2x64xf32>
    %119 = math.tanh %118 : vector<2x64xf32>
    %cst_26 = arith.constant 1.000000e+00 : f32
    %120 = vector.broadcast %cst_26 : f32 to vector<2x64xf32>
    %121 = arith.subf %120, %114 : vector<2x64xf32>
    %122 = arith.mulf %121, %119 : vector<2x64xf32>
    %123 = arith.mulf %114, %90 : vector<2x64xf32>
    %124 = arith.addf %122, %123 : vector<2x64xf32>
    %125 = vector.extract_strided_slice %124 {offsets = [0, 0], sizes = [2, 32], strides = [1, 1]} : vector<2x64xf32> to vector<2x32xf32>
    %c4 = arith.constant 4 : index
    %c0_27 = arith.constant 0 : index
    %126 = vector.load %arg17[%c4, %c0_27] : memref<16x32xf32, #tpu.memory_space<vmem>>, vector<2x32xf32>
    tpu.vector_store %arg17[%c4, %c0_27], %125 {strides = array<i32>} : memref<16x32xf32, #tpu.memory_space<vmem>>, vector<2x32xf32>,
    %127 = vector.extract_strided_slice %124 {offsets = [0, 32], sizes = [2, 32], strides = [1, 1]} : vector<2x64xf32> to vector<2x32xf32>
    %c10 = arith.constant 10 : index
    %c0_28 = arith.constant 0 : index
    %128 = vector.load %arg18[%c10, %c0_28] : memref<16x32xf32, #tpu.memory_space<vmem>>, vector<2x32xf32>
    tpu.vector_store %arg18[%c10, %c0_28], %127 {strides = array<i32>} : memref<16x32xf32, #tpu.memory_space<vmem>>, vector<2x32xf32>,
    %129 = vector.extract_strided_slice %25 {offsets = [6, 0], sizes = [2, 192], strides = [1, 1]} : vector<16x192xf32> to vector<2x192xf32>
    %cst_29 = arith.constant dense<0.000000e+00> : vector<2x192xf32>
    %130 = tpu.matmul %124, %2, %cst_29 {dimension_numbers = #tpu.dot_dimension_numbers<[1], [0], [0], [1], [0, 0, 1, 1], [], []>} : vector<2x64xf32>, vector<64x192xf32>, vector<2x192xf32> -> vector<2x192xf32>
    %131 = vector.broadcast %3 : vector<1x192xf32> to vector<2x192xf32>
    %132 = arith.addf %130, %131 : vector<2x192xf32>
    %133 = vector.extract_strided_slice %129 {offsets = [0, 0], sizes = [2, 64], strides = [1, 1]} : vector<2x192xf32> to vector<2x64xf32>
    %134 = vector.extract_strided_slice %132 {offsets = [0, 0], sizes = [2, 64], strides = [1, 1]} : vector<2x192xf32> to vector<2x64xf32>
    %135 = arith.addf %133, %134 : vector<2x64xf32>
    %136 = arith.negf %135 : vector<2x64xf32>
    %137 = math.exp %136 : vector<2x64xf32>
    %cst_30 = arith.constant 1.000000e+00 : f32
    %138 = vector.broadcast %cst_30 : f32 to vector<2x64xf32>
    %139 = arith.addf %138, %137 : vector<2x64xf32>
    %140 = arith.divf %138, %139 : vector<2x64xf32>
    %141 = vector.extract_strided_slice %129 {offsets = [0, 64], sizes = [2, 64], strides = [1, 1]} : vector<2x192xf32> to vector<2x64xf32>
    %142 = vector.extract_strided_slice %132 {offsets = [0, 64], sizes = [2, 64], strides = [1, 1]} : vector<2x192xf32> to vector<2x64xf32>
    %143 = arith.addf %141, %142 : vector<2x64xf32>
    %144 = arith.negf %143 : vector<2x64xf32>
    %145 = math.exp %144 : vector<2x64xf32>
    %cst_31 = arith.constant 1.000000e+00 : f32
    %146 = vector.broadcast %cst_31 : f32 to vector<2x64xf32>
    %147 = arith.addf %146, %145 : vector<2x64xf32>
    %148 = arith.divf %146, %147 : vector<2x64xf32>
    %149 = vector.extract_strided_slice %129 {offsets = [0, 128], sizes = [2, 64], strides = [1, 1]} : vector<2x192xf32> to vector<2x64xf32>
    %150 = vector.extract_strided_slice %132 {offsets = [0, 128], sizes = [2, 64], strides = [1, 1]} : vector<2x192xf32> to vector<2x64xf32>
    %151 = arith.mulf %140, %150 : vector<2x64xf32>
    %152 = arith.addf %149, %151 : vector<2x64xf32>
    %153 = math.tanh %152 : vector<2x64xf32>
    %cst_32 = arith.constant 1.000000e+00 : f32
    %154 = vector.broadcast %cst_32 : f32 to vector<2x64xf32>
    %155 = arith.subf %154, %148 : vector<2x64xf32>
    %156 = arith.mulf %155, %153 : vector<2x64xf32>
    %157 = arith.mulf %148, %124 : vector<2x64xf32>
    %158 = arith.addf %156, %157 : vector<2x64xf32>
    %159 = vector.extract_strided_slice %158 {offsets = [0, 0], sizes = [2, 32], strides = [1, 1]} : vector<2x64xf32> to vector<2x32xf32>
    %c6 = arith.constant 6 : index
    %c0_33 = arith.constant 0 : index
    %160 = vector.load %arg17[%c6, %c0_33] : memref<16x32xf32, #tpu.memory_space<vmem>>, vector<2x32xf32>
    tpu.vector_store %arg17[%c6, %c0_33], %159 {strides = array<i32>} : memref<16x32xf32, #tpu.memory_space<vmem>>, vector<2x32xf32>,
    %161 = vector.extract_strided_slice %158 {offsets = [0, 32], sizes = [2, 32], strides = [1, 1]} : vector<2x64xf32> to vector<2x32xf32>
    %c8 = arith.constant 8 : index
    %c0_34 = arith.constant 0 : index
    %162 = vector.load %arg18[%c8, %c0_34] : memref<16x32xf32, #tpu.memory_space<vmem>>, vector<2x32xf32>
    tpu.vector_store %arg18[%c8, %c0_34], %161 {strides = array<i32>} : memref<16x32xf32, #tpu.memory_space<vmem>>, vector<2x32xf32>,
    %163 = vector.extract_strided_slice %25 {offsets = [8, 0], sizes = [2, 192], strides = [1, 1]} : vector<16x192xf32> to vector<2x192xf32>
    %cst_35 = arith.constant dense<0.000000e+00> : vector<2x192xf32>
    %164 = tpu.matmul %158, %2, %cst_35 {dimension_numbers = #tpu.dot_dimension_numbers<[1], [0], [0], [1], [0, 0, 1, 1], [], []>} : vector<2x64xf32>, vector<64x192xf32>, vector<2x192xf32> -> vector<2x192xf32>
    %165 = vector.broadcast %3 : vector<1x192xf32> to vector<2x192xf32>
    %166 = arith.addf %164, %165 : vector<2x192xf32>
    %167 = vector.extract_strided_slice %163 {offsets = [0, 0], sizes = [2, 64], strides = [1, 1]} : vector<2x192xf32> to vector<2x64xf32>
    %168 = vector.extract_strided_slice %166 {offsets = [0, 0], sizes = [2, 64], strides = [1, 1]} : vector<2x192xf32> to vector<2x64xf32>
    %169 = arith.addf %167, %168 : vector<2x64xf32>
    %170 = arith.negf %169 : vector<2x64xf32>
    %171 = math.exp %170 : vector<2x64xf32>
    %cst_36 = arith.constant 1.000000e+00 : f32
    %172 = vector.broadcast %cst_36 : f32 to vector<2x64xf32>
    %173 = arith.addf %172, %171 : vector<2x64xf32>
    %174 = arith.divf %172, %173 : vector<2x64xf32>
    %175 = vector.extract_strided_slice %163 {offsets = [0, 64], sizes = [2, 64], strides = [1, 1]} : vector<2x192xf32> to vector<2x64xf32>
    %176 = vector.extract_strided_slice %166 {offsets = [0, 64], sizes = [2, 64], strides = [1, 1]} : vector<2x192xf32> to vector<2x64xf32>
    %177 = arith.addf %175, %176 : vector<2x64xf32>
    %178 = arith.negf %177 : vector<2x64xf32>
    %179 = math.exp %178 : vector<2x64xf32>
    %cst_37 = arith.constant 1.000000e+00 : f32
    %180 = vector.broadcast %cst_37 : f32 to vector<2x64xf32>
    %181 = arith.addf %180, %179 : vector<2x64xf32>
    %182 = arith.divf %180, %181 : vector<2x64xf32>
    %183 = vector.extract_strided_slice %163 {offsets = [0, 128], sizes = [2, 64], strides = [1, 1]} : vector<2x192xf32> to vector<2x64xf32>
    %184 = vector.extract_strided_slice %166 {offsets = [0, 128], sizes = [2, 64], strides = [1, 1]} : vector<2x192xf32> to vector<2x64xf32>
    %185 = arith.mulf %174, %184 : vector<2x64xf32>
    %186 = arith.addf %183, %185 : vector<2x64xf32>
    %187 = math.tanh %186 : vector<2x64xf32>
    %cst_38 = arith.constant 1.000000e+00 : f32
    %188 = vector.broadcast %cst_38 : f32 to vector<2x64xf32>
    %189 = arith.subf %188, %182 : vector<2x64xf32>
    %190 = arith.mulf %189, %187 : vector<2x64xf32>
    %191 = arith.mulf %182, %158 : vector<2x64xf32>
    %192 = arith.addf %190, %191 : vector<2x64xf32>
    %193 = vector.extract_strided_slice %192 {offsets = [0, 0], sizes = [2, 32], strides = [1, 1]} : vector<2x64xf32> to vector<2x32xf32>
    %c8_39 = arith.constant 8 : index
    %c0_40 = arith.constant 0 : index
    %194 = vector.load %arg17[%c8_39, %c0_40] : memref<16x32xf32, #tpu.memory_space<vmem>>, vector<2x32xf32>
    tpu.vector_store %arg17[%c8_39, %c0_40], %193 {strides = array<i32>} : memref<16x32xf32, #tpu.memory_space<vmem>>, vector<2x32xf32>,
    %195 = vector.extract_strided_slice %192 {offsets = [0, 32], sizes = [2, 32], strides = [1, 1]} : vector<2x64xf32> to vector<2x32xf32>
    %c6_41 = arith.constant 6 : index
    %c0_42 = arith.constant 0 : index
    %196 = vector.load %arg18[%c6_41, %c0_42] : memref<16x32xf32, #tpu.memory_space<vmem>>, vector<2x32xf32>
    tpu.vector_store %arg18[%c6_41, %c0_42], %195 {strides = array<i32>} : memref<16x32xf32, #tpu.memory_space<vmem>>, vector<2x32xf32>,
    %197 = vector.extract_strided_slice %25 {offsets = [10, 0], sizes = [2, 192], strides = [1, 1]} : vector<16x192xf32> to vector<2x192xf32>
    %cst_43 = arith.constant dense<0.000000e+00> : vector<2x192xf32>
    %198 = tpu.matmul %192, %2, %cst_43 {dimension_numbers = #tpu.dot_dimension_numbers<[1], [0], [0], [1], [0, 0, 1, 1], [], []>} : vector<2x64xf32>, vector<64x192xf32>, vector<2x192xf32> -> vector<2x192xf32>
    %199 = vector.broadcast %3 : vector<1x192xf32> to vector<2x192xf32>
    %200 = arith.addf %198, %199 : vector<2x192xf32>
    %201 = vector.extract_strided_slice %197 {offsets = [0, 0], sizes = [2, 64], strides = [1, 1]} : vector<2x192xf32> to vector<2x64xf32>
    %202 = vector.extract_strided_slice %200 {offsets = [0, 0], sizes = [2, 64], strides = [1, 1]} : vector<2x192xf32> to vector<2x64xf32>
    %203 = arith.addf %201, %202 : vector<2x64xf32>
    %204 = arith.negf %203 : vector<2x64xf32>
    %205 = math.exp %204 : vector<2x64xf32>
    %cst_44 = arith.constant 1.000000e+00 : f32
    %206 = vector.broadcast %cst_44 : f32 to vector<2x64xf32>
    %207 = arith.addf %206, %205 : vector<2x64xf32>
    %208 = arith.divf %206, %207 : vector<2x64xf32>
    %209 = vector.extract_strided_slice %197 {offsets = [0, 64], sizes = [2, 64], strides = [1, 1]} : vector<2x192xf32> to vector<2x64xf32>
    %210 = vector.extract_strided_slice %200 {offsets = [0, 64], sizes = [2, 64], strides = [1, 1]} : vector<2x192xf32> to vector<2x64xf32>
    %211 = arith.addf %209, %210 : vector<2x64xf32>
    %212 = arith.negf %211 : vector<2x64xf32>
    %213 = math.exp %212 : vector<2x64xf32>
    %cst_45 = arith.constant 1.000000e+00 : f32
    %214 = vector.broadcast %cst_45 : f32 to vector<2x64xf32>
    %215 = arith.addf %214, %213 : vector<2x64xf32>
    %216 = arith.divf %214, %215 : vector<2x64xf32>
    %217 = vector.extract_strided_slice %197 {offsets = [0, 128], sizes = [2, 64], strides = [1, 1]} : vector<2x192xf32> to vector<2x64xf32>
    %218 = vector.extract_strided_slice %200 {offsets = [0, 128], sizes = [2, 64], strides = [1, 1]} : vector<2x192xf32> to vector<2x64xf32>
    %219 = arith.mulf %208, %218 : vector<2x64xf32>
    %220 = arith.addf %217, %219 : vector<2x64xf32>
    %221 = math.tanh %220 : vector<2x64xf32>
    %cst_46 = arith.constant 1.000000e+00 : f32
    %222 = vector.broadcast %cst_46 : f32 to vector<2x64xf32>
    %223 = arith.subf %222, %216 : vector<2x64xf32>
    %224 = arith.mulf %223, %221 : vector<2x64xf32>
    %225 = arith.mulf %216, %192 : vector<2x64xf32>
    %226 = arith.addf %224, %225 : vector<2x64xf32>
    %227 = vector.extract_strided_slice %226 {offsets = [0, 0], sizes = [2, 32], strides = [1, 1]} : vector<2x64xf32> to vector<2x32xf32>
    %c10_47 = arith.constant 10 : index
    %c0_48 = arith.constant 0 : index
    %228 = vector.load %arg17[%c10_47, %c0_48] : memref<16x32xf32, #tpu.memory_space<vmem>>, vector<2x32xf32>
    tpu.vector_store %arg17[%c10_47, %c0_48], %227 {strides = array<i32>} : memref<16x32xf32, #tpu.memory_space<vmem>>, vector<2x32xf32>,
    %229 = vector.extract_strided_slice %226 {offsets = [0, 32], sizes = [2, 32], strides = [1, 1]} : vector<2x64xf32> to vector<2x32xf32>
    %c4_49 = arith.constant 4 : index
    %c0_50 = arith.constant 0 : index
    %230 = vector.load %arg18[%c4_49, %c0_50] : memref<16x32xf32, #tpu.memory_space<vmem>>, vector<2x32xf32>
    tpu.vector_store %arg18[%c4_49, %c0_50], %229 {strides = array<i32>} : memref<16x32xf32, #tpu.memory_space<vmem>>, vector<2x32xf32>,
    %231 = vector.extract_strided_slice %25 {offsets = [12, 0], sizes = [2, 192], strides = [1, 1]} : vector<16x192xf32> to vector<2x192xf32>
    %cst_51 = arith.constant dense<0.000000e+00> : vector<2x192xf32>
    %232 = tpu.matmul %226, %2, %cst_51 {dimension_numbers = #tpu.dot_dimension_numbers<[1], [0], [0], [1], [0, 0, 1, 1], [], []>} : vector<2x64xf32>, vector<64x192xf32>, vector<2x192xf32> -> vector<2x192xf32>
    %233 = vector.broadcast %3 : vector<1x192xf32> to vector<2x192xf32>
    %234 = arith.addf %232, %233 : vector<2x192xf32>
    %235 = vector.extract_strided_slice %231 {offsets = [0, 0], sizes = [2, 64], strides = [1, 1]} : vector<2x192xf32> to vector<2x64xf32>
    %236 = vector.extract_strided_slice %234 {offsets = [0, 0], sizes = [2, 64], strides = [1, 1]} : vector<2x192xf32> to vector<2x64xf32>
    %237 = arith.addf %235, %236 : vector<2x64xf32>
    %238 = arith.negf %237 : vector<2x64xf32>
    %239 = math.exp %238 : vector<2x64xf32>
    %cst_52 = arith.constant 1.000000e+00 : f32
    %240 = vector.broadcast %cst_52 : f32 to vector<2x64xf32>
    %241 = arith.addf %240, %239 : vector<2x64xf32>
    %242 = arith.divf %240, %241 : vector<2x64xf32>
    %243 = vector.extract_strided_slice %231 {offsets = [0, 64], sizes = [2, 64], strides = [1, 1]} : vector<2x192xf32> to vector<2x64xf32>
    %244 = vector.extract_strided_slice %234 {offsets = [0, 64], sizes = [2, 64], strides = [1, 1]} : vector<2x192xf32> to vector<2x64xf32>
    %245 = arith.addf %243, %244 : vector<2x64xf32>
    %246 = arith.negf %245 : vector<2x64xf32>
    %247 = math.exp %246 : vector<2x64xf32>
    %cst_53 = arith.constant 1.000000e+00 : f32
    %248 = vector.broadcast %cst_53 : f32 to vector<2x64xf32>
    %249 = arith.addf %248, %247 : vector<2x64xf32>
    %250 = arith.divf %248, %249 : vector<2x64xf32>
    %251 = vector.extract_strided_slice %231 {offsets = [0, 128], sizes = [2, 64], strides = [1, 1]} : vector<2x192xf32> to vector<2x64xf32>
    %252 = vector.extract_strided_slice %234 {offsets = [0, 128], sizes = [2, 64], strides = [1, 1]} : vector<2x192xf32> to vector<2x64xf32>
    %253 = arith.mulf %242, %252 : vector<2x64xf32>
    %254 = arith.addf %251, %253 : vector<2x64xf32>
    %255 = math.tanh %254 : vector<2x64xf32>
    %cst_54 = arith.constant 1.000000e+00 : f32
    %256 = vector.broadcast %cst_54 : f32 to vector<2x64xf32>
    %257 = arith.subf %256, %250 : vector<2x64xf32>
    %258 = arith.mulf %257, %255 : vector<2x64xf32>
    %259 = arith.mulf %250, %226 : vector<2x64xf32>
    %260 = arith.addf %258, %259 : vector<2x64xf32>
    %261 = vector.extract_strided_slice %260 {offsets = [0, 0], sizes = [2, 32], strides = [1, 1]} : vector<2x64xf32> to vector<2x32xf32>
    %c12_55 = arith.constant 12 : index
    %c0_56 = arith.constant 0 : index
    %262 = vector.load %arg17[%c12_55, %c0_56] : memref<16x32xf32, #tpu.memory_space<vmem>>, vector<2x32xf32>
    tpu.vector_store %arg17[%c12_55, %c0_56], %261 {strides = array<i32>} : memref<16x32xf32, #tpu.memory_space<vmem>>, vector<2x32xf32>,
    %263 = vector.extract_strided_slice %260 {offsets = [0, 32], sizes = [2, 32], strides = [1, 1]} : vector<2x64xf32> to vector<2x32xf32>
    %c2_57 = arith.constant 2 : index
    %c0_58 = arith.constant 0 : index
    %264 = vector.load %arg18[%c2_57, %c0_58] : memref<16x32xf32, #tpu.memory_space<vmem>>, vector<2x32xf32>
    tpu.vector_store %arg18[%c2_57, %c0_58], %263 {strides = array<i32>} : memref<16x32xf32, #tpu.memory_space<vmem>>, vector<2x32xf32>,
    %265 = vector.extract_strided_slice %25 {offsets = [14, 0], sizes = [2, 192], strides = [1, 1]} : vector<16x192xf32> to vector<2x192xf32>
    %cst_59 = arith.constant dense<0.000000e+00> : vector<2x192xf32>
    %266 = tpu.matmul %260, %2, %cst_59 {dimension_numbers = #tpu.dot_dimension_numbers<[1], [0], [0], [1], [0, 0, 1, 1], [], []>} : vector<2x64xf32>, vector<64x192xf32>, vector<2x192xf32> -> vector<2x192xf32>
    %267 = vector.broadcast %3 : vector<1x192xf32> to vector<2x192xf32>
    %268 = arith.addf %266, %267 : vector<2x192xf32>
    %269 = vector.extract_strided_slice %265 {offsets = [0, 0], sizes = [2, 64], strides = [1, 1]} : vector<2x192xf32> to vector<2x64xf32>
    %270 = vector.extract_strided_slice %268 {offsets = [0, 0], sizes = [2, 64], strides = [1, 1]} : vector<2x192xf32> to vector<2x64xf32>
    %271 = arith.addf %269, %270 : vector<2x64xf32>
    %272 = arith.negf %271 : vector<2x64xf32>
    %273 = math.exp %272 : vector<2x64xf32>
    %cst_60 = arith.constant 1.000000e+00 : f32
    %274 = vector.broadcast %cst_60 : f32 to vector<2x64xf32>
    %275 = arith.addf %274, %273 : vector<2x64xf32>
    %276 = arith.divf %274, %275 : vector<2x64xf32>
    %277 = vector.extract_strided_slice %265 {offsets = [0, 64], sizes = [2, 64], strides = [1, 1]} : vector<2x192xf32> to vector<2x64xf32>
    %278 = vector.extract_strided_slice %268 {offsets = [0, 64], sizes = [2, 64], strides = [1, 1]} : vector<2x192xf32> to vector<2x64xf32>
    %279 = arith.addf %277, %278 : vector<2x64xf32>
    %280 = arith.negf %279 : vector<2x64xf32>
    %281 = math.exp %280 : vector<2x64xf32>
    %cst_61 = arith.constant 1.000000e+00 : f32
    %282 = vector.broadcast %cst_61 : f32 to vector<2x64xf32>
    %283 = arith.addf %282, %281 : vector<2x64xf32>
    %284 = arith.divf %282, %283 : vector<2x64xf32>
    %285 = vector.extract_strided_slice %265 {offsets = [0, 128], sizes = [2, 64], strides = [1, 1]} : vector<2x192xf32> to vector<2x64xf32>
    %286 = vector.extract_strided_slice %268 {offsets = [0, 128], sizes = [2, 64], strides = [1, 1]} : vector<2x192xf32> to vector<2x64xf32>
    %287 = arith.mulf %276, %286 : vector<2x64xf32>
    %288 = arith.addf %285, %287 : vector<2x64xf32>
    %289 = math.tanh %288 : vector<2x64xf32>
    %cst_62 = arith.constant 1.000000e+00 : f32
    %290 = vector.broadcast %cst_62 : f32 to vector<2x64xf32>
    %291 = arith.subf %290, %284 : vector<2x64xf32>
    %292 = arith.mulf %291, %289 : vector<2x64xf32>
    %293 = arith.mulf %284, %260 : vector<2x64xf32>
    %294 = arith.addf %292, %293 : vector<2x64xf32>
    %295 = vector.extract_strided_slice %294 {offsets = [0, 0], sizes = [2, 32], strides = [1, 1]} : vector<2x64xf32> to vector<2x32xf32>
    %c14_63 = arith.constant 14 : index
    %c0_64 = arith.constant 0 : index
    %296 = vector.load %arg17[%c14_63, %c0_64] : memref<16x32xf32, #tpu.memory_space<vmem>>, vector<2x32xf32>
    tpu.vector_store %arg17[%c14_63, %c0_64], %295 {strides = array<i32>} : memref<16x32xf32, #tpu.memory_space<vmem>>, vector<2x32xf32>,
    %297 = vector.extract_strided_slice %294 {offsets = [0, 32], sizes = [2, 32], strides = [1, 1]} : vector<2x64xf32> to vector<2x32xf32>
    %c0_65 = arith.constant 0 : index
    %c0_66 = arith.constant 0 : index
    %298 = vector.load %arg18[%c0_65, %c0_66] : memref<16x32xf32, #tpu.memory_space<vmem>>, vector<2x32xf32>
    tpu.vector_store %arg18[%c0_65, %c0_66], %297 {strides = array<i32>} : memref<16x32xf32, #tpu.memory_space<vmem>>, vector<2x32xf32>,
    %c0_67 = arith.constant 0 : index
    %c0_68 = arith.constant 0 : index
    %299 = vector.load %arg5[%c0_67, %c0_68] : memref<64x192xf32, #tpu.memory_space<vmem>>, vector<64x192xf32>
    %c0_69 = arith.constant 0 : index
    %c0_70 = arith.constant 0 : index
    %300 = vector.load %arg6[%c0_69, %c0_70] : memref<1x192xf32, #tpu.memory_space<vmem>>, vector<1x192xf32>
    %c0_71 = arith.constant 0 : index
    %c0_72 = arith.constant 0 : index
    %301 = vector.load %arg7[%c0_71, %c0_72] : memref<64x192xf32, #tpu.memory_space<vmem>>, vector<64x192xf32>
    %c0_73 = arith.constant 0 : index
    %c0_74 = arith.constant 0 : index
    %302 = vector.load %arg8[%c0_73, %c0_74] : memref<1x192xf32, #tpu.memory_space<vmem>>, vector<1x192xf32>
    %c0_75 = arith.constant 0 : index
    %c0_76 = arith.constant 0 : index
    %303 = vector.load %arg17[%c0_75, %c0_76] : memref<16x32xf32, #tpu.memory_space<vmem>>, vector<16x32xf32>
    %c0_77 = arith.constant 0 : index
    %c0_78 = arith.constant 0 : index
    %304 = vector.load %arg18[%c0_77, %c0_78] : memref<16x32xf32, #tpu.memory_space<vmem>>, vector<16x32xf32>
    %305 = tpu.concatenate %303, %304 in 1 : vector<16x32xf32>, vector<16x32xf32> -> vector<16x64xf32>
    %cst_79 = arith.constant dense<0.000000e+00> : vector<16x192xf32>
    %306 = tpu.matmul %305, %299, %cst_79 {dimension_numbers = #tpu.dot_dimension_numbers<[1], [0], [0], [1], [0, 0, 1, 1], [], []>} : vector<16x64xf32>, vector<64x192xf32>, vector<16x192xf32> -> vector<16x192xf32>
    %307 = vector.broadcast %300 : vector<1x192xf32> to vector<16x192xf32>
    %308 = arith.addf %306, %307 : vector<16x192xf32>
    %309 = vector.extract_strided_slice %308 {offsets = [0, 0], sizes = [16, 96], strides = [1, 1]} : vector<16x192xf32> to vector<16x96xf32>
    %310 = vector.extract_strided_slice %308 {offsets = [0, 96], sizes = [16, 96], strides = [1, 1]} : vector<16x192xf32> to vector<16x96xf32>
    %311 = vector.extract_strided_slice %310 {offsets = [14, 0], sizes = [2, 96], strides = [1, 1]} : vector<16x96xf32> to vector<2x96xf32>
    %312 = vector.extract_strided_slice %310 {offsets = [12, 0], sizes = [2, 96], strides = [1, 1]} : vector<16x96xf32> to vector<2x96xf32>
    %313 = vector.extract_strided_slice %310 {offsets = [10, 0], sizes = [2, 96], strides = [1, 1]} : vector<16x96xf32> to vector<2x96xf32>
    %314 = vector.extract_strided_slice %310 {offsets = [8, 0], sizes = [2, 96], strides = [1, 1]} : vector<16x96xf32> to vector<2x96xf32>
    %315 = vector.extract_strided_slice %310 {offsets = [6, 0], sizes = [2, 96], strides = [1, 1]} : vector<16x96xf32> to vector<2x96xf32>
    %316 = vector.extract_strided_slice %310 {offsets = [4, 0], sizes = [2, 96], strides = [1, 1]} : vector<16x96xf32> to vector<2x96xf32>
    %317 = vector.extract_strided_slice %310 {offsets = [2, 0], sizes = [2, 96], strides = [1, 1]} : vector<16x96xf32> to vector<2x96xf32>
    %318 = vector.extract_strided_slice %310 {offsets = [0, 0], sizes = [2, 96], strides = [1, 1]} : vector<16x96xf32> to vector<2x96xf32>
    %319 = tpu.concatenate %311, %312, %313, %314, %315, %316, %317, %318 in 0 : vector<2x96xf32>, vector<2x96xf32>, vector<2x96xf32>, vector<2x96xf32>, vector<2x96xf32>, vector<2x96xf32>, vector<2x96xf32>, vector<2x96xf32> -> vector<16x96xf32>
    %320 = vector.extract_strided_slice %309 {offsets = [0, 0], sizes = [16, 32], strides = [1, 1]} : vector<16x96xf32> to vector<16x32xf32>
    %321 = vector.extract_strided_slice %319 {offsets = [0, 0], sizes = [16, 32], strides = [1, 1]} : vector<16x96xf32> to vector<16x32xf32>
    %322 = vector.extract_strided_slice %309 {offsets = [0, 32], sizes = [16, 32], strides = [1, 1]} : vector<16x96xf32> to vector<16x32xf32>
    %323 = vector.extract_strided_slice %319 {offsets = [0, 32], sizes = [16, 32], strides = [1, 1]} : vector<16x96xf32> to vector<16x32xf32>
    %324 = vector.extract_strided_slice %309 {offsets = [0, 64], sizes = [16, 32], strides = [1, 1]} : vector<16x96xf32> to vector<16x32xf32>
    %325 = vector.extract_strided_slice %319 {offsets = [0, 64], sizes = [16, 32], strides = [1, 1]} : vector<16x96xf32> to vector<16x32xf32>
    %326 = tpu.concatenate %320, %321, %322, %323, %324, %325 in 1 : vector<16x32xf32>, vector<16x32xf32>, vector<16x32xf32>, vector<16x32xf32>, vector<16x32xf32>, vector<16x32xf32> -> vector<16x192xf32>
    %cst_80 = arith.constant 0.000000e+00 : f32
    %327 = vector.broadcast %cst_80 : f32 to vector<2x64xf32>
    %328 = vector.extract_strided_slice %326 {offsets = [0, 0], sizes = [2, 192], strides = [1, 1]} : vector<16x192xf32> to vector<2x192xf32>
    %cst_81 = arith.constant dense<0.000000e+00> : vector<2x192xf32>
    %329 = tpu.matmul %327, %301, %cst_81 {dimension_numbers = #tpu.dot_dimension_numbers<[1], [0], [0], [1], [0, 0, 1, 1], [], []>} : vector<2x64xf32>, vector<64x192xf32>, vector<2x192xf32> -> vector<2x192xf32>
    %330 = vector.broadcast %302 : vector<1x192xf32> to vector<2x192xf32>
    %331 = arith.addf %329, %330 : vector<2x192xf32>
    %332 = vector.extract_strided_slice %328 {offsets = [0, 0], sizes = [2, 64], strides = [1, 1]} : vector<2x192xf32> to vector<2x64xf32>
    %333 = vector.extract_strided_slice %331 {offsets = [0, 0], sizes = [2, 64], strides = [1, 1]} : vector<2x192xf32> to vector<2x64xf32>
    %334 = arith.addf %332, %333 : vector<2x64xf32>
    %335 = arith.negf %334 : vector<2x64xf32>
    %336 = math.exp %335 : vector<2x64xf32>
    %cst_82 = arith.constant 1.000000e+00 : f32
    %337 = vector.broadcast %cst_82 : f32 to vector<2x64xf32>
    %338 = arith.addf %337, %336 : vector<2x64xf32>
    %339 = arith.divf %337, %338 : vector<2x64xf32>
    %340 = vector.extract_strided_slice %328 {offsets = [0, 64], sizes = [2, 64], strides = [1, 1]} : vector<2x192xf32> to vector<2x64xf32>
    %341 = vector.extract_strided_slice %331 {offsets = [0, 64], sizes = [2, 64], strides = [1, 1]} : vector<2x192xf32> to vector<2x64xf32>
    %342 = arith.addf %340, %341 : vector<2x64xf32>
    %343 = arith.negf %342 : vector<2x64xf32>
    %344 = math.exp %343 : vector<2x64xf32>
    %cst_83 = arith.constant 1.000000e+00 : f32
    %345 = vector.broadcast %cst_83 : f32 to vector<2x64xf32>
    %346 = arith.addf %345, %344 : vector<2x64xf32>
    %347 = arith.divf %345, %346 : vector<2x64xf32>
    %348 = vector.extract_strided_slice %328 {offsets = [0, 128], sizes = [2, 64], strides = [1, 1]} : vector<2x192xf32> to vector<2x64xf32>
    %349 = vector.extract_strided_slice %331 {offsets = [0, 128], sizes = [2, 64], strides = [1, 1]} : vector<2x192xf32> to vector<2x64xf32>
    %350 = arith.mulf %339, %349 : vector<2x64xf32>
    %351 = arith.addf %348, %350 : vector<2x64xf32>
    %352 = math.tanh %351 : vector<2x64xf32>
    %cst_84 = arith.constant 1.000000e+00 : f32
    %353 = vector.broadcast %cst_84 : f32 to vector<2x64xf32>
    %354 = arith.subf %353, %347 : vector<2x64xf32>
    %355 = arith.mulf %354, %352 : vector<2x64xf32>
    %356 = arith.mulf %347, %327 : vector<2x64xf32>
    %357 = arith.addf %355, %356 : vector<2x64xf32>
    %358 = vector.extract_strided_slice %357 {offsets = [0, 0], sizes = [2, 32], strides = [1, 1]} : vector<2x64xf32> to vector<2x32xf32>
    %c0_85 = arith.constant 0 : index
    %c0_86 = arith.constant 0 : index
    %359 = vector.load %arg19[%c0_85, %c0_86] : memref<16x32xf32, #tpu.memory_space<vmem>>, vector<2x32xf32>
    tpu.vector_store %arg19[%c0_85, %c0_86], %358 {strides = array<i32>} : memref<16x32xf32, #tpu.memory_space<vmem>>, vector<2x32xf32>,
    %360 = vector.extract_strided_slice %357 {offsets = [0, 32], sizes = [2, 32], strides = [1, 1]} : vector<2x64xf32> to vector<2x32xf32>
    %c14_87 = arith.constant 14 : index
    %c0_88 = arith.constant 0 : index
    %361 = vector.load %arg20[%c14_87, %c0_88] : memref<16x32xf32, #tpu.memory_space<vmem>>, vector<2x32xf32>
    tpu.vector_store %arg20[%c14_87, %c0_88], %360 {strides = array<i32>} : memref<16x32xf32, #tpu.memory_space<vmem>>, vector<2x32xf32>,
    %362 = vector.extract_strided_slice %326 {offsets = [2, 0], sizes = [2, 192], strides = [1, 1]} : vector<16x192xf32> to vector<2x192xf32>
    %cst_89 = arith.constant dense<0.000000e+00> : vector<2x192xf32>
    %363 = tpu.matmul %357, %301, %cst_89 {dimension_numbers = #tpu.dot_dimension_numbers<[1], [0], [0], [1], [0, 0, 1, 1], [], []>} : vector<2x64xf32>, vector<64x192xf32>, vector<2x192xf32> -> vector<2x192xf32>
    %364 = vector.broadcast %302 : vector<1x192xf32> to vector<2x192xf32>
    %365 = arith.addf %363, %364 : vector<2x192xf32>
    %366 = vector.extract_strided_slice %362 {offsets = [0, 0], sizes = [2, 64], strides = [1, 1]} : vector<2x192xf32> to vector<2x64xf32>
    %367 = vector.extract_strided_slice %365 {offsets = [0, 0], sizes = [2, 64], strides = [1, 1]} : vector<2x192xf32> to vector<2x64xf32>
    %368 = arith.addf %366, %367 : vector<2x64xf32>
    %369 = arith.negf %368 : vector<2x64xf32>
    %370 = math.exp %369 : vector<2x64xf32>
    %cst_90 = arith.constant 1.000000e+00 : f32
    %371 = vector.broadcast %cst_90 : f32 to vector<2x64xf32>
    %372 = arith.addf %371, %370 : vector<2x64xf32>
    %373 = arith.divf %371, %372 : vector<2x64xf32>
    %374 = vector.extract_strided_slice %362 {offsets = [0, 64], sizes = [2, 64], strides = [1, 1]} : vector<2x192xf32> to vector<2x64xf32>
    %375 = vector.extract_strided_slice %365 {offsets = [0, 64], sizes = [2, 64], strides = [1, 1]} : vector<2x192xf32> to vector<2x64xf32>
    %376 = arith.addf %374, %375 : vector<2x64xf32>
    %377 = arith.negf %376 : vector<2x64xf32>
    %378 = math.exp %377 : vector<2x64xf32>
    %cst_91 = arith.constant 1.000000e+00 : f32
    %379 = vector.broadcast %cst_91 : f32 to vector<2x64xf32>
    %380 = arith.addf %379, %378 : vector<2x64xf32>
    %381 = arith.divf %379, %380 : vector<2x64xf32>
    %382 = vector.extract_strided_slice %362 {offsets = [0, 128], sizes = [2, 64], strides = [1, 1]} : vector<2x192xf32> to vector<2x64xf32>
    %383 = vector.extract_strided_slice %365 {offsets = [0, 128], sizes = [2, 64], strides = [1, 1]} : vector<2x192xf32> to vector<2x64xf32>
    %384 = arith.mulf %373, %383 : vector<2x64xf32>
    %385 = arith.addf %382, %384 : vector<2x64xf32>
    %386 = math.tanh %385 : vector<2x64xf32>
    %cst_92 = arith.constant 1.000000e+00 : f32
    %387 = vector.broadcast %cst_92 : f32 to vector<2x64xf32>
    %388 = arith.subf %387, %381 : vector<2x64xf32>
    %389 = arith.mulf %388, %386 : vector<2x64xf32>
    %390 = arith.mulf %381, %357 : vector<2x64xf32>
    %391 = arith.addf %389, %390 : vector<2x64xf32>
    %392 = vector.extract_strided_slice %391 {offsets = [0, 0], sizes = [2, 32], strides = [1, 1]} : vector<2x64xf32> to vector<2x32xf32>
    %c2_93 = arith.constant 2 : index
    %c0_94 = arith.constant 0 : index
    %393 = vector.load %arg19[%c2_93, %c0_94] : memref<16x32xf32, #tpu.memory_space<vmem>>, vector<2x32xf32>
    tpu.vector_store %arg19[%c2_93, %c0_94], %392 {strides = array<i32>} : memref<16x32xf32, #tpu.memory_space<vmem>>, vector<2x32xf32>,
    %394 = vector.extract_strided_slice %391 {offsets = [0, 32], sizes = [2, 32], strides = [1, 1]} : vector<2x64xf32> to vector<2x32xf32>
    %c12_95 = arith.constant 12 : index
    %c0_96 = arith.constant 0 : index
    %395 = vector.load %arg20[%c12_95, %c0_96] : memref<16x32xf32, #tpu.memory_space<vmem>>, vector<2x32xf32>
    tpu.vector_store %arg20[%c12_95, %c0_96], %394 {strides = array<i32>} : memref<16x32xf32, #tpu.memory_space<vmem>>, vector<2x32xf32>,
    %396 = vector.extract_strided_slice %326 {offsets = [4, 0], sizes = [2, 192], strides = [1, 1]} : vector<16x192xf32> to vector<2x192xf32>
    %cst_97 = arith.constant dense<0.000000e+00> : vector<2x192xf32>
    %397 = tpu.matmul %391, %301, %cst_97 {dimension_numbers = #tpu.dot_dimension_numbers<[1], [0], [0], [1], [0, 0, 1, 1], [], []>} : vector<2x64xf32>, vector<64x192xf32>, vector<2x192xf32> -> vector<2x192xf32>
    %398 = vector.broadcast %302 : vector<1x192xf32> to vector<2x192xf32>
    %399 = arith.addf %397, %398 : vector<2x192xf32>
    %400 = vector.extract_strided_slice %396 {offsets = [0, 0], sizes = [2, 64], strides = [1, 1]} : vector<2x192xf32> to vector<2x64xf32>
    %401 = vector.extract_strided_slice %399 {offsets = [0, 0], sizes = [2, 64], strides = [1, 1]} : vector<2x192xf32> to vector<2x64xf32>
    %402 = arith.addf %400, %401 : vector<2x64xf32>
    %403 = arith.negf %402 : vector<2x64xf32>
    %404 = math.exp %403 : vector<2x64xf32>
    %cst_98 = arith.constant 1.000000e+00 : f32
    %405 = vector.broadcast %cst_98 : f32 to vector<2x64xf32>
    %406 = arith.addf %405, %404 : vector<2x64xf32>
    %407 = arith.divf %405, %406 : vector<2x64xf32>
    %408 = vector.extract_strided_slice %396 {offsets = [0, 64], sizes = [2, 64], strides = [1, 1]} : vector<2x192xf32> to vector<2x64xf32>
    %409 = vector.extract_strided_slice %399 {offsets = [0, 64], sizes = [2, 64], strides = [1, 1]} : vector<2x192xf32> to vector<2x64xf32>
    %410 = arith.addf %408, %409 : vector<2x64xf32>
    %411 = arith.negf %410 : vector<2x64xf32>
    %412 = math.exp %411 : vector<2x64xf32>
    %cst_99 = arith.constant 1.000000e+00 : f32
    %413 = vector.broadcast %cst_99 : f32 to vector<2x64xf32>
    %414 = arith.addf %413, %412 : vector<2x64xf32>
    %415 = arith.divf %413, %414 : vector<2x64xf32>
    %416 = vector.extract_strided_slice %396 {offsets = [0, 128], sizes = [2, 64], strides = [1, 1]} : vector<2x192xf32> to vector<2x64xf32>
    %417 = vector.extract_strided_slice %399 {offsets = [0, 128], sizes = [2, 64], strides = [1, 1]} : vector<2x192xf32> to vector<2x64xf32>
    %418 = arith.mulf %407, %417 : vector<2x64xf32>
    %419 = arith.addf %416, %418 : vector<2x64xf32>
    %420 = math.tanh %419 : vector<2x64xf32>
    %cst_100 = arith.constant 1.000000e+00 : f32
    %421 = vector.broadcast %cst_100 : f32 to vector<2x64xf32>
    %422 = arith.subf %421, %415 : vector<2x64xf32>
    %423 = arith.mulf %422, %420 : vector<2x64xf32>
    %424 = arith.mulf %415, %391 : vector<2x64xf32>
    %425 = arith.addf %423, %424 : vector<2x64xf32>
    %426 = vector.extract_strided_slice %425 {offsets = [0, 0], sizes = [2, 32], strides = [1, 1]} : vector<2x64xf32> to vector<2x32xf32>
    %c4_101 = arith.constant 4 : index
    %c0_102 = arith.constant 0 : index
    %427 = vector.load %arg19[%c4_101, %c0_102] : memref<16x32xf32, #tpu.memory_space<vmem>>, vector<2x32xf32>
    tpu.vector_store %arg19[%c4_101, %c0_102], %426 {strides = array<i32>} : memref<16x32xf32, #tpu.memory_space<vmem>>, vector<2x32xf32>,
    %428 = vector.extract_strided_slice %425 {offsets = [0, 32], sizes = [2, 32], strides = [1, 1]} : vector<2x64xf32> to vector<2x32xf32>
    %c10_103 = arith.constant 10 : index
    %c0_104 = arith.constant 0 : index
    %429 = vector.load %arg20[%c10_103, %c0_104] : memref<16x32xf32, #tpu.memory_space<vmem>>, vector<2x32xf32>
    tpu.vector_store %arg20[%c10_103, %c0_104], %428 {strides = array<i32>} : memref<16x32xf32, #tpu.memory_space<vmem>>, vector<2x32xf32>,
    %430 = vector.extract_strided_slice %326 {offsets = [6, 0], sizes = [2, 192], strides = [1, 1]} : vector<16x192xf32> to vector<2x192xf32>
    %cst_105 = arith.constant dense<0.000000e+00> : vector<2x192xf32>
    %431 = tpu.matmul %425, %301, %cst_105 {dimension_numbers = #tpu.dot_dimension_numbers<[1], [0], [0], [1], [0, 0, 1, 1], [], []>} : vector<2x64xf32>, vector<64x192xf32>, vector<2x192xf32> -> vector<2x192xf32>
    %432 = vector.broadcast %302 : vector<1x192xf32> to vector<2x192xf32>
    %433 = arith.addf %431, %432 : vector<2x192xf32>
    %434 = vector.extract_strided_slice %430 {offsets = [0, 0], sizes = [2, 64], strides = [1, 1]} : vector<2x192xf32> to vector<2x64xf32>
    %435 = vector.extract_strided_slice %433 {offsets = [0, 0], sizes = [2, 64], strides = [1, 1]} : vector<2x192xf32> to vector<2x64xf32>
    %436 = arith.addf %434, %435 : vector<2x64xf32>
    %437 = arith.negf %436 : vector<2x64xf32>
    %438 = math.exp %437 : vector<2x64xf32>
    %cst_106 = arith.constant 1.000000e+00 : f32
    %439 = vector.broadcast %cst_106 : f32 to vector<2x64xf32>
    %440 = arith.addf %439, %438 : vector<2x64xf32>
    %441 = arith.divf %439, %440 : vector<2x64xf32>
    %442 = vector.extract_strided_slice %430 {offsets = [0, 64], sizes = [2, 64], strides = [1, 1]} : vector<2x192xf32> to vector<2x64xf32>
    %443 = vector.extract_strided_slice %433 {offsets = [0, 64], sizes = [2, 64], strides = [1, 1]} : vector<2x192xf32> to vector<2x64xf32>
    %444 = arith.addf %442, %443 : vector<2x64xf32>
    %445 = arith.negf %444 : vector<2x64xf32>
    %446 = math.exp %445 : vector<2x64xf32>
    %cst_107 = arith.constant 1.000000e+00 : f32
    %447 = vector.broadcast %cst_107 : f32 to vector<2x64xf32>
    %448 = arith.addf %447, %446 : vector<2x64xf32>
    %449 = arith.divf %447, %448 : vector<2x64xf32>
    %450 = vector.extract_strided_slice %430 {offsets = [0, 128], sizes = [2, 64], strides = [1, 1]} : vector<2x192xf32> to vector<2x64xf32>
    %451 = vector.extract_strided_slice %433 {offsets = [0, 128], sizes = [2, 64], strides = [1, 1]} : vector<2x192xf32> to vector<2x64xf32>
    %452 = arith.mulf %441, %451 : vector<2x64xf32>
    %453 = arith.addf %450, %452 : vector<2x64xf32>
    %454 = math.tanh %453 : vector<2x64xf32>
    %cst_108 = arith.constant 1.000000e+00 : f32
    %455 = vector.broadcast %cst_108 : f32 to vector<2x64xf32>
    %456 = arith.subf %455, %449 : vector<2x64xf32>
    %457 = arith.mulf %456, %454 : vector<2x64xf32>
    %458 = arith.mulf %449, %425 : vector<2x64xf32>
    %459 = arith.addf %457, %458 : vector<2x64xf32>
    %460 = vector.extract_strided_slice %459 {offsets = [0, 0], sizes = [2, 32], strides = [1, 1]} : vector<2x64xf32> to vector<2x32xf32>
    %c6_109 = arith.constant 6 : index
    %c0_110 = arith.constant 0 : index
    %461 = vector.load %arg19[%c6_109, %c0_110] : memref<16x32xf32, #tpu.memory_space<vmem>>, vector<2x32xf32>
    tpu.vector_store %arg19[%c6_109, %c0_110], %460 {strides = array<i32>} : memref<16x32xf32, #tpu.memory_space<vmem>>, vector<2x32xf32>,
    %462 = vector.extract_strided_slice %459 {offsets = [0, 32], sizes = [2, 32], strides = [1, 1]} : vector<2x64xf32> to vector<2x32xf32>
    %c8_111 = arith.constant 8 : index
    %c0_112 = arith.constant 0 : index
    %463 = vector.load %arg20[%c8_111, %c0_112] : memref<16x32xf32, #tpu.memory_space<vmem>>, vector<2x32xf32>
    tpu.vector_store %arg20[%c8_111, %c0_112], %462 {strides = array<i32>} : memref<16x32xf32, #tpu.memory_space<vmem>>, vector<2x32xf32>,
    %464 = vector.extract_strided_slice %326 {offsets = [8, 0], sizes = [2, 192], strides = [1, 1]} : vector<16x192xf32> to vector<2x192xf32>
    %cst_113 = arith.constant dense<0.000000e+00> : vector<2x192xf32>
    %465 = tpu.matmul %459, %301, %cst_113 {dimension_numbers = #tpu.dot_dimension_numbers<[1], [0], [0], [1], [0, 0, 1, 1], [], []>} : vector<2x64xf32>, vector<64x192xf32>, vector<2x192xf32> -> vector<2x192xf32>
    %466 = vector.broadcast %302 : vector<1x192xf32> to vector<2x192xf32>
    %467 = arith.addf %465, %466 : vector<2x192xf32>
    %468 = vector.extract_strided_slice %464 {offsets = [0, 0], sizes = [2, 64], strides = [1, 1]} : vector<2x192xf32> to vector<2x64xf32>
    %469 = vector.extract_strided_slice %467 {offsets = [0, 0], sizes = [2, 64], strides = [1, 1]} : vector<2x192xf32> to vector<2x64xf32>
    %470 = arith.addf %468, %469 : vector<2x64xf32>
    %471 = arith.negf %470 : vector<2x64xf32>
    %472 = math.exp %471 : vector<2x64xf32>
    %cst_114 = arith.constant 1.000000e+00 : f32
    %473 = vector.broadcast %cst_114 : f32 to vector<2x64xf32>
    %474 = arith.addf %473, %472 : vector<2x64xf32>
    %475 = arith.divf %473, %474 : vector<2x64xf32>
    %476 = vector.extract_strided_slice %464 {offsets = [0, 64], sizes = [2, 64], strides = [1, 1]} : vector<2x192xf32> to vector<2x64xf32>
    %477 = vector.extract_strided_slice %467 {offsets = [0, 64], sizes = [2, 64], strides = [1, 1]} : vector<2x192xf32> to vector<2x64xf32>
    %478 = arith.addf %476, %477 : vector<2x64xf32>
    %479 = arith.negf %478 : vector<2x64xf32>
    %480 = math.exp %479 : vector<2x64xf32>
    %cst_115 = arith.constant 1.000000e+00 : f32
    %481 = vector.broadcast %cst_115 : f32 to vector<2x64xf32>
    %482 = arith.addf %481, %480 : vector<2x64xf32>
    %483 = arith.divf %481, %482 : vector<2x64xf32>
    %484 = vector.extract_strided_slice %464 {offsets = [0, 128], sizes = [2, 64], strides = [1, 1]} : vector<2x192xf32> to vector<2x64xf32>
    %485 = vector.extract_strided_slice %467 {offsets = [0, 128], sizes = [2, 64], strides = [1, 1]} : vector<2x192xf32> to vector<2x64xf32>
    %486 = arith.mulf %475, %485 : vector<2x64xf32>
    %487 = arith.addf %484, %486 : vector<2x64xf32>
    %488 = math.tanh %487 : vector<2x64xf32>
    %cst_116 = arith.constant 1.000000e+00 : f32
    %489 = vector.broadcast %cst_116 : f32 to vector<2x64xf32>
    %490 = arith.subf %489, %483 : vector<2x64xf32>
    %491 = arith.mulf %490, %488 : vector<2x64xf32>
    %492 = arith.mulf %483, %459 : vector<2x64xf32>
    %493 = arith.addf %491, %492 : vector<2x64xf32>
    %494 = vector.extract_strided_slice %493 {offsets = [0, 0], sizes = [2, 32], strides = [1, 1]} : vector<2x64xf32> to vector<2x32xf32>
    %c8_117 = arith.constant 8 : index
    %c0_118 = arith.constant 0 : index
    %495 = vector.load %arg19[%c8_117, %c0_118] : memref<16x32xf32, #tpu.memory_space<vmem>>, vector<2x32xf32>
    tpu.vector_store %arg19[%c8_117, %c0_118], %494 {strides = array<i32>} : memref<16x32xf32, #tpu.memory_space<vmem>>, vector<2x32xf32>,
    %496 = vector.extract_strided_slice %493 {offsets = [0, 32], sizes = [2, 32], strides = [1, 1]} : vector<2x64xf32> to vector<2x32xf32>
    %c6_119 = arith.constant 6 : index
    %c0_120 = arith.constant 0 : index
    %497 = vector.load %arg20[%c6_119, %c0_120] : memref<16x32xf32, #tpu.memory_space<vmem>>, vector<2x32xf32>
    tpu.vector_store %arg20[%c6_119, %c0_120], %496 {strides = array<i32>} : memref<16x32xf32, #tpu.memory_space<vmem>>, vector<2x32xf32>,
    %498 = vector.extract_strided_slice %326 {offsets = [10, 0], sizes = [2, 192], strides = [1, 1]} : vector<16x192xf32> to vector<2x192xf32>
    %cst_121 = arith.constant dense<0.000000e+00> : vector<2x192xf32>
    %499 = tpu.matmul %493, %301, %cst_121 {dimension_numbers = #tpu.dot_dimension_numbers<[1], [0], [0], [1], [0, 0, 1, 1], [], []>} : vector<2x64xf32>, vector<64x192xf32>, vector<2x192xf32> -> vector<2x192xf32>
    %500 = vector.broadcast %302 : vector<1x192xf32> to vector<2x192xf32>
    %501 = arith.addf %499, %500 : vector<2x192xf32>
    %502 = vector.extract_strided_slice %498 {offsets = [0, 0], sizes = [2, 64], strides = [1, 1]} : vector<2x192xf32> to vector<2x64xf32>
    %503 = vector.extract_strided_slice %501 {offsets = [0, 0], sizes = [2, 64], strides = [1, 1]} : vector<2x192xf32> to vector<2x64xf32>
    %504 = arith.addf %502, %503 : vector<2x64xf32>
    %505 = arith.negf %504 : vector<2x64xf32>
    %506 = math.exp %505 : vector<2x64xf32>
    %cst_122 = arith.constant 1.000000e+00 : f32
    %507 = vector.broadcast %cst_122 : f32 to vector<2x64xf32>
    %508 = arith.addf %507, %506 : vector<2x64xf32>
    %509 = arith.divf %507, %508 : vector<2x64xf32>
    %510 = vector.extract_strided_slice %498 {offsets = [0, 64], sizes = [2, 64], strides = [1, 1]} : vector<2x192xf32> to vector<2x64xf32>
    %511 = vector.extract_strided_slice %501 {offsets = [0, 64], sizes = [2, 64], strides = [1, 1]} : vector<2x192xf32> to vector<2x64xf32>
    %512 = arith.addf %510, %511 : vector<2x64xf32>
    %513 = arith.negf %512 : vector<2x64xf32>
    %514 = math.exp %513 : vector<2x64xf32>
    %cst_123 = arith.constant 1.000000e+00 : f32
    %515 = vector.broadcast %cst_123 : f32 to vector<2x64xf32>
    %516 = arith.addf %515, %514 : vector<2x64xf32>
    %517 = arith.divf %515, %516 : vector<2x64xf32>
    %518 = vector.extract_strided_slice %498 {offsets = [0, 128], sizes = [2, 64], strides = [1, 1]} : vector<2x192xf32> to vector<2x64xf32>
    %519 = vector.extract_strided_slice %501 {offsets = [0, 128], sizes = [2, 64], strides = [1, 1]} : vector<2x192xf32> to vector<2x64xf32>
    %520 = arith.mulf %509, %519 : vector<2x64xf32>
    %521 = arith.addf %518, %520 : vector<2x64xf32>
    %522 = math.tanh %521 : vector<2x64xf32>
    %cst_124 = arith.constant 1.000000e+00 : f32
    %523 = vector.broadcast %cst_124 : f32 to vector<2x64xf32>
    %524 = arith.subf %523, %517 : vector<2x64xf32>
    %525 = arith.mulf %524, %522 : vector<2x64xf32>
    %526 = arith.mulf %517, %493 : vector<2x64xf32>
    %527 = arith.addf %525, %526 : vector<2x64xf32>
    %528 = vector.extract_strided_slice %527 {offsets = [0, 0], sizes = [2, 32], strides = [1, 1]} : vector<2x64xf32> to vector<2x32xf32>
    %c10_125 = arith.constant 10 : index
    %c0_126 = arith.constant 0 : index
    %529 = vector.load %arg19[%c10_125, %c0_126] : memref<16x32xf32, #tpu.memory_space<vmem>>, vector<2x32xf32>
    tpu.vector_store %arg19[%c10_125, %c0_126], %528 {strides = array<i32>} : memref<16x32xf32, #tpu.memory_space<vmem>>, vector<2x32xf32>,
    %530 = vector.extract_strided_slice %527 {offsets = [0, 32], sizes = [2, 32], strides = [1, 1]} : vector<2x64xf32> to vector<2x32xf32>
    %c4_127 = arith.constant 4 : index
    %c0_128 = arith.constant 0 : index
    %531 = vector.load %arg20[%c4_127, %c0_128] : memref<16x32xf32, #tpu.memory_space<vmem>>, vector<2x32xf32>
    tpu.vector_store %arg20[%c4_127, %c0_128], %530 {strides = array<i32>} : memref<16x32xf32, #tpu.memory_space<vmem>>, vector<2x32xf32>,
    %532 = vector.extract_strided_slice %326 {offsets = [12, 0], sizes = [2, 192], strides = [1, 1]} : vector<16x192xf32> to vector<2x192xf32>
    %cst_129 = arith.constant dense<0.000000e+00> : vector<2x192xf32>
    %533 = tpu.matmul %527, %301, %cst_129 {dimension_numbers = #tpu.dot_dimension_numbers<[1], [0], [0], [1], [0, 0, 1, 1], [], []>} : vector<2x64xf32>, vector<64x192xf32>, vector<2x192xf32> -> vector<2x192xf32>
    %534 = vector.broadcast %302 : vector<1x192xf32> to vector<2x192xf32>
    %535 = arith.addf %533, %534 : vector<2x192xf32>
    %536 = vector.extract_strided_slice %532 {offsets = [0, 0], sizes = [2, 64], strides = [1, 1]} : vector<2x192xf32> to vector<2x64xf32>
    %537 = vector.extract_strided_slice %535 {offsets = [0, 0], sizes = [2, 64], strides = [1, 1]} : vector<2x192xf32> to vector<2x64xf32>
    %538 = arith.addf %536, %537 : vector<2x64xf32>
    %539 = arith.negf %538 : vector<2x64xf32>
    %540 = math.exp %539 : vector<2x64xf32>
    %cst_130 = arith.constant 1.000000e+00 : f32
    %541 = vector.broadcast %cst_130 : f32 to vector<2x64xf32>
    %542 = arith.addf %541, %540 : vector<2x64xf32>
    %543 = arith.divf %541, %542 : vector<2x64xf32>
    %544 = vector.extract_strided_slice %532 {offsets = [0, 64], sizes = [2, 64], strides = [1, 1]} : vector<2x192xf32> to vector<2x64xf32>
    %545 = vector.extract_strided_slice %535 {offsets = [0, 64], sizes = [2, 64], strides = [1, 1]} : vector<2x192xf32> to vector<2x64xf32>
    %546 = arith.addf %544, %545 : vector<2x64xf32>
    %547 = arith.negf %546 : vector<2x64xf32>
    %548 = math.exp %547 : vector<2x64xf32>
    %cst_131 = arith.constant 1.000000e+00 : f32
    %549 = vector.broadcast %cst_131 : f32 to vector<2x64xf32>
    %550 = arith.addf %549, %548 : vector<2x64xf32>
    %551 = arith.divf %549, %550 : vector<2x64xf32>
    %552 = vector.extract_strided_slice %532 {offsets = [0, 128], sizes = [2, 64], strides = [1, 1]} : vector<2x192xf32> to vector<2x64xf32>
    %553 = vector.extract_strided_slice %535 {offsets = [0, 128], sizes = [2, 64], strides = [1, 1]} : vector<2x192xf32> to vector<2x64xf32>
    %554 = arith.mulf %543, %553 : vector<2x64xf32>
    %555 = arith.addf %552, %554 : vector<2x64xf32>
    %556 = math.tanh %555 : vector<2x64xf32>
    %cst_132 = arith.constant 1.000000e+00 : f32
    %557 = vector.broadcast %cst_132 : f32 to vector<2x64xf32>
    %558 = arith.subf %557, %551 : vector<2x64xf32>
    %559 = arith.mulf %558, %556 : vector<2x64xf32>
    %560 = arith.mulf %551, %527 : vector<2x64xf32>
    %561 = arith.addf %559, %560 : vector<2x64xf32>
    %562 = vector.extract_strided_slice %561 {offsets = [0, 0], sizes = [2, 32], strides = [1, 1]} : vector<2x64xf32> to vector<2x32xf32>
    %c12_133 = arith.constant 12 : index
    %c0_134 = arith.constant 0 : index
    %563 = vector.load %arg19[%c12_133, %c0_134] : memref<16x32xf32, #tpu.memory_space<vmem>>, vector<2x32xf32>
    tpu.vector_store %arg19[%c12_133, %c0_134], %562 {strides = array<i32>} : memref<16x32xf32, #tpu.memory_space<vmem>>, vector<2x32xf32>,
    %564 = vector.extract_strided_slice %561 {offsets = [0, 32], sizes = [2, 32], strides = [1, 1]} : vector<2x64xf32> to vector<2x32xf32>
    %c2_135 = arith.constant 2 : index
    %c0_136 = arith.constant 0 : index
    %565 = vector.load %arg20[%c2_135, %c0_136] : memref<16x32xf32, #tpu.memory_space<vmem>>, vector<2x32xf32>
    tpu.vector_store %arg20[%c2_135, %c0_136], %564 {strides = array<i32>} : memref<16x32xf32, #tpu.memory_space<vmem>>, vector<2x32xf32>,
    %566 = vector.extract_strided_slice %326 {offsets = [14, 0], sizes = [2, 192], strides = [1, 1]} : vector<16x192xf32> to vector<2x192xf32>
    %cst_137 = arith.constant dense<0.000000e+00> : vector<2x192xf32>
    %567 = tpu.matmul %561, %301, %cst_137 {dimension_numbers = #tpu.dot_dimension_numbers<[1], [0], [0], [1], [0, 0, 1, 1], [], []>} : vector<2x64xf32>, vector<64x192xf32>, vector<2x192xf32> -> vector<2x192xf32>
    %568 = vector.broadcast %302 : vector<1x192xf32> to vector<2x192xf32>
    %569 = arith.addf %567, %568 : vector<2x192xf32>
    %570 = vector.extract_strided_slice %566 {offsets = [0, 0], sizes = [2, 64], strides = [1, 1]} : vector<2x192xf32> to vector<2x64xf32>
    %571 = vector.extract_strided_slice %569 {offsets = [0, 0], sizes = [2, 64], strides = [1, 1]} : vector<2x192xf32> to vector<2x64xf32>
    %572 = arith.addf %570, %571 : vector<2x64xf32>
    %573 = arith.negf %572 : vector<2x64xf32>
    %574 = math.exp %573 : vector<2x64xf32>
    %cst_138 = arith.constant 1.000000e+00 : f32
    %575 = vector.broadcast %cst_138 : f32 to vector<2x64xf32>
    %576 = arith.addf %575, %574 : vector<2x64xf32>
    %577 = arith.divf %575, %576 : vector<2x64xf32>
    %578 = vector.extract_strided_slice %566 {offsets = [0, 64], sizes = [2, 64], strides = [1, 1]} : vector<2x192xf32> to vector<2x64xf32>
    %579 = vector.extract_strided_slice %569 {offsets = [0, 64], sizes = [2, 64], strides = [1, 1]} : vector<2x192xf32> to vector<2x64xf32>
    %580 = arith.addf %578, %579 : vector<2x64xf32>
    %581 = arith.negf %580 : vector<2x64xf32>
    %582 = math.exp %581 : vector<2x64xf32>
    %cst_139 = arith.constant 1.000000e+00 : f32
    %583 = vector.broadcast %cst_139 : f32 to vector<2x64xf32>
    %584 = arith.addf %583, %582 : vector<2x64xf32>
    %585 = arith.divf %583, %584 : vector<2x64xf32>
    %586 = vector.extract_strided_slice %566 {offsets = [0, 128], sizes = [2, 64], strides = [1, 1]} : vector<2x192xf32> to vector<2x64xf32>
    %587 = vector.extract_strided_slice %569 {offsets = [0, 128], sizes = [2, 64], strides = [1, 1]} : vector<2x192xf32> to vector<2x64xf32>
    %588 = arith.mulf %577, %587 : vector<2x64xf32>
    %589 = arith.addf %586, %588 : vector<2x64xf32>
    %590 = math.tanh %589 : vector<2x64xf32>
    %cst_140 = arith.constant 1.000000e+00 : f32
    %591 = vector.broadcast %cst_140 : f32 to vector<2x64xf32>
    %592 = arith.subf %591, %585 : vector<2x64xf32>
    %593 = arith.mulf %592, %590 : vector<2x64xf32>
    %594 = arith.mulf %585, %561 : vector<2x64xf32>
    %595 = arith.addf %593, %594 : vector<2x64xf32>
    %596 = vector.extract_strided_slice %595 {offsets = [0, 0], sizes = [2, 32], strides = [1, 1]} : vector<2x64xf32> to vector<2x32xf32>
    %c14_141 = arith.constant 14 : index
    %c0_142 = arith.constant 0 : index
    %597 = vector.load %arg19[%c14_141, %c0_142] : memref<16x32xf32, #tpu.memory_space<vmem>>, vector<2x32xf32>
    tpu.vector_store %arg19[%c14_141, %c0_142], %596 {strides = array<i32>} : memref<16x32xf32, #tpu.memory_space<vmem>>, vector<2x32xf32>,
    %598 = vector.extract_strided_slice %595 {offsets = [0, 32], sizes = [2, 32], strides = [1, 1]} : vector<2x64xf32> to vector<2x32xf32>
    %c0_143 = arith.constant 0 : index
    %c0_144 = arith.constant 0 : index
    %599 = vector.load %arg20[%c0_143, %c0_144] : memref<16x32xf32, #tpu.memory_space<vmem>>, vector<2x32xf32>
    tpu.vector_store %arg20[%c0_143, %c0_144], %598 {strides = array<i32>} : memref<16x32xf32, #tpu.memory_space<vmem>>, vector<2x32xf32>,
    %c0_145 = arith.constant 0 : index
    %c0_146 = arith.constant 0 : index
    %600 = vector.load %arg9[%c0_145, %c0_146] : memref<32x32xf32, #tpu.memory_space<vmem>>, vector<32x32xf32>
    %c0_147 = arith.constant 0 : index
    %c0_148 = arith.constant 0 : index
    %601 = vector.load %arg10[%c0_147, %c0_148] : memref<1x32xf32, #tpu.memory_space<vmem>>, vector<1x32xf32>
    %c0_149 = arith.constant 0 : index
    %c0_150 = arith.constant 0 : index
    %602 = vector.load %arg11[%c0_149, %c0_150] : memref<32x32xf32, #tpu.memory_space<vmem>>, vector<32x32xf32>
    %c0_151 = arith.constant 0 : index
    %c0_152 = arith.constant 0 : index
    %603 = vector.load %arg12[%c0_151, %c0_152] : memref<1x32xf32, #tpu.memory_space<vmem>>, vector<1x32xf32>
    %c0_153 = arith.constant 0 : index
    %c0_154 = arith.constant 0 : index
    %604 = vector.load %arg13[%c0_153, %c0_154] : memref<64x8xf32, #tpu.memory_space<vmem>>, vector<64x8xf32>
    %c0_155 = arith.constant 0 : index
    %c0_156 = arith.constant 0 : index
    %605 = vector.load %arg14[%c0_155, %c0_156] : memref<1x8xf32, #tpu.memory_space<vmem>>, vector<1x8xf32>
    %c0_157 = arith.constant 0 : index
    %c0_158 = arith.constant 0 : index
    %606 = vector.load %arg19[%c0_157, %c0_158] : memref<16x32xf32, #tpu.memory_space<vmem>>, vector<1x32xf32>
    %c2_159 = arith.constant 2 : index
    %c0_160 = arith.constant 0 : index
    %607 = vector.load %arg19[%c2_159, %c0_160] : memref<16x32xf32, #tpu.memory_space<vmem>>, vector<1x32xf32>
    %c4_161 = arith.constant 4 : index
    %c0_162 = arith.constant 0 : index
    %608 = vector.load %arg19[%c4_161, %c0_162] : memref<16x32xf32, #tpu.memory_space<vmem>>, vector<1x32xf32>
    %c6_163 = arith.constant 6 : index
    %c0_164 = arith.constant 0 : index
    %609 = vector.load %arg19[%c6_163, %c0_164] : memref<16x32xf32, #tpu.memory_space<vmem>>, vector<1x32xf32>
    %c8_165 = arith.constant 8 : index
    %c0_166 = arith.constant 0 : index
    %610 = vector.load %arg19[%c8_165, %c0_166] : memref<16x32xf32, #tpu.memory_space<vmem>>, vector<1x32xf32>
    %c10_167 = arith.constant 10 : index
    %c0_168 = arith.constant 0 : index
    %611 = vector.load %arg19[%c10_167, %c0_168] : memref<16x32xf32, #tpu.memory_space<vmem>>, vector<1x32xf32>
    %c12_169 = arith.constant 12 : index
    %c0_170 = arith.constant 0 : index
    %612 = vector.load %arg19[%c12_169, %c0_170] : memref<16x32xf32, #tpu.memory_space<vmem>>, vector<1x32xf32>
    %c14_171 = arith.constant 14 : index
    %c0_172 = arith.constant 0 : index
    %613 = vector.load %arg19[%c14_171, %c0_172] : memref<16x32xf32, #tpu.memory_space<vmem>>, vector<1x32xf32>
    %614 = tpu.concatenate %606, %607, %608, %609, %610, %611, %612, %613 in 0 : vector<1x32xf32>, vector<1x32xf32>, vector<1x32xf32>, vector<1x32xf32>, vector<1x32xf32>, vector<1x32xf32>, vector<1x32xf32>, vector<1x32xf32> -> vector<8x32xf32>
    %c0_173 = arith.constant 0 : index
    %c0_174 = arith.constant 0 : index
    %615 = vector.load %arg20[%c0_173, %c0_174] : memref<16x32xf32, #tpu.memory_space<vmem>>, vector<1x32xf32>
    %c2_175 = arith.constant 2 : index
    %c0_176 = arith.constant 0 : index
    %616 = vector.load %arg20[%c2_175, %c0_176] : memref<16x32xf32, #tpu.memory_space<vmem>>, vector<1x32xf32>
    %c4_177 = arith.constant 4 : index
    %c0_178 = arith.constant 0 : index
    %617 = vector.load %arg20[%c4_177, %c0_178] : memref<16x32xf32, #tpu.memory_space<vmem>>, vector<1x32xf32>
    %c6_179 = arith.constant 6 : index
    %c0_180 = arith.constant 0 : index
    %618 = vector.load %arg20[%c6_179, %c0_180] : memref<16x32xf32, #tpu.memory_space<vmem>>, vector<1x32xf32>
    %c8_181 = arith.constant 8 : index
    %c0_182 = arith.constant 0 : index
    %619 = vector.load %arg20[%c8_181, %c0_182] : memref<16x32xf32, #tpu.memory_space<vmem>>, vector<1x32xf32>
    %c10_183 = arith.constant 10 : index
    %c0_184 = arith.constant 0 : index
    %620 = vector.load %arg20[%c10_183, %c0_184] : memref<16x32xf32, #tpu.memory_space<vmem>>, vector<1x32xf32>
    %c12_185 = arith.constant 12 : index
    %c0_186 = arith.constant 0 : index
    %621 = vector.load %arg20[%c12_185, %c0_186] : memref<16x32xf32, #tpu.memory_space<vmem>>, vector<1x32xf32>
    %c14_187 = arith.constant 14 : index
    %c0_188 = arith.constant 0 : index
    %622 = vector.load %arg20[%c14_187, %c0_188] : memref<16x32xf32, #tpu.memory_space<vmem>>, vector<1x32xf32>
    %623 = tpu.concatenate %615, %616, %617, %618, %619, %620, %621, %622 in 0 : vector<1x32xf32>, vector<1x32xf32>, vector<1x32xf32>, vector<1x32xf32>, vector<1x32xf32>, vector<1x32xf32>, vector<1x32xf32>, vector<1x32xf32> -> vector<8x32xf32>
    %cst_189 = arith.constant dense<0.000000e+00> : vector<8x32xf32>
    %624 = tpu.matmul %614, %600, %cst_189 {dimension_numbers = #tpu.dot_dimension_numbers<[1], [0], [0], [1], [0, 0, 1, 1], [], []>} : vector<8x32xf32>, vector<32x32xf32>, vector<8x32xf32> -> vector<8x32xf32>
    %625 = vector.broadcast %601 : vector<1x32xf32> to vector<8x32xf32>
    %626 = arith.addf %624, %625 : vector<8x32xf32>
    %cst_190 = arith.constant dense<0.000000e+00> : vector<8x32xf32>
    %627 = tpu.matmul %623, %602, %cst_190 {dimension_numbers = #tpu.dot_dimension_numbers<[1], [0], [0], [1], [0, 0, 1, 1], [], []>} : vector<8x32xf32>, vector<32x32xf32>, vector<8x32xf32> -> vector<8x32xf32>
    %628 = vector.broadcast %603 : vector<1x32xf32> to vector<8x32xf32>
    %629 = arith.addf %627, %628 : vector<8x32xf32>
    %cst_191 = arith.constant dense<0.000000e+00> : vector<8x8xf32>
    %630 = tpu.matmul %626, %626, %cst_191 {dimension_numbers = #tpu.dot_dimension_numbers<[1], [1], [0], [0], [0, 0, 1, 0], [], []>} : vector<8x32xf32>, vector<8x32xf32>, vector<8x8xf32> -> vector<8x8xf32>
    %cst_192 = arith.constant dense<0xFF800000> : vector<8xf32>
    %631 = vector.multi_reduction <maximumf>, %630, %cst_192 [0] : vector<8x8xf32> to vector<8xf32>
    %632 = vector.shape_cast %631 : vector<8xf32> to vector<1x8xf32>
    %633 = vector.broadcast %632 : vector<1x8xf32> to vector<8x8xf32>
    %634 = arith.subf %630, %633 : vector<8x8xf32>
    %635 = math.exp %634 : vector<8x8xf32>
    %cst_193 = arith.constant dense<0.000000e+00> : vector<8xf32>
    %636 = vector.multi_reduction <add>, %635, %cst_193 [0] : vector<8x8xf32> to vector<8xf32>
    %637 = vector.shape_cast %636 : vector<8xf32> to vector<1x8xf32>
    %638 = vector.broadcast %637 : vector<1x8xf32> to vector<8x8xf32>
    %639 = arith.divf %635, %638 : vector<8x8xf32>
    %cst_194 = arith.constant dense<0.000000e+00> : vector<8x8xf32>
    %640 = tpu.matmul %629, %629, %cst_194 {dimension_numbers = #tpu.dot_dimension_numbers<[1], [1], [0], [0], [0, 0, 1, 0], [], []>} : vector<8x32xf32>, vector<8x32xf32>, vector<8x8xf32> -> vector<8x8xf32>
    %cst_195 = arith.constant dense<0xFF800000> : vector<8xf32>
    %641 = vector.multi_reduction <maximumf>, %640, %cst_195 [0] : vector<8x8xf32> to vector<8xf32>
    %642 = vector.shape_cast %641 : vector<8xf32> to vector<1x8xf32>
    %643 = vector.broadcast %642 : vector<1x8xf32> to vector<8x8xf32>
    %644 = arith.subf %640, %643 : vector<8x8xf32>
    %645 = math.exp %644 : vector<8x8xf32>
    %cst_196 = arith.constant dense<0.000000e+00> : vector<8xf32>
    %646 = vector.multi_reduction <add>, %645, %cst_196 [0] : vector<8x8xf32> to vector<8xf32>
    %647 = vector.shape_cast %646 : vector<8xf32> to vector<1x8xf32>
    %648 = vector.broadcast %647 : vector<1x8xf32> to vector<8x8xf32>
    %649 = arith.divf %645, %648 : vector<8x8xf32>
    %cst_197 = arith.constant dense<0.000000e+00> : vector<8x32xf32>
    %650 = tpu.matmul %639, %626, %cst_197 {dimension_numbers = #tpu.dot_dimension_numbers<[1], [0], [0], [1], [0, 0, 1, 1], [], []>} : vector<8x8xf32>, vector<8x32xf32>, vector<8x32xf32> -> vector<8x32xf32>
    %cst_198 = arith.constant dense<0.000000e+00> : vector<8x32xf32>
    %651 = tpu.matmul %649, %629, %cst_198 {dimension_numbers = #tpu.dot_dimension_numbers<[1], [0], [0], [1], [0, 0, 1, 1], [], []>} : vector<8x8xf32>, vector<8x32xf32>, vector<8x32xf32> -> vector<8x32xf32>
    %652 = tpu.concatenate %650, %651 in 1 : vector<8x32xf32>, vector<8x32xf32> -> vector<8x64xf32>
    %c0_199 = arith.constant 0 : index
    %c0_200 = arith.constant 0 : index
    %653 = vector.load %arg15[%c0_199, %c0_200] : memref<16x64xf32, #tpu.memory_space<vmem>>, vector<8x64xf32>
    tpu.vector_store %arg15[%c0_199, %c0_200], %652 {strides = array<i32>} : memref<16x64xf32, #tpu.memory_space<vmem>>, vector<8x64xf32>,
    %cst_201 = arith.constant dense<0.000000e+00> : vector<8x8xf32>
    %654 = tpu.matmul %652, %604, %cst_201 {dimension_numbers = #tpu.dot_dimension_numbers<[1], [0], [0], [1], [0, 0, 1, 1], [], []>} : vector<8x64xf32>, vector<64x8xf32>, vector<8x8xf32> -> vector<8x8xf32>
    %655 = vector.broadcast %605 : vector<1x8xf32> to vector<8x8xf32>
    %656 = arith.addf %654, %655 : vector<8x8xf32>
    %c0_202 = arith.constant 0 : index
    %c0_203 = arith.constant 0 : index
    %657 = vector.load %arg16[%c0_202, %c0_203] : memref<16x8xf32, #tpu.memory_space<vmem>>, vector<8x8xf32>
    tpu.vector_store %arg16[%c0_202, %c0_203], %656 {strides = array<i32>} : memref<16x8xf32, #tpu.memory_space<vmem>>, vector<8x8xf32>,
    %c1 = arith.constant 1 : index
    %c0_204 = arith.constant 0 : index
    %658 = vector.load %arg19[%c1, %c0_204] : memref<16x32xf32, #tpu.memory_space<vmem>>, vector<1x32xf32>
    %c3 = arith.constant 3 : index
    %c0_205 = arith.constant 0 : index
    %659 = vector.load %arg19[%c3, %c0_205] : memref<16x32xf32, #tpu.memory_space<vmem>>, vector<1x32xf32>
    %c5 = arith.constant 5 : index
    %c0_206 = arith.constant 0 : index
    %660 = vector.load %arg19[%c5, %c0_206] : memref<16x32xf32, #tpu.memory_space<vmem>>, vector<1x32xf32>
    %c7 = arith.constant 7 : index
    %c0_207 = arith.constant 0 : index
    %661 = vector.load %arg19[%c7, %c0_207] : memref<16x32xf32, #tpu.memory_space<vmem>>, vector<1x32xf32>
    %c9 = arith.constant 9 : index
    %c0_208 = arith.constant 0 : index
    %662 = vector.load %arg19[%c9, %c0_208] : memref<16x32xf32, #tpu.memory_space<vmem>>, vector<1x32xf32>
    %c11 = arith.constant 11 : index
    %c0_209 = arith.constant 0 : index
    %663 = vector.load %arg19[%c11, %c0_209] : memref<16x32xf32, #tpu.memory_space<vmem>>, vector<1x32xf32>
    %c13 = arith.constant 13 : index
    %c0_210 = arith.constant 0 : index
    %664 = vector.load %arg19[%c13, %c0_210] : memref<16x32xf32, #tpu.memory_space<vmem>>, vector<1x32xf32>
    %c15 = arith.constant 15 : index
    %c0_211 = arith.constant 0 : index
    %665 = vector.load %arg19[%c15, %c0_211] : memref<16x32xf32, #tpu.memory_space<vmem>>, vector<1x32xf32>
    %666 = tpu.concatenate %658, %659, %660, %661, %662, %663, %664, %665 in 0 : vector<1x32xf32>, vector<1x32xf32>, vector<1x32xf32>, vector<1x32xf32>, vector<1x32xf32>, vector<1x32xf32>, vector<1x32xf32>, vector<1x32xf32> -> vector<8x32xf32>
    %c1_212 = arith.constant 1 : index
    %c0_213 = arith.constant 0 : index
    %667 = vector.load %arg20[%c1_212, %c0_213] : memref<16x32xf32, #tpu.memory_space<vmem>>, vector<1x32xf32>
    %c3_214 = arith.constant 3 : index
    %c0_215 = arith.constant 0 : index
    %668 = vector.load %arg20[%c3_214, %c0_215] : memref<16x32xf32, #tpu.memory_space<vmem>>, vector<1x32xf32>
    %c5_216 = arith.constant 5 : index
    %c0_217 = arith.constant 0 : index
    %669 = vector.load %arg20[%c5_216, %c0_217] : memref<16x32xf32, #tpu.memory_space<vmem>>, vector<1x32xf32>
    %c7_218 = arith.constant 7 : index
    %c0_219 = arith.constant 0 : index
    %670 = vector.load %arg20[%c7_218, %c0_219] : memref<16x32xf32, #tpu.memory_space<vmem>>, vector<1x32xf32>
    %c9_220 = arith.constant 9 : index
    %c0_221 = arith.constant 0 : index
    %671 = vector.load %arg20[%c9_220, %c0_221] : memref<16x32xf32, #tpu.memory_space<vmem>>, vector<1x32xf32>
    %c11_222 = arith.constant 11 : index
    %c0_223 = arith.constant 0 : index
    %672 = vector.load %arg20[%c11_222, %c0_223] : memref<16x32xf32, #tpu.memory_space<vmem>>, vector<1x32xf32>
    %c13_224 = arith.constant 13 : index
    %c0_225 = arith.constant 0 : index
    %673 = vector.load %arg20[%c13_224, %c0_225] : memref<16x32xf32, #tpu.memory_space<vmem>>, vector<1x32xf32>
    %c15_226 = arith.constant 15 : index
    %c0_227 = arith.constant 0 : index
    %674 = vector.load %arg20[%c15_226, %c0_227] : memref<16x32xf32, #tpu.memory_space<vmem>>, vector<1x32xf32>
    %675 = tpu.concatenate %667, %668, %669, %670, %671, %672, %673, %674 in 0 : vector<1x32xf32>, vector<1x32xf32>, vector<1x32xf32>, vector<1x32xf32>, vector<1x32xf32>, vector<1x32xf32>, vector<1x32xf32>, vector<1x32xf32> -> vector<8x32xf32>
    %cst_228 = arith.constant dense<0.000000e+00> : vector<8x32xf32>
    %676 = tpu.matmul %666, %600, %cst_228 {dimension_numbers = #tpu.dot_dimension_numbers<[1], [0], [0], [1], [0, 0, 1, 1], [], []>} : vector<8x32xf32>, vector<32x32xf32>, vector<8x32xf32> -> vector<8x32xf32>
    %677 = vector.broadcast %601 : vector<1x32xf32> to vector<8x32xf32>
    %678 = arith.addf %676, %677 : vector<8x32xf32>
    %cst_229 = arith.constant dense<0.000000e+00> : vector<8x32xf32>
    %679 = tpu.matmul %675, %602, %cst_229 {dimension_numbers = #tpu.dot_dimension_numbers<[1], [0], [0], [1], [0, 0, 1, 1], [], []>} : vector<8x32xf32>, vector<32x32xf32>, vector<8x32xf32> -> vector<8x32xf32>
    %680 = vector.broadcast %603 : vector<1x32xf32> to vector<8x32xf32>
    %681 = arith.addf %679, %680 : vector<8x32xf32>
    %cst_230 = arith.constant dense<0.000000e+00> : vector<8x8xf32>
    %682 = tpu.matmul %678, %678, %cst_230 {dimension_numbers = #tpu.dot_dimension_numbers<[1], [1], [0], [0], [0, 0, 1, 0], [], []>} : vector<8x32xf32>, vector<8x32xf32>, vector<8x8xf32> -> vector<8x8xf32>
    %cst_231 = arith.constant dense<0xFF800000> : vector<8xf32>
    %683 = vector.multi_reduction <maximumf>, %682, %cst_231 [0] : vector<8x8xf32> to vector<8xf32>
    %684 = vector.shape_cast %683 : vector<8xf32> to vector<1x8xf32>
    %685 = vector.broadcast %684 : vector<1x8xf32> to vector<8x8xf32>
    %686 = arith.subf %682, %685 : vector<8x8xf32>
    %687 = math.exp %686 : vector<8x8xf32>
    %cst_232 = arith.constant dense<0.000000e+00> : vector<8xf32>
    %688 = vector.multi_reduction <add>, %687, %cst_232 [0] : vector<8x8xf32> to vector<8xf32>
    %689 = vector.shape_cast %688 : vector<8xf32> to vector<1x8xf32>
    %690 = vector.broadcast %689 : vector<1x8xf32> to vector<8x8xf32>
    %691 = arith.divf %687, %690 : vector<8x8xf32>
    %cst_233 = arith.constant dense<0.000000e+00> : vector<8x8xf32>
    %692 = tpu.matmul %681, %681, %cst_233 {dimension_numbers = #tpu.dot_dimension_numbers<[1], [1], [0], [0], [0, 0, 1, 0], [], []>} : vector<8x32xf32>, vector<8x32xf32>, vector<8x8xf32> -> vector<8x8xf32>
    %cst_234 = arith.constant dense<0xFF800000> : vector<8xf32>
    %693 = vector.multi_reduction <maximumf>, %692, %cst_234 [0] : vector<8x8xf32> to vector<8xf32>
    %694 = vector.shape_cast %693 : vector<8xf32> to vector<1x8xf32>
    %695 = vector.broadcast %694 : vector<1x8xf32> to vector<8x8xf32>
    %696 = arith.subf %692, %695 : vector<8x8xf32>
    %697 = math.exp %696 : vector<8x8xf32>
    %cst_235 = arith.constant dense<0.000000e+00> : vector<8xf32>
    %698 = vector.multi_reduction <add>, %697, %cst_235 [0] : vector<8x8xf32> to vector<8xf32>
    %699 = vector.shape_cast %698 : vector<8xf32> to vector<1x8xf32>
    %700 = vector.broadcast %699 : vector<1x8xf32> to vector<8x8xf32>
    %701 = arith.divf %697, %700 : vector<8x8xf32>
    %cst_236 = arith.constant dense<0.000000e+00> : vector<8x32xf32>
    %702 = tpu.matmul %691, %678, %cst_236 {dimension_numbers = #tpu.dot_dimension_numbers<[1], [0], [0], [1], [0, 0, 1, 1], [], []>} : vector<8x8xf32>, vector<8x32xf32>, vector<8x32xf32> -> vector<8x32xf32>
    %cst_237 = arith.constant dense<0.000000e+00> : vector<8x32xf32>
    %703 = tpu.matmul %701, %681, %cst_237 {dimension_numbers = #tpu.dot_dimension_numbers<[1], [0], [0], [1], [0, 0, 1, 1], [], []>} : vector<8x8xf32>, vector<8x32xf32>, vector<8x32xf32> -> vector<8x32xf32>
    %704 = tpu.concatenate %702, %703 in 1 : vector<8x32xf32>, vector<8x32xf32> -> vector<8x64xf32>
    %c8_238 = arith.constant 8 : index
    %c0_239 = arith.constant 0 : index
    %705 = vector.load %arg15[%c8_238, %c0_239] : memref<16x64xf32, #tpu.memory_space<vmem>>, vector<8x64xf32>
    tpu.vector_store %arg15[%c8_238, %c0_239], %704 {strides = array<i32>} : memref<16x64xf32, #tpu.memory_space<vmem>>, vector<8x64xf32>,
    %cst_240 = arith.constant dense<0.000000e+00> : vector<8x8xf32>
    %706 = tpu.matmul %704, %604, %cst_240 {dimension_numbers = #tpu.dot_dimension_numbers<[1], [0], [0], [1], [0, 0, 1, 1], [], []>} : vector<8x64xf32>, vector<64x8xf32>, vector<8x8xf32> -> vector<8x8xf32>
    %707 = vector.broadcast %605 : vector<1x8xf32> to vector<8x8xf32>
    %708 = arith.addf %706, %707 : vector<8x8xf32>
    %c8_241 = arith.constant 8 : index
    %c0_242 = arith.constant 0 : index
    %709 = vector.load %arg16[%c8_241, %c0_242] : memref<16x8xf32, #tpu.memory_space<vmem>>, vector<8x8xf32>
    tpu.vector_store %arg16[%c8_241, %c0_242], %708 {strides = array<i32>} : memref<16x8xf32, #tpu.memory_space<vmem>>, vector<8x8xf32>,
    return
  }
}

</mosaic_0001>

<llo_original>
// kernel: gru_model_forward.1
$region0: #{gru_model_forward.1}
  #allocation0 [shape = 'u32[]', space=smem, size = 0x4, offset = 0x4, fixed_abs, tag = 'smem constant byte address 0x4 - core index']
  #allocation1 [shape = 'u32[144,128]{1,0:T(1,128)}', space=vmem, size = 0x12000, scoped, tag = 'internal scratch']
  #allocation2 [shape = 'f32[16,32]{1,0:T(8,128)}', space=vmem, size = 0x2000, scoped, tag = 'scratch operand']
  #allocation3 [shape = 'f32[16,32]{1,0:T(8,128)}', space=vmem, size = 0x2000, scoped, tag = 'scratch operand']
  #allocation4 [shape = 'f32[16,32]{1,0:T(8,128)}', space=vmem, size = 0x2000, scoped, tag = 'scratch operand']
  #allocation5 [shape = 'f32[16,32]{1,0:T(8,128)}', space=vmem, size = 0x2000, scoped, tag = 'scratch operand']
  %s0 = inlined_call_operand.vmem [shape: f32[16,16], index: 0, kind: input, shape index: {}]
  %s1 = inlined_call_operand.hbm [shape: f32[16,192], index: 1, kind: input, shape index: {}]
  %s2 = inlined_call_operand.hbm [shape: f32[1,192], index: 2, kind: input, shape index: {}]
  %s3 = inlined_call_operand.vmem [shape: f32[64,192], index: 3, kind: input, shape index: {}]
  %s4 = inlined_call_operand.hbm [shape: f32[1,192], index: 4, kind: input, shape index: {}]
  %s5 = inlined_call_operand.hbm [shape: f32[64,192], index: 5, kind: input, shape index: {}]
  %s6 = inlined_call_operand.hbm [shape: f32[1,192], index: 6, kind: input, shape index: {}]
  %s7 = inlined_call_operand.hbm [shape: f32[64,192], index: 7, kind: input, shape index: {}]
  %s8 = inlined_call_operand.hbm [shape: f32[1,192], index: 8, kind: input, shape index: {}]
  %s9 = inlined_call_operand.vmem [shape: f32[32,32], index: 9, kind: input, shape index: {}]
  %s10 = inlined_call_operand.hbm [shape: f32[1,32], index: 10, kind: input, shape index: {}]
  %s11 = inlined_call_operand.hbm [shape: f32[32,32], index: 11, kind: input, shape index: {}]
  %s12 = inlined_call_operand.hbm [shape: f32[1,32], index: 12, kind: input, shape index: {}]
  %s13 = inlined_call_operand.vmem [shape: f32[64,8], index: 13, kind: input, shape index: {}]
  %s14 = inlined_call_operand.hbm [shape: f32[1,8], index: 14, kind: input, shape index: {}]
  %s15 = inlined_call_operand.hbm [shape: f32[16,64], index: 15, kind: output, shape index: {0}]
  %s16 = inlined_call_operand.hbm [shape: f32[16,8], index: 16, kind: output, shape index: {1}]
  %17 = xla_tuple %s15, %s16
  %s18 = sld [smem:[#allocation0]]
  $region122: #{gru_model_forward.1} parent=0
    _
  %s20 = ssub.s32 1, %s18
  %s21 = scalar_select 0, %s20, %s18
  $region1: #{gru_model_forward.1} parent=0
    #allocation6 [shape = 'u8[16384]{0}', space=vmem, size = 0x4000, scoped, tag = 'input window, operand 1, single buffered']
    #allocation7 [shape = 's32[1]{0}', space=sflag, size = 0x4, scoped, tag = 'scoped memory for gru_model_forward.1']
    #allocation8 [shape = 's32[1]{0}', space=sflag, size = 0x4, scoped, tag = 'scoped memory for gru_model_forward.1']
    #allocation9 [shape = 'u8[1024]{0}', space=vmem, size = 0x400, scoped, tag = 'input window, operand 2, single buffered']
    #allocation10 [shape = 's32[1]{0}', space=sflag, size = 0x4, scoped, tag = 'scoped memory for gru_model_forward.1']
    #allocation11 [shape = 'u8[1024]{0}', space=vmem, size = 0x400, scoped, tag = 'input window, operand 4, single buffered']
    #allocation12 [shape = 'u8[65536]{0}', space=vmem, size = 0x10000, scoped, tag = 'input window, operand 5, single buffered']
    #allocation13 [shape = 's32[1]{0}', space=sflag, size = 0x4, scoped, tag = 'scoped memory for gru_model_forward.1']
    #allocation14 [shape = 'u8[1024]{0}', space=vmem, size = 0x400, scoped, tag = 'input window, operand 6, single buffered']
    #allocation15 [shape = 'u8[65536]{0}', space=vmem, size = 0x10000, scoped, tag = 'input window, operand 7, single buffered']
    #allocation16 [shape = 's32[1]{0}', space=sflag, size = 0x4, scoped, tag = 'scoped memory for gru_model_forward.1']
    #allocation17 [shape = 'u8[1024]{0}', space=vmem, size = 0x400, scoped, tag = 'input window, operand 8, single buffered']
    #allocation18 [shape = 'u8[512]{0}', space=vmem, size = 0x400, scoped, tag = 'input window, operand 10, single buffered']
    #allocation19 [shape = 's32[1]{0}', space=sflag, size = 0x4, scoped, tag = 'scoped memory for gru_model_forward.1']
    #allocation20 [shape = 'u8[16384]{0}', space=vmem, size = 0x4000, scoped, tag = 'input window, operand 11, single buffered']
    #allocation21 [shape = 'u8[512]{0}', space=vmem, size = 0x400, scoped, tag = 'input window, operand 12, single buffered']
    #allocation22 [shape = 's32[1]{0}', space=sflag, size = 0x4, scoped, tag = 'scoped memory for gru_model_forward.1']
    #allocation23 [shape = 'u8[512]{0}', space=vmem, size = 0x400, scoped, tag = 'input window, operand 14, single buffered']
    #allocation24 [shape = 'u8[8192]{0}', space=vmem, size = 0x2000, scoped, tag = 'output window, operand 0, single buffered']
    #allocation25 [shape = 'u8[8192]{0}', space=vmem, size = 0x2000, scoped, tag = 'output window, operand 1, single buffered']
    #allocation26 [shape = 's32[1]{0}', space=sflag, size = 0x4, scoped, tag = 'scoped memory for gru_model_forward.1']
    %22 = vsyncpa [#allocation7], 0
    %23 = vsyncpa [#allocation10], 0
    %24 = vsyncpa [#allocation13], 0
    %25 = vsyncpa [#allocation16], 0
    %26 = vsyncpa [#allocation19], 0
    %27 = vsyncpa [#allocation22], 0
    %28 = vsyncpa [#allocation8], 0
    %29 = vsyncpa [#allocation26], 0
    // Predicated region
    $region2: #{gru_model_forward.1} parent=1 // pred_check
      _
    $region3: #{gru_model_forward.1} parent=1 // pred_check_branch
      %31 = sbr.rel (0) target = $region5
    $region4: #{gru_model_forward.1} parent=1 // pred_region
      _
    $region5: #{gru_model_forward.1} parent=1 // pred_fallthru
      _
    // Predicated region
    $region6: #{gru_model_forward.1} parent=1 // pred_check
      _
    $region7: #{gru_model_forward.1} parent=1 // pred_check_branch
      %33 = sbr.rel (0) target = $region9
    $region8: #{gru_model_forward.1} parent=1 // pred_region
      %s35 = ssub.s32 512, 512
      %36 = vsyncadd [#allocation7], %s35
      %s37 = sshll.u32 [#allocation6], 4
      %s38 = int_to_ptr.vmem [resolvable:$true] %s37
      %43 = dma.hbm_to_vmem [thread:$0]  %s1, 512, %s38, [#allocation7], 256, 256, 16
    $region9: #{gru_model_forward.1} parent=1 // pred_fallthru
      _
    // Predicated region
    $region10: #{gru_model_forward.1} parent=1 // pred_check
      _
    $region11: #{gru_model_forward.1} parent=1 // pred_check_branch
      %45 = sbr.rel (0) target = $region13
    $region12: #{gru_model_forward.1} parent=1 // pred_region
      %s47 = ssub.s32 32, 32
      %48 = vsyncadd [#allocation10], %s47
      %s50 = sshll.u32 [#allocation9], 4
      %s51 = int_to_ptr.vmem [resolvable:$true] %s50
      %53 = dma.hbm_to_vmem [thread:$0]  %s2, 32, %s51, [#allocation10]
    $region13: #{gru_model_forward.1} parent=1 // pred_fallthru
      _
    // Predicated region
    $region14: #{gru_model_forward.1} parent=1 // pred_check
      _
    $region15: #{gru_model_forward.1} parent=1 // pred_check_branch
      %55 = sbr.rel (0) target = $region17
    $region16: #{gru_model_forward.1} parent=1 // pred_region
      _
    $region17: #{gru_model_forward.1} parent=1 // pred_fallthru
      _
    // Predicated region
    $region18: #{gru_model_forward.1} parent=1 // pred_check
      _
    $region19: #{gru_model_forward.1} parent=1 // pred_check_branch
      %57 = sbr.rel (0) target = $region21
    $region20: #{gru_model_forward.1} parent=1 // pred_region
      %s59 = ssub.s32 32, 32
      %60 = vsyncadd [#allocation10], %s59
      %s62 = sshll.u32 [#allocation11], 4
      %s63 = int_to_ptr.vmem [resolvable:$true] %s62
      %65 = dma.hbm_to_vmem [thread:$0]  %s4, 32, %s63, [#allocation10]
    $region21: #{gru_model_forward.1} parent=1 // pred_fallthru
      _
    // Predicated region
    $region22: #{gru_model_forward.1} parent=1 // pred_check
      _
    $region23: #{gru_model_forward.1} parent=1 // pred_check_branch
      %67 = sbr.rel (0) target = $region25
    $region24: #{gru_model_forward.1} parent=1 // pred_region
      %s69 = ssub.s32 2048, 2048
      %70 = vsyncadd [#allocation13], %s69
      %s71 = sshll.u32 [#allocation12], 4
      %s72 = int_to_ptr.vmem [resolvable:$true] %s71
      %77 = dma.hbm_to_vmem [thread:$0]  %s5, 2048, %s72, [#allocation13], 256, 256, 16
    $region25: #{gru_model_forward.1} parent=1 // pred_fallthru
      _
    // Predicated region
    $region26: #{gru_model_forward.1} parent=1 // pred_check
      _
    $region27: #{gru_model_forward.1} parent=1 // pred_check_branch
      %79 = sbr.rel (0) target = $region29
    $region28: #{gru_model_forward.1} parent=1 // pred_region
      %s81 = ssub.s32 32, 32
      %82 = vsyncadd [#allocation13], %s81
      %s84 = sshll.u32 [#allocation14], 4
      %s85 = int_to_ptr.vmem [resolvable:$true] %s84
      %87 = dma.hbm_to_vmem [thread:$0]  %s6, 32, %s85, [#allocation13]
    $region29: #{gru_model_forward.1} parent=1 // pred_fallthru
      _
    // Predicated region
    $region30: #{gru_model_forward.1} parent=1 // pred_check
      _
    $region31: #{gru_model_forward.1} parent=1 // pred_check_branch
      %89 = sbr.rel (0) target = $region33
    $region32: #{gru_model_forward.1} parent=1 // pred_region
      %s91 = ssub.s32 2048, 2048
      %92 = vsyncadd [#allocation16], %s91
      %s93 = sshll.u32 [#allocation15], 4
      %s94 = int_to_ptr.vmem [resolvable:$true] %s93
      %99 = dma.hbm_to_vmem [thread:$0]  %s7, 2048, %s94, [#allocation16], 256, 256, 16
    $region33: #{gru_model_forward.1} parent=1 // pred_fallthru
      _
    // Predicated region
    $region34: #{gru_model_forward.1} parent=1 // pred_check
      _
    $region35: #{gru_model_forward.1} parent=1 // pred_check_branch
      %101 = sbr.rel (0) target = $region37
    $region36: #{gru_model_forward.1} parent=1 // pred_region
      %s103 = ssub.s32 32, 32
      %104 = vsyncadd [#allocation16], %s103
      %s106 = sshll.u32 [#allocation17], 4
      %s107 = int_to_ptr.vmem [resolvable:$true] %s106
      %109 = dma.hbm_to_vmem [thread:$0]  %s8, 32, %s107, [#allocation16]
    $region37: #{gru_model_forward.1} parent=1 // pred_fallthru
      _
    // Predicated region
    $region38: #{gru_model_forward.1} parent=1 // pred_check
      _
    $region39: #{gru_model_forward.1} parent=1 // pred_check_branch
      %111 = sbr.rel (0) target = $region41
    $region40: #{gru_model_forward.1} parent=1 // pred_region
      _
    $region41: #{gru_model_forward.1} parent=1 // pred_fallthru
      _
    // Predicated region
    $region42: #{gru_model_forward.1} parent=1 // pred_check
      _
    $region43: #{gru_model_forward.1} parent=1 // pred_check_branch
      %113 = sbr.rel (0) target = $region45
    $region44: #{gru_model_forward.1} parent=1 // pred_region
      %s115 = ssub.s32 16, 16
      %116 = vsyncadd [#allocation19], %s115
      %s118 = sshll.u32 [#allocation18], 4
      %s119 = int_to_ptr.vmem [resolvable:$true] %s118
      %121 = dma.hbm_to_vmem [thread:$0]  %s10, 16, %s119, [#allocation19]
    $region45: #{gru_model_forward.1} parent=1 // pred_fallthru
      _
    // Predicated region
    $region46: #{gru_model_forward.1} parent=1 // pred_check
      _
    $region47: #{gru_model_forward.1} parent=1 // pred_check_branch
      %123 = sbr.rel (0) target = $region49
    $region48: #{gru_model_forward.1} parent=1 // pred_region
      %s125 = ssub.s32 512, 512
      %126 = vsyncadd [#allocation19], %s125
      %s127 = sshll.u32 [#allocation20], 4
      %s128 = int_to_ptr.vmem [resolvable:$true] %s127
      %133 = dma.hbm_to_vmem [thread:$0]  %s11, 512, %s128, [#allocation19], 128, 128, 8
    $region49: #{gru_model_forward.1} parent=1 // pred_fallthru
      _
    // Predicated region
    $region50: #{gru_model_forward.1} parent=1 // pred_check
      _
    $region51: #{gru_model_forward.1} parent=1 // pred_check_branch
      %135 = sbr.rel (0) target = $region53
    $region52: #{gru_model_forward.1} parent=1 // pred_region
      %s137 = ssub.s32 16, 16
      %138 = vsyncadd [#allocation22], %s137
      %s140 = sshll.u32 [#allocation21], 4
      %s141 = int_to_ptr.vmem [resolvable:$true] %s140
      %143 = dma.hbm_to_vmem [thread:$0]  %s12, 16, %s141, [#allocation22]
    $region53: #{gru_model_forward.1} parent=1 // pred_fallthru
      _
    // Predicated region
    $region54: #{gru_model_forward.1} parent=1 // pred_check
      _
    $region55: #{gru_model_forward.1} parent=1 // pred_check_branch
      %145 = sbr.rel (0) target = $region57
    $region56: #{gru_model_forward.1} parent=1 // pred_region
      _
    $region57: #{gru_model_forward.1} parent=1 // pred_fallthru
      _
    // Predicated region
    $region58: #{gru_model_forward.1} parent=1 // pred_check
      _
    $region59: #{gru_model_forward.1} parent=1 // pred_check_branch
      %147 = sbr.rel (0) target = $region61
    $region60: #{gru_model_forward.1} parent=1 // pred_region
      %s149 = ssub.s32 16, 16
      %150 = vsyncadd [#allocation22], %s149
      %s152 = sshll.u32 [#allocation23], 4
      %s153 = int_to_ptr.vmem [resolvable:$true] %s152
      %155 = dma.hbm_to_vmem [thread:$0]  %s14, 16, %s153, [#allocation22]
    $region61: #{gru_model_forward.1} parent=1 // pred_fallthru
      _
    // Predicated region
    $region62: #{gru_model_forward.1} parent=1 // pred_check
      _
    $region63: #{gru_model_forward.1} parent=1 // pred_check_branch
      %157 = sbr.rel (0) target = $region65
    $region64: #{gru_model_forward.1} parent=1 // pred_region
      %158 = dma.done [#allocation7], 512
    $region65: #{gru_model_forward.1} parent=1 // pred_fallthru
      _
    // Predicated region
    $region66: #{gru_model_forward.1} parent=1 // pred_check
      _
    $region67: #{gru_model_forward.1} parent=1 // pred_check_branch
      %160 = sbr.rel (0) target = $region69
    $region68: #{gru_model_forward.1} parent=1 // pred_region
      %161 = dma.done [#allocation10], 32
    $region69: #{gru_model_forward.1} parent=1 // pred_fallthru
      _
    // Predicated region
    $region70: #{gru_model_forward.1} parent=1 // pred_check
      _
    $region71: #{gru_model_forward.1} parent=1 // pred_check_branch
      %163 = sbr.rel (0) target = $region73
    $region72: #{gru_model_forward.1} parent=1 // pred_region
      %164 = dma.done [#allocation10], 32
    $region73: #{gru_model_forward.1} parent=1 // pred_fallthru
      _
    // Predicated region
    $region74: #{gru_model_forward.1} parent=1 // pred_check
      _
    $region75: #{gru_model_forward.1} parent=1 // pred_check_branch
      %166 = sbr.rel (0) target = $region77
    $region76: #{gru_model_forward.1} parent=1 // pred_region
      %167 = dma.done [#allocation13], 2048
    $region77: #{gru_model_forward.1} parent=1 // pred_fallthru
      _
    // Predicated region
    $region78: #{gru_model_forward.1} parent=1 // pred_check
      _
    $region79: #{gru_model_forward.1} parent=1 // pred_check_branch
      %169 = sbr.rel (0) target = $region81
    $region80: #{gru_model_forward.1} parent=1 // pred_region
      %170 = dma.done [#allocation13], 32
    $region81: #{gru_model_forward.1} parent=1 // pred_fallthru
      _
    // Predicated region
    $region82: #{gru_model_forward.1} parent=1 // pred_check
      _
    $region83: #{gru_model_forward.1} parent=1 // pred_check_branch
      %172 = sbr.rel (0) target = $region85
    $region84: #{gru_model_forward.1} parent=1 // pred_region
      %173 = dma.done [#allocation16], 2048
    $region85: #{gru_model_forward.1} parent=1 // pred_fallthru
      _
    // Predicated region
    $region86: #{gru_model_forward.1} parent=1 // pred_check
      _
    $region87: #{gru_model_forward.1} parent=1 // pred_check_branch
      %175 = sbr.rel (0) target = $region89
    $region88: #{gru_model_forward.1} parent=1 // pred_region
      %176 = dma.done [#allocation16], 32
    $region89: #{gru_model_forward.1} parent=1 // pred_fallthru
      _
    // Predicated region
    $region90: #{gru_model_forward.1} parent=1 // pred_check
      _
    $region91: #{gru_model_forward.1} parent=1 // pred_check_branch
      %178 = sbr.rel (0) target = $region93
    $region92: #{gru_model_forward.1} parent=1 // pred_region
      %179 = dma.done [#allocation19], 16
    $region93: #{gru_model_forward.1} parent=1 // pred_fallthru
      _
    // Predicated region
    $region94: #{gru_model_forward.1} parent=1 // pred_check
      _
    $region95: #{gru_model_forward.1} parent=1 // pred_check_branch
      %181 = sbr.rel (0) target = $region97
    $region96: #{gru_model_forward.1} parent=1 // pred_region
      %182 = dma.done [#allocation19], 512
    $region97: #{gru_model_forward.1} parent=1 // pred_fallthru
      _
    // Predicated region
    $region98: #{gru_model_forward.1} parent=1 // pred_check
      _
    $region99: #{gru_model_forward.1} parent=1 // pred_check_branch
      %184 = sbr.rel (0) target = $region101
    $region100: #{gru_model_forward.1} parent=1 // pred_region
      %185 = dma.done [#allocation22], 16
    $region101: #{gru_model_forward.1} parent=1 // pred_fallthru
      _
    // Predicated region
    $region102: #{gru_model_forward.1} parent=1 // pred_check
      _
    $region103: #{gru_model_forward.1} parent=1 // pred_check_branch
      %187 = sbr.rel (0) target = $region105
    $region104: #{gru_model_forward.1} parent=1 // pred_region
      %188 = dma.done [#allocation22], 16
    $region105: #{gru_model_forward.1} parent=1 // pred_fallthru
      _
    %v189 = vld [vmem:[#allocation6] sm:$0xff]
    %v190 = vld [vmem:[#allocation6 + $0x8] sm:$0xff]
    %v191 = vld [vmem:[#allocation6 + $0x10] sm:$0xff]
    %v192 = vld [vmem:[#allocation6 + $0x18] sm:$0xff]
    %v193 = vld [vmem:[#allocation9] sm:$0x3]
    %v194 = vld [vmem:[%s3] sm:$0xff]
    %v195 = vld [vmem:[%s3 + $0x8] sm:$0xff]
    %v196 = vld [vmem:[%s3 + $0x10] sm:$0xff]
    %v197 = vld [vmem:[%s3 + $0x18] sm:$0xff]
    %v198 = vld [vmem:[%s3 + $0x20] sm:$0xff]
    %v199 = vld [vmem:[%s3 + $0x28] sm:$0xff]
    %v200 = vld [vmem:[%s3 + $0x30] sm:$0xff]
    %v201 = vld [vmem:[%s3 + $0x38] sm:$0xff]
    %v202 = vld [vmem:[%s3 + $0x40] sm:$0xff]
    %v203 = vld [vmem:[%s3 + $0x48] sm:$0xff]
    %v204 = vld [vmem:[%s3 + $0x50] sm:$0xff]
    %v205 = vld [vmem:[%s3 + $0x58] sm:$0xff]
    %v206 = vld [vmem:[%s3 + $0x60] sm:$0xff]
    %v207 = vld [vmem:[%s3 + $0x68] sm:$0xff]
    %v208 = vld [vmem:[%s3 + $0x70] sm:$0xff]
    %v209 = vld [vmem:[%s3 + $0x78] sm:$0xff]
    %v210 = vld [vmem:[#allocation11] sm:$0x3]
    %v211 = vld [vmem:[%s0] sm:$0xff]
    %v212 = vld [vmem:[%s0 + $0x8] sm:$0xff]
    %v214 = vlaneseq
    %v215 = vshrl.u32 %v214, 7
    %v216 = vsub.s32 0, %v215
    %v217 = vrot.slane %v193, %v216
    %v218 = vlaneseq
    %v219 = vshrl.u32 %v218, 7
    %v220 = vsub.s32 1, %v219
    %v221 = vrot.slane %v193, %v220
    %vm224 = vcmask 130048
    %v226 = vsel %vm224, %v211, 0
    %v229 = vsel %vm224, %v212, 0
    %231 = vmatprep.subr.mxu0 %v190
    %232 = vmatpush1.msra.mxu0 %v189
    %233 = vmatprep.subr.mxu0 %v192
    %234 = vmatpush1.msra.mxu0 %v191
    %235 = vmatprep.subr.mxu0 0.0
    %236 = vmatpush1.msra.mxu0 0.0
    %237 = vmatprep.subr.mxu0 0.0
    %238 = vmatpush1.msra.mxu0 0.0
    %239 = vmatprep.subr.mxu0 0.0
    %240 = vmatpush1.msra.mxu0 0.0
    %241 = vmatprep.subr.mxu0 0.0
    %242 = vmatpush1.msra.mxu0 0.0
    %243 = vmatprep.subr.mxu0 0.0
    %244 = vmatpush1.msra.mxu0 0.0
    %245 = vmatprep.subr.mxu0 0.0
    %246 = vmatpush1.msra.mxu0 0.0
    %247 = vmatprep.subr.mxu0 0.0
    %248 = vmatpush1.msra.mxu0 0.0
    %249 = vmatprep.subr.mxu0 0.0
    %250 = vmatpush1.msra.mxu0 0.0
    %251 = vmatprep.subr.mxu0 0.0
    %252 = vmatpush1.msra.mxu0 0.0
    %253 = vmatprep.subr.mxu0 0.0
    %254 = vmatpush1.msra.mxu0 0.0
    %255 = vmatprep.subr.mxu0 0.0
    %256 = vmatpush1.msra.mxu0 0.0
    %257 = vmatprep.subr.mxu0 0.0
    %258 = vmatpush1.msra.mxu0 0.0
    %259 = vmatprep.subr.mxu0 0.0
    %260 = vmatpush1.msra.mxu0 0.0
    %261 = vmatprep.subr.mxu0 0.0
    %262 = vmatpush1.msra.mxu0 0.0
    %263 = vmatprep.subr.mxu0 0.0
    %264 = vmatpush1.msra.mxu0 0.0
    %265 = vmatprep.subr.mxu0 0.0
    %266 = vmatpush1.msra.mxu0 0.0
    %267 = vmatprep.subr.mxu0 0.0
    %268 = vmatpush1.msra.mxu0 0.0
    %269 = vmatprep.subr.mxu0 0.0
    %270 = vmatpush1.msra.mxu0 0.0
    %271 = vmatprep.subr.mxu0 0.0
    %272 = vmatpush1.msra.mxu0 0.0
    %273 = vmatprep.subr.mxu0 0.0
    %274 = vmatpush1.msra.mxu0 0.0
    %275 = vmatprep.subr.mxu0 0.0
    %276 = vmatpush1.msra.mxu0 0.0
    %277 = vmatprep.subr.mxu0 0.0
    %278 = vmatpush1.msra.mxu0 0.0
    %279 = vmatprep.subr.mxu0 0.0
    %280 = vmatpush1.msra.mxu0 0.0
    %281 = vmatprep.subr.mxu0 0.0
    %282 = vmatpush1.msra.mxu0 0.0
    %283 = vmatprep.subr.mxu0 0.0
    %284 = vmatpush1.msra.mxu0 0.0
    %285 = vmatprep.subr.mxu0 0.0
    %286 = vmatpush1.msra.mxu0 0.0
    %287 = vmatprep.subr.mxu0 0.0
    %288 = vmatpush1.msra.mxu0 0.0
    %289 = vmatprep.subr.mxu0 0.0
    %290 = vmatpush1.msra.mxu0 0.0
    %291 = vmatprep.subr.mxu0 0.0
    %292 = vmatpush1.msra.mxu0 0.0
    %293 = vmatprep.subr.mxu0 0.0
    %294 = vmatpush1.msra.mxu0 0.0
    %295 = vmatprep.mubr.f32.mxu0 0.0
    %296 = vmatmul.mubr.f32.gmra.mrb[0].mxu0 %v226
    %v297 = vpop.f32.mrb[0].mxu0
    %v298 = vadd.f32 %v217, %v297
    %v299 = vpop.f32.mrb[0].mxu0
    %v300 = vadd.f32 %v221, %v299
    %301 = vmatprep.mubr.f32.mxu0 0.0
    %302 = vmatmul.mubr.f32.gmra.mrb[0].mxu0 %v229
    %v303 = vpop.f32.mrb[0].mxu0
    %v304 = vadd.f32 %v217, %v303
    %v305 = vpop.f32.mrb[0].mxu0
    %v306 = vadd.f32 %v221, %v305
    %307 = vdwg.mxu0
    %v310 = vrot.slane %v304, 6
    %v311 = vrot.slane %v306, 6
    %v314 = vrot.slane %v304, 2
    %v315 = vrot.slane %v306, 2
    %v320 = vrot.slane %v298, 6
    %v321 = vrot.slane %v300, 6
    %v324 = vrot.slane %v298, 2
    %v325 = vrot.slane %v300, 2
    %vm328 = vcmask 1041408
    %v329 = vsel %vm328, %v310, %v314
    %v330 = vsel %vm328, %v311, %v315
    %vm331 = vcmask 1043456
    %v332 = vsel %vm331, %v329, %v310
    %v333 = vsel %vm331, %v330, %v311
    %vm334 = vcmask 1045504
    %v335 = vsel %vm334, %v332, %v314
    %v336 = vsel %vm334, %v333, %v315
    %v337 = vsel %vm328, %v320, %v324
    %v338 = vsel %vm328, %v321, %v325
    %v339 = vsel %vm331, %v337, %v320
    %v340 = vsel %vm331, %v338, %v321
    %v341 = vsel %vm334, %v339, %v324
    %v342 = vsel %vm334, %v340, %v325
    %345 = vrot.lane.b32.xlu0 %v335, 64
    %v346 = vpop.permute.xlu0 %345
    %347 = vrot.lane.b32.xlu0 %v341, 64
    %v348 = vpop.permute.xlu0 %347
    %351 = vrot.lane.b32.xlu0 %v298, 32
    %v352 = vpop.permute.xlu0 %351
    %353 = vrot.lane.b32.xlu0 %v304, 32
    %v354 = vpop.permute.xlu0 %353
    %359 = vrot.lane.b32.xlu0 %v336, 96
    %v360 = vpop.permute.xlu0 %359
    %361 = vrot.lane.b32.xlu0 %v342, 96
    %v362 = vpop.permute.xlu0 %361
    %365 = vrot.lane.b32.xlu0 %v298, 64
    %v366 = vpop.permute.xlu0 %365
    %367 = vrot.lane.b32.xlu0 %v304, 64
    %v368 = vpop.permute.xlu0 %367
    %vm371 = vcmask 261120
    %v372 = vsel %vm371, %v298, %v346
    %v373 = vsel %vm371, %v304, %v348
    %vm374 = vcmask 523264
    %v375 = vsel %vm374, %v372, %v352
    %v376 = vsel %vm374, %v373, %v354
    %vm377 = vcmask 785408
    %v378 = vsel %vm377, %v375, %v360
    %v379 = vsel %vm377, %v376, %v362
    %v380 = vsel %vm371, %v366, %v336
    %v381 = vsel %vm371, %v368, %v342
    %v383 = vlaneseq
    %v384 = vshrl.u32 %v383, 7
    %v385 = vsub.s32 0, %v384
    %v386 = vrot.slane %v210, %v385
    %v387 = vlaneseq
    %v388 = vshrl.u32 %v387, 7
    %v389 = vsub.s32 1, %v388
    %v390 = vrot.slane %v210, %v389
    %v394 = vsel %vm374, 0.0, 0
    %396 = vmatprep.subr.mxu0 %v195
    %397 = vmatpush1.msra.mxu0 %v194
    %398 = vmatprep.subr.mxu0 %v197
    %399 = vmatpush1.msra.mxu0 %v196
    %400 = vmatprep.subr.mxu0 %v199
    %401 = vmatpush1.msra.mxu0 %v198
    %402 = vmatprep.subr.mxu0 %v201
    %403 = vmatpush1.msra.mxu0 %v200
    %404 = vmatprep.subr.mxu0 %v203
    %405 = vmatpush1.msra.mxu0 %v202
    %406 = vmatprep.subr.mxu0 %v205
    %407 = vmatpush1.msra.mxu0 %v204
    %408 = vmatprep.subr.mxu0 %v207
    %409 = vmatpush1.msra.mxu0 %v206
    %410 = vmatprep.subr.mxu0 %v209
    %411 = vmatpush1.msra.mxu0 %v208
    %412 = vmatprep.subr.mxu0 0.0
    %413 = vmatpush1.msra.mxu0 0.0
    %414 = vmatprep.subr.mxu0 0.0
    %415 = vmatpush1.msra.mxu0 0.0
    %416 = vmatprep.subr.mxu0 0.0
    %417 = vmatpush1.msra.mxu0 0.0
    %418 = vmatprep.subr.mxu0 0.0
    %419 = vmatpush1.msra.mxu0 0.0
    %420 = vmatprep.subr.mxu0 0.0
    %421 = vmatpush1.msra.mxu0 0.0
    %422 = vmatprep.subr.mxu0 0.0
    %423 = vmatpush1.msra.mxu0 0.0
    %424 = vmatprep.subr.mxu0 0.0
    %425 = vmatpush1.msra.mxu0 0.0
    %426 = vmatprep.subr.mxu0 0.0
    %427 = vmatpush1.msra.mxu0 0.0
    %428 = vmatprep.subr.mxu0 0.0
    %429 = vmatpush1.msra.mxu0 0.0
    %430 = vmatprep.subr.mxu0 0.0
    %431 = vmatpush1.msra.mxu0 0.0
    %432 = vmatprep.subr.mxu0 0.0
    %433 = vmatpush1.msra.mxu0 0.0
    %434 = vmatprep.subr.mxu0 0.0
    %435 = vmatpush1.msra.mxu0 0.0
    %436 = vmatprep.subr.mxu0 0.0
    %437 = vmatpush1.msra.mxu0 0.0
    %438 = vmatprep.subr.mxu0 0.0
    %439 = vmatpush1.msra.mxu0 0.0
    %440 = vmatprep.subr.mxu0 0.0
    %441 = vmatpush1.msra.mxu0 0.0
    %442 = vmatprep.subr.mxu0 0.0
    %443 = vmatpush1.msra.mxu0 0.0
    %444 = vmatprep.subr.mxu0 0.0
    %445 = vmatpush1.msra.mxu0 0.0
    %446 = vmatprep.subr.mxu0 0.0
    %447 = vmatpush1.msra.mxu0 0.0
    %448 = vmatprep.subr.mxu0 0.0
    %449 = vmatpush1.msra.mxu0 0.0
    %450 = vmatprep.subr.mxu0 0.0
    %451 = vmatpush1.msra.mxu0 0.0
    %452 = vmatprep.subr.mxu0 0.0
    %453 = vmatpush1.msra.mxu0 0.0
    %454 = vmatprep.subr.mxu0 0.0
    %455 = vmatpush1.msra.mxu0 0.0
    %456 = vmatprep.subr.mxu0 0.0
    %457 = vmatpush1.msra.mxu0 0.0
    %458 = vmatprep.subr.mxu0 0.0
    %459 = vmatpush1.msra.mxu0 0.0
    %460 = vmatprep.mubr.f32.mxu0 0.0
    %461 = vmatmul.mubr.f32.gmra.mrb[0].mxu0 %v394
    %v462 = vpop.f32.mrb[0].mxu0
    %v463 = vadd.f32 %v386, %v462
    %v464 = vpop.f32.mrb[0].mxu0
    %v465 = vadd.f32 %v390, %v464
    %466 = vdwg.mxu0
    %v467 = vadd.f32 %v378, %v463
    %v468 = vxor.u32 %v467, 2147483648
    %v469 = vmul.f32 %v468, 1.442695
    %v470 = vpow.pop %v469
    %v471 = vadd.f32 %v470, 1.0
    %v472 = vrcp.pop %v471
    %v473 = vmul.f32 1.0, %v472
    %v474 = vmul.f32 %v473, %v465
    %v475 = vadd.f32 %v380, %v474
    %v476 = vtanh.pop %v475
    %v477 = vsub.f32 1.0, %v473
    %479 = vrot.lane.b32.xlu0 %v476, 64
    %v480 = vpop.permute.xlu0 %479
    %v482 = vmul.f32 %v477, %v480
    %v483 = vmul.f32 %v473, 0.0
    %v484 = vadd.f32 %v482, %v483
    %486 = vrot.lane.b32.xlu0 %v484, 64
    %v487 = vpop.permute.xlu0 %486
    %vm489 = vcmask 254976
    %490 = vst.msk [vmem:[#allocation2] sm:$0x3] %vm489, %v487
    %491 = vrot.lane.b32.xlu0 %v484, 32
    %v492 = vpop.permute.xlu0 %491
    %494 = vst.msk [vmem:[#allocation3 + $0xe] sm:$0x3] %vm489, %v492
    %v495 = vsel %vm374, %v487, 0
    %497 = vmatprep.subr.mxu0 %v195
    %498 = vmatpush1.msra.mxu0 %v194
    %499 = vmatprep.subr.mxu0 %v197
    %500 = vmatpush1.msra.mxu0 %v196
    %501 = vmatprep.subr.mxu0 %v199
    %502 = vmatpush1.msra.mxu0 %v198
    %503 = vmatprep.subr.mxu0 %v201
    %504 = vmatpush1.msra.mxu0 %v200
    %505 = vmatprep.subr.mxu0 %v203
    %506 = vmatpush1.msra.mxu0 %v202
    %507 = vmatprep.subr.mxu0 %v205
    %508 = vmatpush1.msra.mxu0 %v204
    %509 = vmatprep.subr.mxu0 %v207
    %510 = vmatpush1.msra.mxu0 %v206
    %511 = vmatprep.subr.mxu0 %v209
    %512 = vmatpush1.msra.mxu0 %v208
    %513 = vmatprep.subr.mxu0 0.0
    %514 = vmatpush1.msra.mxu0 0.0
    %515 = vmatprep.subr.mxu0 0.0
    %516 = vmatpush1.msra.mxu0 0.0
    %517 = vmatprep.subr.mxu0 0.0
    %518 = vmatpush1.msra.mxu0 0.0
    %519 = vmatprep.subr.mxu0 0.0
    %520 = vmatpush1.msra.mxu0 0.0
    %521 = vmatprep.subr.mxu0 0.0
    %522 = vmatpush1.msra.mxu0 0.0
    %523 = vmatprep.subr.mxu0 0.0
    %524 = vmatpush1.msra.mxu0 0.0
    %525 = vmatprep.subr.mxu0 0.0
    %526 = vmatpush1.msra.mxu0 0.0
    %527 = vmatprep.subr.mxu0 0.0
    %528 = vmatpush1.msra.mxu0 0.0
    %529 = vmatprep.subr.mxu0 0.0
    %530 = vmatpush1.msra.mxu0 0.0
    %531 = vmatprep.subr.mxu0 0.0
    %532 = vmatpush1.msra.mxu0 0.0
    %533 = vmatprep.subr.mxu0 0.0
    %534 = vmatpush1.msra.mxu0 0.0
    %535 = vmatprep.subr.mxu0 0.0
    %536 = vmatpush1.msra.mxu0 0.0
    %537 = vmatprep.subr.mxu0 0.0
    %538 = vmatpush1.msra.mxu0 0.0
    %539 = vmatprep.subr.mxu0 0.0
    %540 = vmatpush1.msra.mxu0 0.0
    %541 = vmatprep.subr.mxu0 0.0
    %542 = vmatpush1.msra.mxu0 0.0
    %543 = vmatprep.subr.mxu0 0.0
    %544 = vmatpush1.msra.mxu0 0.0
    %545 = vmatprep.subr.mxu0 0.0
    %546 = vmatpush1.msra.mxu0 0.0
    %547 = vmatprep.subr.mxu0 0.0
    %548 = vmatpush1.msra.mxu0 0.0
    %549 = vmatprep.subr.mxu0 0.0
    %550 = vmatpush1.msra.mxu0 0.0
    %551 = vmatprep.subr.mxu0 0.0
    %552 = vmatpush1.msra.mxu0 0.0
    %553 = vmatprep.subr.mxu0 0.0
    %554 = vmatpush1.msra.mxu0 0.0
    %555 = vmatprep.subr.mxu0 0.0
    %556 = vmatpush1.msra.mxu0 0.0
    %557 = vmatprep.subr.mxu0 0.0
    %558 = vmatpush1.msra.mxu0 0.0
    %559 = vmatprep.subr.mxu0 0.0
    %560 = vmatpush1.msra.mxu0 0.0
    %561 = vmatprep.mubr.f32.mxu0 0.0
    %562 = vmatmul.mubr.f32.gmra.mrb[0].mxu0 %v495
    %v563 = vpop.f32.mrb[0].mxu0
    %v564 = vadd.f32 %v386, %v563
    %v565 = vpop.f32.mrb[0].mxu0
    %v566 = vadd.f32 %v390, %v565
    %567 = vdwg.mxu0
    %v569 = vrot.slane %v564, 6
    %v571 = vadd.f32 %v378, %v569
    %v572 = vxor.u32 %v571, 2147483648
    %v573 = vmul.f32 %v572, 1.442695
    %v574 = vpow.pop %v573
    %v575 = vadd.f32 %v574, 1.0
    %v576 = vrcp.pop %v575
    %v577 = vmul.f32 1.0, %v576
    %v579 = vrot.slane %v566, 6
    %v581 = vmul.f32 %v577, %v579
    %v582 = vadd.f32 %v380, %v581
    %v583 = vtanh.pop %v582
    %v584 = vsub.f32 1.0, %v577
    %586 = vrot.lane.b32.xlu0 %v583, 64
    %v587 = vpop.permute.xlu0 %586
    %v589 = vmul.f32 %v584, %v587
    %v590 = vrot.slane %v484, 6
    %v592 = vmul.f32 %v577, %v590
    %v593 = vadd.f32 %v589, %v592
    %595 = vrot.lane.b32.xlu0 %v593, 64
    %v596 = vpop.permute.xlu0 %595
    %vm598 = vcmask 257026
    %599 = vst.msk [vmem:[#allocation2] sm:$0xc] %vm598, %v596
    %600 = vrot.lane.b32.xlu0 %v593, 32
    %v601 = vpop.permute.xlu0 %600
    %603 = vst.msk [vmem:[#allocation3 + $0xa] sm:$0xc] %vm598, %v601
    %v604 = vrot.slane %v593, 2
    %605 = vrot.lane.b32.xlu0 %v604, 64
    %v606 = vpop.permute.xlu0 %605
    %v607 = vsel %vm374, %v606, 0
    %609 = vmatprep.subr.mxu0 %v195
    %610 = vmatpush1.msra.mxu0 %v194
    %611 = vmatprep.subr.mxu0 %v197
    %612 = vmatpush1.msra.mxu0 %v196
    %613 = vmatprep.subr.mxu0 %v199
    %614 = vmatpush1.msra.mxu0 %v198
    %615 = vmatprep.subr.mxu0 %v201
    %616 = vmatpush1.msra.mxu0 %v200
    %617 = vmatprep.subr.mxu0 %v203
    %618 = vmatpush1.msra.mxu0 %v202
    %619 = vmatprep.subr.mxu0 %v205
    %620 = vmatpush1.msra.mxu0 %v204
    %621 = vmatprep.subr.mxu0 %v207
    %622 = vmatpush1.msra.mxu0 %v206
    %623 = vmatprep.subr.mxu0 %v209
    %624 = vmatpush1.msra.mxu0 %v208
    %625 = vmatprep.subr.mxu0 0.0
    %626 = vmatpush1.msra.mxu0 0.0
    %627 = vmatprep.subr.mxu0 0.0
    %628 = vmatpush1.msra.mxu0 0.0
    %629 = vmatprep.subr.mxu0 0.0
    %630 = vmatpush1.msra.mxu0 0.0
    %631 = vmatprep.subr.mxu0 0.0
    %632 = vmatpush1.msra.mxu0 0.0
    %633 = vmatprep.subr.mxu0 0.0
    %634 = vmatpush1.msra.mxu0 0.0
    %635 = vmatprep.subr.mxu0 0.0
    %636 = vmatpush1.msra.mxu0 0.0
    %637 = vmatprep.subr.mxu0 0.0
    %638 = vmatpush1.msra.mxu0 0.0
    %639 = vmatprep.subr.mxu0 0.0
    %640 = vmatpush1.msra.mxu0 0.0
    %641 = vmatprep.subr.mxu0 0.0
    %642 = vmatpush1.msra.mxu0 0.0
    %643 = vmatprep.subr.mxu0 0.0
    %644 = vmatpush1.msra.mxu0 0.0
    %645 = vmatprep.subr.mxu0 0.0
    %646 = vmatpush1.msra.mxu0 0.0
    %647 = vmatprep.subr.mxu0 0.0
    %648 = vmatpush1.msra.mxu0 0.0
    %649 = vmatprep.subr.mxu0 0.0
    %650 = vmatpush1.msra.mxu0 0.0
    %651 = vmatprep.subr.mxu0 0.0
    %652 = vmatpush1.msra.mxu0 0.0
    %653 = vmatprep.subr.mxu0 0.0
    %654 = vmatpush1.msra.mxu0 0.0
    %655 = vmatprep.subr.mxu0 0.0
    %656 = vmatpush1.msra.mxu0 0.0
    %657 = vmatprep.subr.mxu0 0.0
    %658 = vmatpush1.msra.mxu0 0.0
    %659 = vmatprep.subr.mxu0 0.0
    %660 = vmatpush1.msra.mxu0 0.0
    %661 = vmatprep.subr.mxu0 0.0
    %662 = vmatpush1.msra.mxu0 0.0
    %663 = vmatprep.subr.mxu0 0.0
    %664 = vmatpush1.msra.mxu0 0.0
    %665 = vmatprep.subr.mxu0 0.0
    %666 = vmatpush1.msra.mxu0 0.0
    %667 = vmatprep.subr.mxu0 0.0
    %668 = vmatpush1.msra.mxu0 0.0
    %669 = vmatprep.subr.mxu0 0.0
    %670 = vmatpush1.msra.mxu0 0.0
    %671 = vmatprep.subr.mxu0 0.0
    %672 = vmatpush1.msra.mxu0 0.0
    %673 = vmatprep.mubr.f32.mxu0 0.0
    %674 = vmatmul.mubr.f32.gmra.mrb[0].mxu0 %v607
    %v675 = vpop.f32.mrb[0].mxu0
    %v676 = vadd.f32 %v386, %v675
    %v677 = vpop.f32.mrb[0].mxu0
    %v678 = vadd.f32 %v390, %v677
    %679 = vdwg.mxu0
    %v681 = vrot.slane %v676, 4
    %v683 = vadd.f32 %v378, %v681
    %v684 = vxor.u32 %v683, 2147483648
    %v685 = vmul.f32 %v684, 1.442695
    %v686 = vpow.pop %v685
    %v687 = vadd.f32 %v686, 1.0
    %v688 = vrcp.pop %v687
    %v689 = vmul.f32 1.0, %v688
    %v691 = vrot.slane %v678, 4
    %v693 = vmul.f32 %v689, %v691
    %v694 = vadd.f32 %v380, %v693
    %v695 = vtanh.pop %v694
    %v696 = vsub.f32 1.0, %v689
    %698 = vrot.lane.b32.xlu0 %v695, 64
    %v699 = vpop.permute.xlu0 %698
    %v701 = vmul.f32 %v696, %v699
    %v702 = vrot.slane %v593, 6
    %v704 = vmul.f32 %v689, %v702
    %v705 = vadd.f32 %v701, %v704
    %707 = vrot.lane.b32.xlu0 %v705, 64
    %v708 = vpop.permute.xlu0 %707
    %vm710 = vcmask 259076
    %711 = vst.msk [vmem:[#allocation2] sm:$0x30] %vm710, %v708
    %712 = vrot.lane.b32.xlu0 %v705, 32
    %v713 = vpop.permute.xlu0 %712
    %715 = vst.msk [vmem:[#allocation3 + $0x6] sm:$0x30] %vm710, %v713
    %v716 = vrot.slane %v705, 4
    %717 = vrot.lane.b32.xlu0 %v716, 64
    %v718 = vpop.permute.xlu0 %717
    %v719 = vsel %vm374, %v718, 0
    %721 = vmatprep.subr.mxu0 %v195
    %722 = vmatpush1.msra.mxu0 %v194
    %723 = vmatprep.subr.mxu0 %v197
    %724 = vmatpush1.msra.mxu0 %v196
    %725 = vmatprep.subr.mxu0 %v199
    %726 = vmatpush1.msra.mxu0 %v198
    %727 = vmatprep.subr.mxu0 %v201
    %728 = vmatpush1.msra.mxu0 %v200
    %729 = vmatprep.subr.mxu0 %v203
    %730 = vmatpush1.msra.mxu0 %v202
    %731 = vmatprep.subr.mxu0 %v205
    %732 = vmatpush1.msra.mxu0 %v204
    %733 = vmatprep.subr.mxu0 %v207
    %734 = vmatpush1.msra.mxu0 %v206
    %735 = vmatprep.subr.mxu0 %v209
    %736 = vmatpush1.msra.mxu0 %v208
    %737 = vmatprep.subr.mxu0 0.0
    %738 = vmatpush1.msra.mxu0 0.0
    %739 = vmatprep.subr.mxu0 0.0
    %740 = vmatpush1.msra.mxu0 0.0
    %741 = vmatprep.subr.mxu0 0.0
    %742 = vmatpush1.msra.mxu0 0.0
    %743 = vmatprep.subr.mxu0 0.0
    %744 = vmatpush1.msra.mxu0 0.0
    %745 = vmatprep.subr.mxu0 0.0
    %746 = vmatpush1.msra.mxu0 0.0
    %747 = vmatprep.subr.mxu0 0.0
    %748 = vmatpush1.msra.mxu0 0.0
    %749 = vmatprep.subr.mxu0 0.0
    %750 = vmatpush1.msra.mxu0 0.0
    %751 = vmatprep.subr.mxu0 0.0
    %752 = vmatpush1.msra.mxu0 0.0
    %753 = vmatprep.subr.mxu0 0.0
    %754 = vmatpush1.msra.mxu0 0.0
    %755 = vmatprep.subr.mxu0 0.0
    %756 = vmatpush1.msra.mxu0 0.0
    %757 = vmatprep.subr.mxu0 0.0
    %758 = vmatpush1.msra.mxu0 0.0
    %759 = vmatprep.subr.mxu0 0.0
    %760 = vmatpush1.msra.mxu0 0.0
    %761 = vmatprep.subr.mxu0 0.0
    %762 = vmatpush1.msra.mxu0 0.0
    %763 = vmatprep.subr.mxu0 0.0
    %764 = vmatpush1.msra.mxu0 0.0
    %765 = vmatprep.subr.mxu0 0.0
    %766 = vmatpush1.msra.mxu0 0.0
    %767 = vmatprep.subr.mxu0 0.0
    %768 = vmatpush1.msra.mxu0 0.0
    %769 = vmatprep.subr.mxu0 0.0
    %770 = vmatpush1.msra.mxu0 0.0
    %771 = vmatprep.subr.mxu0 0.0
    %772 = vmatpush1.msra.mxu0 0.0
    %773 = vmatprep.subr.mxu0 0.0
    %774 = vmatpush1.msra.mxu0 0.0
    %775 = vmatprep.subr.mxu0 0.0
    %776 = vmatpush1.msra.mxu0 0.0
    %777 = vmatprep.subr.mxu0 0.0
    %778 = vmatpush1.msra.mxu0 0.0
    %779 = vmatprep.subr.mxu0 0.0
    %780 = vmatpush1.msra.mxu0 0.0
    %781 = vmatprep.subr.mxu0 0.0
    %782 = vmatpush1.msra.mxu0 0.0
    %783 = vmatprep.subr.mxu0 0.0
    %784 = vmatpush1.msra.mxu0 0.0
    %785 = vmatprep.mubr.f32.mxu0 0.0
    %786 = vmatmul.mubr.f32.gmra.mrb[0].mxu0 %v719
    %v787 = vpop.f32.mrb[0].mxu0
    %v788 = vadd.f32 %v386, %v787
    %v789 = vpop.f32.mrb[0].mxu0
    %v790 = vadd.f32 %v390, %v789
    %791 = vdwg.mxu0
    %v793 = vrot.slane %v788, 2
    %v795 = vadd.f32 %v378, %v793
    %v796 = vxor.u32 %v795, 2147483648
    %v797 = vmul.f32 %v796, 1.442695
    %v798 = vpow.pop %v797
    %v799 = vadd.f32 %v798, 1.0
    %v800 = vrcp.pop %v799
    %v801 = vmul.f32 1.0, %v800
    %v803 = vrot.slane %v790, 2
    %v805 = vmul.f32 %v801, %v803
    %v806 = vadd.f32 %v380, %v805
    %v807 = vtanh.pop %v806
    %v808 = vsub.f32 1.0, %v801
    %810 = vrot.lane.b32.xlu0 %v807, 64
    %v811 = vpop.permute.xlu0 %810
    %v813 = vmul.f32 %v808, %v811
    %v814 = vrot.slane %v705, 6
    %v816 = vmul.f32 %v801, %v814
    %v817 = vadd.f32 %v813, %v816
    %819 = vrot.lane.b32.xlu0 %v817, 64
    %v820 = vpop.permute.xlu0 %819
    %vm822 = vcmask 261126
    %823 = vst.msk [vmem:[#allocation2] sm:$0xc0] %vm822, %v820
    %824 = vrot.lane.b32.xlu0 %v817, 32
    %v825 = vpop.permute.xlu0 %824
    %827 = vst.msk [vmem:[#allocation3 + $0x2] sm:$0xc0] %vm822, %v825
    %v828 = vrot.slane %v817, 6
    %829 = vrot.lane.b32.xlu0 %v828, 64
    %v830 = vpop.permute.xlu0 %829
    %v831 = vsel %vm374, %v830, 0
    %833 = vmatprep.subr.mxu0 %v195
    %834 = vmatpush1.msra.mxu0 %v194
    %835 = vmatprep.subr.mxu0 %v197
    %836 = vmatpush1.msra.mxu0 %v196
    %837 = vmatprep.subr.mxu0 %v199
    %838 = vmatpush1.msra.mxu0 %v198
    %839 = vmatprep.subr.mxu0 %v201
    %840 = vmatpush1.msra.mxu0 %v200
    %841 = vmatprep.subr.mxu0 %v203
    %842 = vmatpush1.msra.mxu0 %v202
    %843 = vmatprep.subr.mxu0 %v205
    %844 = vmatpush1.msra.mxu0 %v204
    %845 = vmatprep.subr.mxu0 %v207
    %846 = vmatpush1.msra.mxu0 %v206
    %847 = vmatprep.subr.mxu0 %v209
    %848 = vmatpush1.msra.mxu0 %v208
    %849 = vmatprep.subr.mxu0 0.0
    %850 = vmatpush1.msra.mxu0 0.0
    %851 = vmatprep.subr.mxu0 0.0
    %852 = vmatpush1.msra.mxu0 0.0
    %853 = vmatprep.subr.mxu0 0.0
    %854 = vmatpush1.msra.mxu0 0.0
    %855 = vmatprep.subr.mxu0 0.0
    %856 = vmatpush1.msra.mxu0 0.0
    %857 = vmatprep.subr.mxu0 0.0
    %858 = vmatpush1.msra.mxu0 0.0
    %859 = vmatprep.subr.mxu0 0.0
    %860 = vmatpush1.msra.mxu0 0.0
    %861 = vmatprep.subr.mxu0 0.0
    %862 = vmatpush1.msra.mxu0 0.0
    %863 = vmatprep.subr.mxu0 0.0
    %864 = vmatpush1.msra.mxu0 0.0
    %865 = vmatprep.subr.mxu0 0.0
    %866 = vmatpush1.msra.mxu0 0.0
    %867 = vmatprep.subr.mxu0 0.0
    %868 = vmatpush1.msra.mxu0 0.0
    %869 = vmatprep.subr.mxu0 0.0
    %870 = vmatpush1.msra.mxu0 0.0
    %871 = vmatprep.subr.mxu0 0.0
    %872 = vmatpush1.msra.mxu0 0.0
    %873 = vmatprep.subr.mxu0 0.0
    %874 = vmatpush1.msra.mxu0 0.0
    %875 = vmatprep.subr.mxu0 0.0
    %876 = vmatpush1.msra.mxu0 0.0
    %877 = vmatprep.subr.mxu0 0.0
    %878 = vmatpush1.msra.mxu0 0.0
    %879 = vmatprep.subr.mxu0 0.0
    %880 = vmatpush1.msra.mxu0 0.0
    %881 = vmatprep.subr.mxu0 0.0
    %882 = vmatpush1.msra.mxu0 0.0
    %883 = vmatprep.subr.mxu0 0.0
    %884 = vmatpush1.msra.mxu0 0.0
    %885 = vmatprep.subr.mxu0 0.0
    %886 = vmatpush1.msra.mxu0 0.0
    %887 = vmatprep.subr.mxu0 0.0
    %888 = vmatpush1.msra.mxu0 0.0
    %889 = vmatprep.subr.mxu0 0.0
    %890 = vmatpush1.msra.mxu0 0.0
    %891 = vmatprep.subr.mxu0 0.0
    %892 = vmatpush1.msra.mxu0 0.0
    %893 = vmatprep.subr.mxu0 0.0
    %894 = vmatpush1.msra.mxu0 0.0
    %895 = vmatprep.subr.mxu0 0.0
    %896 = vmatpush1.msra.mxu0 0.0
    %897 = vmatprep.mubr.f32.mxu0 0.0
    %898 = vmatmul.mubr.f32.gmra.mrb[0].mxu0 %v831
    %v899 = vpop.f32.mrb[0].mxu0
    %v900 = vadd.f32 %v386, %v899
    %v901 = vpop.f32.mrb[0].mxu0
    %v902 = vadd.f32 %v390, %v901
    %903 = vdwg.mxu0
    %v904 = vadd.f32 %v379, %v900
    %v905 = vxor.u32 %v904, 2147483648
    %v906 = vmul.f32 %v905, 1.442695
    %v907 = vpow.pop %v906
    %v908 = vadd.f32 %v907, 1.0
    %v909 = vrcp.pop %v908
    %v910 = vmul.f32 1.0, %v909
    %v911 = vmul.f32 %v910, %v902
    %v912 = vadd.f32 %v381, %v911
    %v913 = vtanh.pop %v912
    %v914 = vsub.f32 1.0, %v910
    %916 = vrot.lane.b32.xlu0 %v913, 64
    %v917 = vpop.permute.xlu0 %916
    %v919 = vmul.f32 %v914, %v917
    %v921 = vmul.f32 %v910, %v828
    %v922 = vadd.f32 %v919, %v921
    %924 = vrot.lane.b32.xlu0 %v922, 64
    %v925 = vpop.permute.xlu0 %924
    %927 = vst.msk [vmem:[#allocation2 + $0x8] sm:$0x3] %vm489, %v925
    %928 = vrot.lane.b32.xlu0 %v922, 32
    %v929 = vpop.permute.xlu0 %928
    %931 = vst.msk [vmem:[#allocation3 + $0x6] sm:$0x3] %vm489, %v929
    %v932 = vsel %vm374, %v925, 0
    %934 = vmatprep.subr.mxu0 %v195
    %935 = vmatpush1.msra.mxu0 %v194
    %936 = vmatprep.subr.mxu0 %v197
    %937 = vmatpush1.msra.mxu0 %v196
    %938 = vmatprep.subr.mxu0 %v199
    %939 = vmatpush1.msra.mxu0 %v198
    %940 = vmatprep.subr.mxu0 %v201
    %941 = vmatpush1.msra.mxu0 %v200
    %942 = vmatprep.subr.mxu0 %v203
    %943 = vmatpush1.msra.mxu0 %v202
    %944 = vmatprep.subr.mxu0 %v205
    %945 = vmatpush1.msra.mxu0 %v204
    %946 = vmatprep.subr.mxu0 %v207
    %947 = vmatpush1.msra.mxu0 %v206
    %948 = vmatprep.subr.mxu0 %v209
    %949 = vmatpush1.msra.mxu0 %v208
    %950 = vmatprep.subr.mxu0 0.0
    %951 = vmatpush1.msra.mxu0 0.0
    %952 = vmatprep.subr.mxu0 0.0
    %953 = vmatpush1.msra.mxu0 0.0
    %954 = vmatprep.subr.mxu0 0.0
    %955 = vmatpush1.msra.mxu0 0.0
    %956 = vmatprep.subr.mxu0 0.0
    %957 = vmatpush1.msra.mxu0 0.0
    %958 = vmatprep.subr.mxu0 0.0
    %959 = vmatpush1.msra.mxu0 0.0
    %960 = vmatprep.subr.mxu0 0.0
    %961 = vmatpush1.msra.mxu0 0.0
    %962 = vmatprep.subr.mxu0 0.0
    %963 = vmatpush1.msra.mxu0 0.0
    %964 = vmatprep.subr.mxu0 0.0
    %965 = vmatpush1.msra.mxu0 0.0
    %966 = vmatprep.subr.mxu0 0.0
    %967 = vmatpush1.msra.mxu0 0.0
    %968 = vmatprep.subr.mxu0 0.0
    %969 = vmatpush1.msra.mxu0 0.0
    %970 = vmatprep.subr.mxu0 0.0
    %971 = vmatpush1.msra.mxu0 0.0
    %972 = vmatprep.subr.mxu0 0.0
    %973 = vmatpush1.msra.mxu0 0.0
    %974 = vmatprep.subr.mxu0 0.0
    %975 = vmatpush1.msra.mxu0 0.0
    %976 = vmatprep.subr.mxu0 0.0
    %977 = vmatpush1.msra.mxu0 0.0
    %978 = vmatprep.subr.mxu0 0.0
    %979 = vmatpush1.msra.mxu0 0.0
    %980 = vmatprep.subr.mxu0 0.0
    %981 = vmatpush1.msra.mxu0 0.0
    %982 = vmatprep.subr.mxu0 0.0
    %983 = vmatpush1.msra.mxu0 0.0
    %984 = vmatprep.subr.mxu0 0.0
    %985 = vmatpush1.msra.mxu0 0.0
    %986 = vmatprep.subr.mxu0 0.0
    %987 = vmatpush1.msra.mxu0 0.0
    %988 = vmatprep.subr.mxu0 0.0
    %989 = vmatpush1.msra.mxu0 0.0
    %990 = vmatprep.subr.mxu0 0.0
    %991 = vmatpush1.msra.mxu0 0.0
    %992 = vmatprep.subr.mxu0 0.0
    %993 = vmatpush1.msra.mxu0 0.0
    %994 = vmatprep.subr.mxu0 0.0
    %995 = vmatpush1.msra.mxu0 0.0
    %996 = vmatprep.subr.mxu0 0.0
    %997 = vmatpush1.msra.mxu0 0.0
    %998 = vmatprep.mubr.f32.mxu0 0.0
    %999 = vmatmul.mubr.f32.gmra.mrb[0].mxu0 %v932
    %v1000 = vpop.f32.mrb[0].mxu0
    %v1001 = vadd.f32 %v386, %v1000
    %v1002 = vpop.f32.mrb[0].mxu0
    %v1003 = vadd.f32 %v390, %v1002
    %1004 = vdwg.mxu0
    %v1006 = vrot.slane %v1001, 6
    %v1008 = vadd.f32 %v379, %v1006
    %v1009 = vxor.u32 %v1008, 2147483648
    %v1010 = vmul.f32 %v1009, 1.442695
    %v1011 = vpow.pop %v1010
    %v1012 = vadd.f32 %v1011, 1.0
    %v1013 = vrcp.pop %v1012
    %v1014 = vmul.f32 1.0, %v1013
    %v1016 = vrot.slane %v1003, 6
    %v1018 = vmul.f32 %v1014, %v1016
    %v1019 = vadd.f32 %v381, %v1018
    %v1020 = vtanh.pop %v1019
    %v1021 = vsub.f32 1.0, %v1014
    %1023 = vrot.lane.b32.xlu0 %v1020, 64
    %v1024 = vpop.permute.xlu0 %1023
    %v1026 = vmul.f32 %v1021, %v1024
    %v1027 = vrot.slane %v922, 6
    %v1029 = vmul.f32 %v1014, %v1027
    %v1030 = vadd.f32 %v1026, %v1029
    %1032 = vrot.lane.b32.xlu0 %v1030, 64
    %v1033 = vpop.permute.xlu0 %1032
    %1035 = vst.msk [vmem:[#allocation2 + $0x8] sm:$0xc] %vm598, %v1033
    %1036 = vrot.lane.b32.xlu0 %v1030, 32
    %v1037 = vpop.permute.xlu0 %1036
    %1039 = vst.msk [vmem:[#allocation3 + $0x2] sm:$0xc] %vm598, %v1037
    %v1040 = vrot.slane %v1030, 2
    %1041 = vrot.lane.b32.xlu0 %v1040, 64
    %v1042 = vpop.permute.xlu0 %1041
    %v1043 = vsel %vm374, %v1042, 0
    %1045 = vmatprep.subr.mxu0 %v195
    %1046 = vmatpush1.msra.mxu0 %v194
    %1047 = vmatprep.subr.mxu0 %v197
    %1048 = vmatpush1.msra.mxu0 %v196
    %1049 = vmatprep.subr.mxu0 %v199
    %1050 = vmatpush1.msra.mxu0 %v198
    %1051 = vmatprep.subr.mxu0 %v201
    %1052 = vmatpush1.msra.mxu0 %v200
    %1053 = vmatprep.subr.mxu0 %v203
    %1054 = vmatpush1.msra.mxu0 %v202
    %1055 = vmatprep.subr.mxu0 %v205
    %1056 = vmatpush1.msra.mxu0 %v204
    %1057 = vmatprep.subr.mxu0 %v207
    %1058 = vmatpush1.msra.mxu0 %v206
    %1059 = vmatprep.subr.mxu0 %v209
    %1060 = vmatpush1.msra.mxu0 %v208
    %1061 = vmatprep.subr.mxu0 0.0
    %1062 = vmatpush1.msra.mxu0 0.0
    %1063 = vmatprep.subr.mxu0 0.0
    %1064 = vmatpush1.msra.mxu0 0.0
    %1065 = vmatprep.subr.mxu0 0.0
    %1066 = vmatpush1.msra.mxu0 0.0
    %1067 = vmatprep.subr.mxu0 0.0
    %1068 = vmatpush1.msra.mxu0 0.0
    %1069 = vmatprep.subr.mxu0 0.0
    %1070 = vmatpush1.msra.mxu0 0.0
    %1071 = vmatprep.subr.mxu0 0.0
    %1072 = vmatpush1.msra.mxu0 0.0
    %1073 = vmatprep.subr.mxu0 0.0
    %1074 = vmatpush1.msra.mxu0 0.0
    %1075 = vmatprep.subr.mxu0 0.0
    %1076 = vmatpush1.msra.mxu0 0.0
    %1077 = vmatprep.subr.mxu0 0.0
    %1078 = vmatpush1.msra.mxu0 0.0
    %1079 = vmatprep.subr.mxu0 0.0
    %1080 = vmatpush1.msra.mxu0 0.0
    %1081 = vmatprep.subr.mxu0 0.0
    %1082 = vmatpush1.msra.mxu0 0.0
    %1083 = vmatprep.subr.mxu0 0.0
    %1084 = vmatpush1.msra.mxu0 0.0
    %1085 = vmatprep.subr.mxu0 0.0
    %1086 = vmatpush1.msra.mxu0 0.0
    %1087 = vmatprep.subr.mxu0 0.0
    %1088 = vmatpush1.msra.mxu0 0.0
    %1089 = vmatprep.subr.mxu0 0.0
    %1090 = vmatpush1.msra.mxu0 0.0
    %1091 = vmatprep.subr.mxu0 0.0
    %1092 = vmatpush1.msra.mxu0 0.0
    %1093 = vmatprep.subr.mxu0 0.0
    %1094 = vmatpush1.msra.mxu0 0.0
    %1095 = vmatprep.subr.mxu0 0.0
    %1096 = vmatpush1.msra.mxu0 0.0
    %1097 = vmatprep.subr.mxu0 0.0
    %1098 = vmatpush1.msra.mxu0 0.0
    %1099 = vmatprep.subr.mxu0 0.0
    %1100 = vmatpush1.msra.mxu0 0.0
    %1101 = vmatprep.subr.mxu0 0.0
    %1102 = vmatpush1.msra.mxu0 0.0
    %1103 = vmatprep.subr.mxu0 0.0
    %1104 = vmatpush1.msra.mxu0 0.0
    %1105 = vmatprep.subr.mxu0 0.0
    %1106 = vmatpush1.msra.mxu0 0.0
    %1107 = vmatprep.subr.mxu0 0.0
    %1108 = vmatpush1.msra.mxu0 0.0
    %1109 = vmatprep.mubr.f32.mxu0 0.0
    %1110 = vmatmul.mubr.f32.gmra.mrb[0].mxu0 %v1043
    %v1111 = vpop.f32.mrb[0].mxu0
    %v1112 = vadd.f32 %v386, %v1111
    %v1113 = vpop.f32.mrb[0].mxu0
    %v1114 = vadd.f32 %v390, %v1113
    %1115 = vdwg.mxu0
    %v1117 = vrot.slane %v1112, 4
    %v1119 = vadd.f32 %v379, %v1117
    %v1120 = vxor.u32 %v1119, 2147483648
    %v1121 = vmul.f32 %v1120, 1.442695
    %v1122 = vpow.pop %v1121
    %v1123 = vadd.f32 %v1122, 1.0
    %v1124 = vrcp.pop %v1123
    %v1125 = vmul.f32 1.0, %v1124
    %v1127 = vrot.slane %v1114, 4
    %v1129 = vmul.f32 %v1125, %v1127
    %v1130 = vadd.f32 %v381, %v1129
    %v1131 = vtanh.pop %v1130
    %v1132 = vsub.f32 1.0, %v1125
    %1134 = vrot.lane.b32.xlu0 %v1131, 64
    %v1135 = vpop.permute.xlu0 %1134
    %v1137 = vmul.f32 %v1132, %v1135
    %v1138 = vrot.slane %v1030, 6
    %v1140 = vmul.f32 %v1125, %v1138
    %v1141 = vadd.f32 %v1137, %v1140
    %1143 = vrot.lane.b32.xlu0 %v1141, 64
    %v1144 = vpop.permute.xlu0 %1143
    %1146 = vst.msk [vmem:[#allocation2 + $0x8] sm:$0x30] %vm710, %v1144
    %1147 = vrot.lane.b32.xlu0 %v1141, 32
    %v1148 = vpop.permute.xlu0 %1147
    %1150 = vst.msk [vmem:[#allocation3 - $0x2] sm:$0x30] %vm710, %v1148
    %v1151 = vrot.slane %v1141, 4
    %1152 = vrot.lane.b32.xlu0 %v1151, 64
    %v1153 = vpop.permute.xlu0 %1152
    %v1154 = vsel %vm374, %v1153, 0
    %1156 = vmatprep.subr.mxu0 %v195
    %1157 = vmatpush1.msra.mxu0 %v194
    %1158 = vmatprep.subr.mxu0 %v197
    %1159 = vmatpush1.msra.mxu0 %v196
    %1160 = vmatprep.subr.mxu0 %v199
    %1161 = vmatpush1.msra.mxu0 %v198
    %1162 = vmatprep.subr.mxu0 %v201
    %1163 = vmatpush1.msra.mxu0 %v200
    %1164 = vmatprep.subr.mxu0 %v203
    %1165 = vmatpush1.msra.mxu0 %v202
    %1166 = vmatprep.subr.mxu0 %v205
    %1167 = vmatpush1.msra.mxu0 %v204
    %1168 = vmatprep.subr.mxu0 %v207
    %1169 = vmatpush1.msra.mxu0 %v206
    %1170 = vmatprep.subr.mxu0 %v209
    %1171 = vmatpush1.msra.mxu0 %v208
    %1172 = vmatprep.subr.mxu0 0.0
    %1173 = vmatpush1.msra.mxu0 0.0
    %1174 = vmatprep.subr.mxu0 0.0
    %1175 = vmatpush1.msra.mxu0 0.0
    %1176 = vmatprep.subr.mxu0 0.0
    %1177 = vmatpush1.msra.mxu0 0.0
    %1178 = vmatprep.subr.mxu0 0.0
    %1179 = vmatpush1.msra.mxu0 0.0
    %1180 = vmatprep.subr.mxu0 0.0
    %1181 = vmatpush1.msra.mxu0 0.0
    %1182 = vmatprep.subr.mxu0 0.0
    %1183 = vmatpush1.msra.mxu0 0.0
    %1184 = vmatprep.subr.mxu0 0.0
    %1185 = vmatpush1.msra.mxu0 0.0
    %1186 = vmatprep.subr.mxu0 0.0
    %1187 = vmatpush1.msra.mxu0 0.0
    %1188 = vmatprep.subr.mxu0 0.0
    %1189 = vmatpush1.msra.mxu0 0.0
    %1190 = vmatprep.subr.mxu0 0.0
    %1191 = vmatpush1.msra.mxu0 0.0
    %1192 = vmatprep.subr.mxu0 0.0
    %1193 = vmatpush1.msra.mxu0 0.0
    %1194 = vmatprep.subr.mxu0 0.0
    %1195 = vmatpush1.msra.mxu0 0.0
    %1196 = vmatprep.subr.mxu0 0.0
    %1197 = vmatpush1.msra.mxu0 0.0
    %1198 = vmatprep.subr.mxu0 0.0
    %1199 = vmatpush1.msra.mxu0 0.0
    %1200 = vmatprep.subr.mxu0 0.0
    %1201 = vmatpush1.msra.mxu0 0.0
    %1202 = vmatprep.subr.mxu0 0.0
    %1203 = vmatpush1.msra.mxu0 0.0
    %1204 = vmatprep.subr.mxu0 0.0
    %1205 = vmatpush1.msra.mxu0 0.0
    %1206 = vmatprep.subr.mxu0 0.0
    %1207 = vmatpush1.msra.mxu0 0.0
    %1208 = vmatprep.subr.mxu0 0.0
    %1209 = vmatpush1.msra.mxu0 0.0
    %1210 = vmatprep.subr.mxu0 0.0
    %1211 = vmatpush1.msra.mxu0 0.0
    %1212 = vmatprep.subr.mxu0 0.0
    %1213 = vmatpush1.msra.mxu0 0.0
    %1214 = vmatprep.subr.mxu0 0.0
    %1215 = vmatpush1.msra.mxu0 0.0
    %1216 = vmatprep.subr.mxu0 0.0
    %1217 = vmatpush1.msra.mxu0 0.0
    %1218 = vmatprep.subr.mxu0 0.0
    %1219 = vmatpush1.msra.mxu0 0.0
    %1220 = vmatprep.mubr.f32.mxu0 0.0
    %1221 = vmatmul.mubr.f32.gmra.mrb[0].mxu0 %v1154
    %v1222 = vpop.f32.mrb[0].mxu0
    %v1223 = vadd.f32 %v386, %v1222
    %v1224 = vpop.f32.mrb[0].mxu0
    %v1225 = vadd.f32 %v390, %v1224
    %1226 = vdwg.mxu0
    %v1228 = vrot.slane %v1223, 2
    %v1230 = vadd.f32 %v379, %v1228
    %v1231 = vxor.u32 %v1230, 2147483648
    %v1232 = vmul.f32 %v1231, 1.442695
    %v1233 = vpow.pop %v1232
    %v1234 = vadd.f32 %v1233, 1.0
    %v1235 = vrcp.pop %v1234
    %v1236 = vmul.f32 1.0, %v1235
    %v1238 = vrot.slane %v1225, 2
    %v1240 = vmul.f32 %v1236, %v1238
    %v1241 = vadd.f32 %v381, %v1240
    %v1242 = vtanh.pop %v1241
    %v1243 = vsub.f32 1.0, %v1236
    %1245 = vrot.lane.b32.xlu0 %v1242, 64
    %v1246 = vpop.permute.xlu0 %1245
    %v1248 = vmul.f32 %v1243, %v1246
    %v1249 = vrot.slane %v1141, 6
    %v1251 = vmul.f32 %v1236, %v1249
    %v1252 = vadd.f32 %v1248, %v1251
    %1254 = vrot.lane.b32.xlu0 %v1252, 64
    %v1255 = vpop.permute.xlu0 %1254
    %1257 = vst.msk [vmem:[#allocation2 + $0x8] sm:$0xc0] %vm822, %v1255
    %1258 = vrot.lane.b32.xlu0 %v1252, 32
    %v1259 = vpop.permute.xlu0 %1258
    %1261 = vst.msk [vmem:[#allocation3 - $0x6] sm:$0xc0] %vm822, %v1259
    %v1262 = vld [vmem:[#allocation12] sm:$0xff]
    %v1263 = vld [vmem:[#allocation12 + $0x8] sm:$0xff]
    %v1264 = vld [vmem:[#allocation12 + $0x10] sm:$0xff]
    %v1265 = vld [vmem:[#allocation12 + $0x18] sm:$0xff]
    %v1266 = vld [vmem:[#allocation12 + $0x20] sm:$0xff]
    %v1267 = vld [vmem:[#allocation12 + $0x28] sm:$0xff]
    %v1268 = vld [vmem:[#allocation12 + $0x30] sm:$0xff]
    %v1269 = vld [vmem:[#allocation12 + $0x38] sm:$0xff]
    %v1270 = vld [vmem:[#allocation12 + $0x40] sm:$0xff]
    %v1271 = vld [vmem:[#allocation12 + $0x48] sm:$0xff]
    %v1272 = vld [vmem:[#allocation12 + $0x50] sm:$0xff]
    %v1273 = vld [vmem:[#allocation12 + $0x58] sm:$0xff]
    %v1274 = vld [vmem:[#allocation12 + $0x60] sm:$0xff]
    %v1275 = vld [vmem:[#allocation12 + $0x68] sm:$0xff]
    %v1276 = vld [vmem:[#allocation12 + $0x70] sm:$0xff]
    %v1277 = vld [vmem:[#allocation12 + $0x78] sm:$0xff]
    %v1278 = vld [vmem:[#allocation14] sm:$0x3]
    %v1279 = vld [vmem:[#allocation15] sm:$0xff]
    %v1280 = vld [vmem:[#allocation15 + $0x8] sm:$0xff]
    %v1281 = vld [vmem:[#allocation15 + $0x10] sm:$0xff]
    %v1282 = vld [vmem:[#allocation15 + $0x18] sm:$0xff]
    %v1283 = vld [vmem:[#allocation15 + $0x20] sm:$0xff]
    %v1284 = vld [vmem:[#allocation15 + $0x28] sm:$0xff]
    %v1285 = vld [vmem:[#allocation15 + $0x30] sm:$0xff]
    %v1286 = vld [vmem:[#allocation15 + $0x38] sm:$0xff]
    %v1287 = vld [vmem:[#allocation15 + $0x40] sm:$0xff]
    %v1288 = vld [vmem:[#allocation15 + $0x48] sm:$0xff]
    %v1289 = vld [vmem:[#allocation15 + $0x50] sm:$0xff]
    %v1290 = vld [vmem:[#allocation15 + $0x58] sm:$0xff]
    %v1291 = vld [vmem:[#allocation15 + $0x60] sm:$0xff]
    %v1292 = vld [vmem:[#allocation15 + $0x68] sm:$0xff]
    %v1293 = vld [vmem:[#allocation15 + $0x70] sm:$0xff]
    %v1294 = vld [vmem:[#allocation15 + $0x78] sm:$0xff]
    %v1295 = vld [vmem:[#allocation17] sm:$0x3]
    %v1296 = vld [vmem:[#allocation2] sm:$0xff]
    %v1297 = vld [vmem:[#allocation2 + $0x8] sm:$0xff]
    %v1298 = vld [vmem:[#allocation3] sm:$0xff]
    %v1299 = vld [vmem:[#allocation3 + $0x8] sm:$0xff]
    %1302 = vrot.lane.b32.xlu0 %v1298, 32
    %v1303 = vpop.permute.xlu0 %1302
    %1304 = vrot.lane.b32.xlu0 %v1299, 32
    %v1305 = vpop.permute.xlu0 %1304
    %v1308 = vsel %vm371, %v1296, %v1303
    %v1309 = vsel %vm371, %v1297, %v1305
    %v1311 = vlaneseq
    %v1312 = vshrl.u32 %v1311, 7
    %v1313 = vsub.s32 0, %v1312
    %v1314 = vrot.slane %v1278, %v1313
    %v1315 = vlaneseq
    %v1316 = vshrl.u32 %v1315, 7
    %v1317 = vsub.s32 1, %v1316
    %v1318 = vrot.slane %v1278, %v1317
    %v1322 = vsel %vm374, %v1308, 0
    %v1325 = vsel %vm374, %v1309, 0
    %1327 = vmatprep.subr.mxu0 %v1263
    %1328 = vmatpush1.msra.mxu0 %v1262
    %1329 = vmatprep.subr.mxu0 %v1265
    %1330 = vmatpush1.msra.mxu0 %v1264
    %1331 = vmatprep.subr.mxu0 %v1267
    %1332 = vmatpush1.msra.mxu0 %v1266
    %1333 = vmatprep.subr.mxu0 %v1269
    %1334 = vmatpush1.msra.mxu0 %v1268
    %1335 = vmatprep.subr.mxu0 %v1271
    %1336 = vmatpush1.msra.mxu0 %v1270
    %1337 = vmatprep.subr.mxu0 %v1273
    %1338 = vmatpush1.msra.mxu0 %v1272
    %1339 = vmatprep.subr.mxu0 %v1275
    %1340 = vmatpush1.msra.mxu0 %v1274
    %1341 = vmatprep.subr.mxu0 %v1277
    %1342 = vmatpush1.msra.mxu0 %v1276
    %1343 = vmatprep.subr.mxu0 0.0
    %1344 = vmatpush1.msra.mxu0 0.0
    %1345 = vmatprep.subr.mxu0 0.0
    %1346 = vmatpush1.msra.mxu0 0.0
    %1347 = vmatprep.subr.mxu0 0.0
    %1348 = vmatpush1.msra.mxu0 0.0
    %1349 = vmatprep.subr.mxu0 0.0
    %1350 = vmatpush1.msra.mxu0 0.0
    %1351 = vmatprep.subr.mxu0 0.0
    %1352 = vmatpush1.msra.mxu0 0.0
    %1353 = vmatprep.subr.mxu0 0.0
    %1354 = vmatpush1.msra.mxu0 0.0
    %1355 = vmatprep.subr.mxu0 0.0
    %1356 = vmatpush1.msra.mxu0 0.0
    %1357 = vmatprep.subr.mxu0 0.0
    %1358 = vmatpush1.msra.mxu0 0.0
    %1359 = vmatprep.subr.mxu0 0.0
    %1360 = vmatpush1.msra.mxu0 0.0
    %1361 = vmatprep.subr.mxu0 0.0
    %1362 = vmatpush1.msra.mxu0 0.0
    %1363 = vmatprep.subr.mxu0 0.0
    %1364 = vmatpush1.msra.mxu0 0.0
    %1365 = vmatprep.subr.mxu0 0.0
    %1366 = vmatpush1.msra.mxu0 0.0
    %1367 = vmatprep.subr.mxu0 0.0
    %1368 = vmatpush1.msra.mxu0 0.0
    %1369 = vmatprep.subr.mxu0 0.0
    %1370 = vmatpush1.msra.mxu0 0.0
    %1371 = vmatprep.subr.mxu0 0.0
    %1372 = vmatpush1.msra.mxu0 0.0
    %1373 = vmatprep.subr.mxu0 0.0
    %1374 = vmatpush1.msra.mxu0 0.0
    %1375 = vmatprep.subr.mxu0 0.0
    %1376 = vmatpush1.msra.mxu0 0.0
    %1377 = vmatprep.subr.mxu0 0.0
    %1378 = vmatpush1.msra.mxu0 0.0
    %1379 = vmatprep.subr.mxu0 0.0
    %1380 = vmatpush1.msra.mxu0 0.0
    %1381 = vmatprep.subr.mxu0 0.0
    %1382 = vmatpush1.msra.mxu0 0.0
    %1383 = vmatprep.subr.mxu0 0.0
    %1384 = vmatpush1.msra.mxu0 0.0
    %1385 = vmatprep.subr.mxu0 0.0
    %1386 = vmatpush1.msra.mxu0 0.0
    %1387 = vmatprep.subr.mxu0 0.0
    %1388 = vmatpush1.msra.mxu0 0.0
    %1389 = vmatprep.subr.mxu0 0.0
    %1390 = vmatpush1.msra.mxu0 0.0
    %1391 = vmatprep.mubr.f32.mxu0 0.0
    %1392 = vmatmul.mubr.f32.gmra.mrb[0].mxu0 %v1322
    %v1393 = vpop.f32.mrb[0].mxu0
    %v1394 = vadd.f32 %v1314, %v1393
    %v1395 = vpop.f32.mrb[0].mxu0
    %v1396 = vadd.f32 %v1318, %v1395
    %1397 = vmatprep.mubr.f32.mxu0 0.0
    %1398 = vmatmul.mubr.f32.gmra.mrb[0].mxu0 %v1325
    %v1399 = vpop.f32.mrb[0].mxu0
    %v1400 = vadd.f32 %v1314, %v1399
    %v1401 = vpop.f32.mrb[0].mxu0
    %v1402 = vadd.f32 %v1318, %v1401
    %1403 = vdwg.mxu0
    %v1406 = vrot.slane %v1400, 6
    %v1407 = vrot.slane %v1402, 6
    %v1410 = vrot.slane %v1400, 2
    %v1411 = vrot.slane %v1402, 2
    %v1416 = vrot.slane %v1394, 6
    %v1417 = vrot.slane %v1396, 6
    %v1420 = vrot.slane %v1394, 2
    %v1421 = vrot.slane %v1396, 2
    %v1424 = vsel %vm328, %v1406, %v1410
    %v1425 = vsel %vm328, %v1407, %v1411
    %v1426 = vsel %vm331, %v1424, %v1406
    %v1427 = vsel %vm331, %v1425, %v1407
    %v1428 = vsel %vm334, %v1426, %v1410
    %v1429 = vsel %vm334, %v1427, %v1411
    %v1430 = vsel %vm328, %v1416, %v1420
    %v1431 = vsel %vm328, %v1417, %v1421
    %v1432 = vsel %vm331, %v1430, %v1416
    %v1433 = vsel %vm331, %v1431, %v1417
    %v1434 = vsel %vm334, %v1432, %v1420
    %v1435 = vsel %vm334, %v1433, %v1421
    %1438 = vrot.lane.b32.xlu0 %v1428, 64
    %v1439 = vpop.permute.xlu0 %1438
    %1440 = vrot.lane.b32.xlu0 %v1434, 64
    %v1441 = vpop.permute.xlu0 %1440
    %1444 = vrot.lane.b32.xlu0 %v1394, 32
    %v1445 = vpop.permute.xlu0 %1444
    %1446 = vrot.lane.b32.xlu0 %v1400, 32
    %v1447 = vpop.permute.xlu0 %1446
    %1452 = vrot.lane.b32.xlu0 %v1429, 96
    %v1453 = vpop.permute.xlu0 %1452
    %1454 = vrot.lane.b32.xlu0 %v1435, 96
    %v1455 = vpop.permute.xlu0 %1454
    %1458 = vrot.lane.b32.xlu0 %v1394, 64
    %v1459 = vpop.permute.xlu0 %1458
    %1460 = vrot.lane.b32.xlu0 %v1400, 64
    %v1461 = vpop.permute.xlu0 %1460
    %v1464 = vsel %vm371, %v1394, %v1439
    %v1465 = vsel %vm371, %v1400, %v1441
    %v1466 = vsel %vm374, %v1464, %v1445
    %v1467 = vsel %vm374, %v1465, %v1447
    %v1468 = vsel %vm377, %v1466, %v1453
    %v1469 = vsel %vm377, %v1467, %v1455
    %v1470 = vsel %vm371, %v1459, %v1429
    %v1471 = vsel %vm371, %v1461, %v1435
    %v1473 = vlaneseq
    %v1474 = vshrl.u32 %v1473, 7
    %v1475 = vsub.s32 0, %v1474
    %v1476 = vrot.slane %v1295, %v1475
    %v1477 = vlaneseq
    %v1478 = vshrl.u32 %v1477, 7
    %v1479 = vsub.s32 1, %v1478
    %v1480 = vrot.slane %v1295, %v1479
    %1483 = vmatprep.subr.mxu0 %v1280
    %1484 = vmatpush1.msra.mxu0 %v1279
    %1485 = vmatprep.subr.mxu0 %v1282
    %1486 = vmatpush1.msra.mxu0 %v1281
    %1487 = vmatprep.subr.mxu0 %v1284
    %1488 = vmatpush1.msra.mxu0 %v1283
    %1489 = vmatprep.subr.mxu0 %v1286
    %1490 = vmatpush1.msra.mxu0 %v1285
    %1491 = vmatprep.subr.mxu0 %v1288
    %1492 = vmatpush1.msra.mxu0 %v1287
    %1493 = vmatprep.subr.mxu0 %v1290
    %1494 = vmatpush1.msra.mxu0 %v1289
    %1495 = vmatprep.subr.mxu0 %v1292
    %1496 = vmatpush1.msra.mxu0 %v1291
    %1497 = vmatprep.subr.mxu0 %v1294
    %1498 = vmatpush1.msra.mxu0 %v1293
    %1499 = vmatprep.subr.mxu0 0.0
    %1500 = vmatpush1.msra.mxu0 0.0
    %1501 = vmatprep.subr.mxu0 0.0
    %1502 = vmatpush1.msra.mxu0 0.0
    %1503 = vmatprep.subr.mxu0 0.0
    %1504 = vmatpush1.msra.mxu0 0.0
    %1505 = vmatprep.subr.mxu0 0.0
    %1506 = vmatpush1.msra.mxu0 0.0
    %1507 = vmatprep.subr.mxu0 0.0
    %1508 = vmatpush1.msra.mxu0 0.0
    %1509 = vmatprep.subr.mxu0 0.0
    %1510 = vmatpush1.msra.mxu0 0.0
    %1511 = vmatprep.subr.mxu0 0.0
    %1512 = vmatpush1.msra.mxu0 0.0
    %1513 = vmatprep.subr.mxu0 0.0
    %1514 = vmatpush1.msra.mxu0 0.0
    %1515 = vmatprep.subr.mxu0 0.0
    %1516 = vmatpush1.msra.mxu0 0.0
    %1517 = vmatprep.subr.mxu0 0.0
    %1518 = vmatpush1.msra.mxu0 0.0
    %1519 = vmatprep.subr.mxu0 0.0
    %1520 = vmatpush1.msra.mxu0 0.0
    %1521 = vmatprep.subr.mxu0 0.0
    %1522 = vmatpush1.msra.mxu0 0.0
    %1523 = vmatprep.subr.mxu0 0.0
    %1524 = vmatpush1.msra.mxu0 0.0
    %1525 = vmatprep.subr.mxu0 0.0
    %1526 = vmatpush1.msra.mxu0 0.0
    %1527 = vmatprep.subr.mxu0 0.0
    %1528 = vmatpush1.msra.mxu0 0.0
    %1529 = vmatprep.subr.mxu0 0.0
    %1530 = vmatpush1.msra.mxu0 0.0
    %1531 = vmatprep.subr.mxu0 0.0
    %1532 = vmatpush1.msra.mxu0 0.0
    %1533 = vmatprep.subr.mxu0 0.0
    %1534 = vmatpush1.msra.mxu0 0.0
    %1535 = vmatprep.subr.mxu0 0.0
    %1536 = vmatpush1.msra.mxu0 0.0
    %1537 = vmatprep.subr.mxu0 0.0
    %1538 = vmatpush1.msra.mxu0 0.0
    %1539 = vmatprep.subr.mxu0 0.0
    %1540 = vmatpush1.msra.mxu0 0.0
    %1541 = vmatprep.subr.mxu0 0.0
    %1542 = vmatpush1.msra.mxu0 0.0
    %1543 = vmatprep.subr.mxu0 0.0
    %1544 = vmatpush1.msra.mxu0 0.0
    %1545 = vmatprep.subr.mxu0 0.0
    %1546 = vmatpush1.msra.mxu0 0.0
    %1547 = vmatprep.mubr.f32.mxu0 0.0
    %1548 = vmatmul.mubr.f32.gmra.mrb[0].mxu0 %v394
    %v1549 = vpop.f32.mrb[0].mxu0
    %v1550 = vadd.f32 %v1476, %v1549
    %v1551 = vpop.f32.mrb[0].mxu0
    %v1552 = vadd.f32 %v1480, %v1551
    %1553 = vdwg.mxu0
    %v1554 = vadd.f32 %v1468, %v1550
    %v1555 = vxor.u32 %v1554, 2147483648
    %v1556 = vmul.f32 %v1555, 1.442695
    %v1557 = vpow.pop %v1556
    %v1558 = vadd.f32 %v1557, 1.0
    %v1559 = vrcp.pop %v1558
    %v1560 = vmul.f32 1.0, %v1559
    %v1561 = vmul.f32 %v1560, %v1552
    %v1562 = vadd.f32 %v1470, %v1561
    %v1563 = vtanh.pop %v1562
    %v1564 = vsub.f32 1.0, %v1560
    %1566 = vrot.lane.b32.xlu0 %v1563, 64
    %v1567 = vpop.permute.xlu0 %1566
    %v1569 = vmul.f32 %v1564, %v1567
    %v1570 = vmul.f32 %v1560, 0.0
    %v1571 = vadd.f32 %v1569, %v1570
    %1573 = vrot.lane.b32.xlu0 %v1571, 64
    %v1574 = vpop.permute.xlu0 %1573
    %1576 = vst.msk [vmem:[#allocation4] sm:$0x3] %vm489, %v1574
    %1577 = vrot.lane.b32.xlu0 %v1571, 32
    %v1578 = vpop.permute.xlu0 %1577
    %1580 = vst.msk [vmem:[#allocation5 + $0xe] sm:$0x3] %vm489, %v1578
    %v1581 = vsel %vm374, %v1574, 0
    %1583 = vmatprep.subr.mxu0 %v1280
    %1584 = vmatpush1.msra.mxu0 %v1279
    %1585 = vmatprep.subr.mxu0 %v1282
    %1586 = vmatpush1.msra.mxu0 %v1281
    %1587 = vmatprep.subr.mxu0 %v1284
    %1588 = vmatpush1.msra.mxu0 %v1283
    %1589 = vmatprep.subr.mxu0 %v1286
    %1590 = vmatpush1.msra.mxu0 %v1285
    %1591 = vmatprep.subr.mxu0 %v1288
    %1592 = vmatpush1.msra.mxu0 %v1287
    %1593 = vmatprep.subr.mxu0 %v1290
    %1594 = vmatpush1.msra.mxu0 %v1289
    %1595 = vmatprep.subr.mxu0 %v1292
    %1596 = vmatpush1.msra.mxu0 %v1291
    %1597 = vmatprep.subr.mxu0 %v1294
    %1598 = vmatpush1.msra.mxu0 %v1293
    %1599 = vmatprep.subr.mxu0 0.0
    %1600 = vmatpush1.msra.mxu0 0.0
    %1601 = vmatprep.subr.mxu0 0.0
    %1602 = vmatpush1.msra.mxu0 0.0
    %1603 = vmatprep.subr.mxu0 0.0
    %1604 = vmatpush1.msra.mxu0 0.0
    %1605 = vmatprep.subr.mxu0 0.0
    %1606 = vmatpush1.msra.mxu0 0.0
    %1607 = vmatprep.subr.mxu0 0.0
    %1608 = vmatpush1.msra.mxu0 0.0
    %1609 = vmatprep.subr.mxu0 0.0
    %1610 = vmatpush1.msra.mxu0 0.0
    %1611 = vmatprep.subr.mxu0 0.0
    %1612 = vmatpush1.msra.mxu0 0.0
    %1613 = vmatprep.subr.mxu0 0.0
    %1614 = vmatpush1.msra.mxu0 0.0
    %1615 = vmatprep.subr.mxu0 0.0
    %1616 = vmatpush1.msra.mxu0 0.0
    %1617 = vmatprep.subr.mxu0 0.0
    %1618 = vmatpush1.msra.mxu0 0.0
    %1619 = vmatprep.subr.mxu0 0.0
    %1620 = vmatpush1.msra.mxu0 0.0
    %1621 = vmatprep.subr.mxu0 0.0
    %1622 = vmatpush1.msra.mxu0 0.0
    %1623 = vmatprep.subr.mxu0 0.0
    %1624 = vmatpush1.msra.mxu0 0.0
    %1625 = vmatprep.subr.mxu0 0.0
    %1626 = vmatpush1.msra.mxu0 0.0
    %1627 = vmatprep.subr.mxu0 0.0
    %1628 = vmatpush1.msra.mxu0 0.0
    %1629 = vmatprep.subr.mxu0 0.0
    %1630 = vmatpush1.msra.mxu0 0.0
    %1631 = vmatprep.subr.mxu0 0.0
    %1632 = vmatpush1.msra.mxu0 0.0
    %1633 = vmatprep.subr.mxu0 0.0
    %1634 = vmatpush1.msra.mxu0 0.0
    %1635 = vmatprep.subr.mxu0 0.0
    %1636 = vmatpush1.msra.mxu0 0.0
    %1637 = vmatprep.subr.mxu0 0.0
    %1638 = vmatpush1.msra.mxu0 0.0
    %1639 = vmatprep.subr.mxu0 0.0
    %1640 = vmatpush1.msra.mxu0 0.0
    %1641 = vmatprep.subr.mxu0 0.0
    %1642 = vmatpush1.msra.mxu0 0.0
    %1643 = vmatprep.subr.mxu0 0.0
    %1644 = vmatpush1.msra.mxu0 0.0
    %1645 = vmatprep.subr.mxu0 0.0
    %1646 = vmatpush1.msra.mxu0 0.0
    %1647 = vmatprep.mubr.f32.mxu0 0.0
    %1648 = vmatmul.mubr.f32.gmra.mrb[0].mxu0 %v1581
    %v1649 = vpop.f32.mrb[0].mxu0
    %v1650 = vadd.f32 %v1476, %v1649
    %v1651 = vpop.f32.mrb[0].mxu0
    %v1652 = vadd.f32 %v1480, %v1651
    %1653 = vdwg.mxu0
    %v1655 = vrot.slane %v1650, 6
    %v1657 = vadd.f32 %v1468, %v1655
    %v1658 = vxor.u32 %v1657, 2147483648
    %v1659 = vmul.f32 %v1658, 1.442695
    %v1660 = vpow.pop %v1659
    %v1661 = vadd.f32 %v1660, 1.0
    %v1662 = vrcp.pop %v1661
    %v1663 = vmul.f32 1.0, %v1662
    %v1665 = vrot.slane %v1652, 6
    %v1667 = vmul.f32 %v1663, %v1665
    %v1668 = vadd.f32 %v1470, %v1667
    %v1669 = vtanh.pop %v1668
    %v1670 = vsub.f32 1.0, %v1663
    %1672 = vrot.lane.b32.xlu0 %v1669, 64
    %v1673 = vpop.permute.xlu0 %1672
    %v1675 = vmul.f32 %v1670, %v1673
    %v1676 = vrot.slane %v1571, 6
    %v1678 = vmul.f32 %v1663, %v1676
    %v1679 = vadd.f32 %v1675, %v1678
    %1681 = vrot.lane.b32.xlu0 %v1679, 64
    %v1682 = vpop.permute.xlu0 %1681
    %1684 = vst.msk [vmem:[#allocation4] sm:$0xc] %vm598, %v1682
    %1685 = vrot.lane.b32.xlu0 %v1679, 32
    %v1686 = vpop.permute.xlu0 %1685
    %1688 = vst.msk [vmem:[#allocation5 + $0xa] sm:$0xc] %vm598, %v1686
    %v1689 = vrot.slane %v1679, 2
    %1690 = vrot.lane.b32.xlu0 %v1689, 64
    %v1691 = vpop.permute.xlu0 %1690
    %v1692 = vsel %vm374, %v1691, 0
    %1694 = vmatprep.subr.mxu0 %v1280
    %1695 = vmatpush1.msra.mxu0 %v1279
    %1696 = vmatprep.subr.mxu0 %v1282
    %1697 = vmatpush1.msra.mxu0 %v1281
    %1698 = vmatprep.subr.mxu0 %v1284
    %1699 = vmatpush1.msra.mxu0 %v1283
    %1700 = vmatprep.subr.mxu0 %v1286
    %1701 = vmatpush1.msra.mxu0 %v1285
    %1702 = vmatprep.subr.mxu0 %v1288
    %1703 = vmatpush1.msra.mxu0 %v1287
    %1704 = vmatprep.subr.mxu0 %v1290
    %1705 = vmatpush1.msra.mxu0 %v1289
    %1706 = vmatprep.subr.mxu0 %v1292
    %1707 = vmatpush1.msra.mxu0 %v1291
    %1708 = vmatprep.subr.mxu0 %v1294
    %1709 = vmatpush1.msra.mxu0 %v1293
    %1710 = vmatprep.subr.mxu0 0.0
    %1711 = vmatpush1.msra.mxu0 0.0
    %1712 = vmatprep.subr.mxu0 0.0
    %1713 = vmatpush1.msra.mxu0 0.0
    %1714 = vmatprep.subr.mxu0 0.0
    %1715 = vmatpush1.msra.mxu0 0.0
    %1716 = vmatprep.subr.mxu0 0.0
    %1717 = vmatpush1.msra.mxu0 0.0
    %1718 = vmatprep.subr.mxu0 0.0
    %1719 = vmatpush1.msra.mxu0 0.0
    %1720 = vmatprep.subr.mxu0 0.0
    %1721 = vmatpush1.msra.mxu0 0.0
    %1722 = vmatprep.subr.mxu0 0.0
    %1723 = vmatpush1.msra.mxu0 0.0
    %1724 = vmatprep.subr.mxu0 0.0
    %1725 = vmatpush1.msra.mxu0 0.0
    %1726 = vmatprep.subr.mxu0 0.0
    %1727 = vmatpush1.msra.mxu0 0.0
    %1728 = vmatprep.subr.mxu0 0.0
    %1729 = vmatpush1.msra.mxu0 0.0
    %1730 = vmatprep.subr.mxu0 0.0
    %1731 = vmatpush1.msra.mxu0 0.0
    %1732 = vmatprep.subr.mxu0 0.0
    %1733 = vmatpush1.msra.mxu0 0.0
    %1734 = vmatprep.subr.mxu0 0.0
    %1735 = vmatpush1.msra.mxu0 0.0
    %1736 = vmatprep.subr.mxu0 0.0
    %1737 = vmatpush1.msra.mxu0 0.0
    %1738 = vmatprep.subr.mxu0 0.0
    %1739 = vmatpush1.msra.mxu0 0.0
    %1740 = vmatprep.subr.mxu0 0.0
    %1741 = vmatpush1.msra.mxu0 0.0
    %1742 = vmatprep.subr.mxu0 0.0
    %1743 = vmatpush1.msra.mxu0 0.0
    %1744 = vmatprep.subr.mxu0 0.0
    %1745 = vmatpush1.msra.mxu0 0.0
    %1746 = vmatprep.subr.mxu0 0.0
    %1747 = vmatpush1.msra.mxu0 0.0
    %1748 = vmatprep.subr.mxu0 0.0
    %1749 = vmatpush1.msra.mxu0 0.0
    %1750 = vmatprep.subr.mxu0 0.0
    %1751 = vmatpush1.msra.mxu0 0.0
    %1752 = vmatprep.subr.mxu0 0.0
    %1753 = vmatpush1.msra.mxu0 0.0
    %1754 = vmatprep.subr.mxu0 0.0
    %1755 = vmatpush1.msra.mxu0 0.0
    %1756 = vmatprep.subr.mxu0 0.0
    %1757 = vmatpush1.msra.mxu0 0.0
    %1758 = vmatprep.mubr.f32.mxu0 0.0
    %1759 = vmatmul.mubr.f32.gmra.mrb[0].mxu0 %v1692
    %v1760 = vpop.f32.mrb[0].mxu0
    %v1761 = vadd.f32 %v1476, %v1760
    %v1762 = vpop.f32.mrb[0].mxu0
    %v1763 = vadd.f32 %v1480, %v1762
    %1764 = vdwg.mxu0
    %v1766 = vrot.slane %v1761, 4
    %v1768 = vadd.f32 %v1468, %v1766
    %v1769 = vxor.u32 %v1768, 2147483648
    %v1770 = vmul.f32 %v1769, 1.442695
    %v1771 = vpow.pop %v1770
    %v1772 = vadd.f32 %v1771, 1.0
    %v1773 = vrcp.pop %v1772
    %v1774 = vmul.f32 1.0, %v1773
    %v1776 = vrot.slane %v1763, 4
    %v1778 = vmul.f32 %v1774, %v1776
    %v1779 = vadd.f32 %v1470, %v1778
    %v1780 = vtanh.pop %v1779
    %v1781 = vsub.f32 1.0, %v1774
    %1783 = vrot.lane.b32.xlu0 %v1780, 64
    %v1784 = vpop.permute.xlu0 %1783
    %v1786 = vmul.f32 %v1781, %v1784
    %v1787 = vrot.slane %v1679, 6
    %v1789 = vmul.f32 %v1774, %v1787
    %v1790 = vadd.f32 %v1786, %v1789
    %1792 = vrot.lane.b32.xlu0 %v1790, 64
    %v1793 = vpop.permute.xlu0 %1792
    %1795 = vst.msk [vmem:[#allocation4] sm:$0x30] %vm710, %v1793
    %1796 = vrot.lane.b32.xlu0 %v1790, 32
    %v1797 = vpop.permute.xlu0 %1796
    %1799 = vst.msk [vmem:[#allocation5 + $0x6] sm:$0x30] %vm710, %v1797
    %v1800 = vrot.slane %v1790, 4
    %1801 = vrot.lane.b32.xlu0 %v1800, 64
    %v1802 = vpop.permute.xlu0 %1801
    %v1803 = vsel %vm374, %v1802, 0
    %1805 = vmatprep.subr.mxu0 %v1280
    %1806 = vmatpush1.msra.mxu0 %v1279
    %1807 = vmatprep.subr.mxu0 %v1282
    %1808 = vmatpush1.msra.mxu0 %v1281
    %1809 = vmatprep.subr.mxu0 %v1284
    %1810 = vmatpush1.msra.mxu0 %v1283
    %1811 = vmatprep.subr.mxu0 %v1286
    %1812 = vmatpush1.msra.mxu0 %v1285
    %1813 = vmatprep.subr.mxu0 %v1288
    %1814 = vmatpush1.msra.mxu0 %v1287
    %1815 = vmatprep.subr.mxu0 %v1290
    %1816 = vmatpush1.msra.mxu0 %v1289
    %1817 = vmatprep.subr.mxu0 %v1292
    %1818 = vmatpush1.msra.mxu0 %v1291
    %1819 = vmatprep.subr.mxu0 %v1294
    %1820 = vmatpush1.msra.mxu0 %v1293
    %1821 = vmatprep.subr.mxu0 0.0
    %1822 = vmatpush1.msra.mxu0 0.0
    %1823 = vmatprep.subr.mxu0 0.0
    %1824 = vmatpush1.msra.mxu0 0.0
    %1825 = vmatprep.subr.mxu0 0.0
    %1826 = vmatpush1.msra.mxu0 0.0
    %1827 = vmatprep.subr.mxu0 0.0
    %1828 = vmatpush1.msra.mxu0 0.0
    %1829 = vmatprep.subr.mxu0 0.0
    %1830 = vmatpush1.msra.mxu0 0.0
    %1831 = vmatprep.subr.mxu0 0.0
    %1832 = vmatpush1.msra.mxu0 0.0
    %1833 = vmatprep.subr.mxu0 0.0
    %1834 = vmatpush1.msra.mxu0 0.0
    %1835 = vmatprep.subr.mxu0 0.0
    %1836 = vmatpush1.msra.mxu0 0.0
    %1837 = vmatprep.subr.mxu0 0.0
    %1838 = vmatpush1.msra.mxu0 0.0
    %1839 = vmatprep.subr.mxu0 0.0
    %1840 = vmatpush1.msra.mxu0 0.0
    %1841 = vmatprep.subr.mxu0 0.0
    %1842 = vmatpush1.msra.mxu0 0.0
    %1843 = vmatprep.subr.mxu0 0.0
    %1844 = vmatpush1.msra.mxu0 0.0
    %1845 = vmatprep.subr.mxu0 0.0
    %1846 = vmatpush1.msra.mxu0 0.0
    %1847 = vmatprep.subr.mxu0 0.0
    %1848 = vmatpush1.msra.mxu0 0.0
    %1849 = vmatprep.subr.mxu0 0.0
    %1850 = vmatpush1.msra.mxu0 0.0
    %1851 = vmatprep.subr.mxu0 0.0
    %1852 = vmatpush1.msra.mxu0 0.0
    %1853 = vmatprep.subr.mxu0 0.0
    %1854 = vmatpush1.msra.mxu0 0.0
    %1855 = vmatprep.subr.mxu0 0.0
    %1856 = vmatpush1.msra.mxu0 0.0
    %1857 = vmatprep.subr.mxu0 0.0
    %1858 = vmatpush1.msra.mxu0 0.0
    %1859 = vmatprep.subr.mxu0 0.0
    %1860 = vmatpush1.msra.mxu0 0.0
    %1861 = vmatprep.subr.mxu0 0.0
    %1862 = vmatpush1.msra.mxu0 0.0
    %1863 = vmatprep.subr.mxu0 0.0
    %1864 = vmatpush1.msra.mxu0 0.0
    %1865 = vmatprep.subr.mxu0 0.0
    %1866 = vmatpush1.msra.mxu0 0.0
    %1867 = vmatprep.subr.mxu0 0.0
    %1868 = vmatpush1.msra.mxu0 0.0
    %1869 = vmatprep.mubr.f32.mxu0 0.0
    %1870 = vmatmul.mubr.f32.gmra.mrb[0].mxu0 %v1803
    %v1871 = vpop.f32.mrb[0].mxu0
    %v1872 = vadd.f32 %v1476, %v1871
    %v1873 = vpop.f32.mrb[0].mxu0
    %v1874 = vadd.f32 %v1480, %v1873
    %1875 = vdwg.mxu0
    %v1877 = vrot.slane %v1872, 2
    %v1879 = vadd.f32 %v1468, %v1877
    %v1880 = vxor.u32 %v1879, 2147483648
    %v1881 = vmul.f32 %v1880, 1.442695
    %v1882 = vpow.pop %v1881
    %v1883 = vadd.f32 %v1882, 1.0
    %v1884 = vrcp.pop %v1883
    %v1885 = vmul.f32 1.0, %v1884
    %v1887 = vrot.slane %v1874, 2
    %v1889 = vmul.f32 %v1885, %v1887
    %v1890 = vadd.f32 %v1470, %v1889
    %v1891 = vtanh.pop %v1890
    %v1892 = vsub.f32 1.0, %v1885
    %1894 = vrot.lane.b32.xlu0 %v1891, 64
    %v1895 = vpop.permute.xlu0 %1894
    %v1897 = vmul.f32 %v1892, %v1895
    %v1898 = vrot.slane %v1790, 6
    %v1900 = vmul.f32 %v1885, %v1898
    %v1901 = vadd.f32 %v1897, %v1900
    %1903 = vrot.lane.b32.xlu0 %v1901, 64
    %v1904 = vpop.permute.xlu0 %1903
    %1906 = vst.msk [vmem:[#allocation4] sm:$0xc0] %vm822, %v1904
    %1907 = vrot.lane.b32.xlu0 %v1901, 32
    %v1908 = vpop.permute.xlu0 %1907
    %1910 = vst.msk [vmem:[#allocation5 + $0x2] sm:$0xc0] %vm822, %v1908
    %v1911 = vrot.slane %v1901, 6
    %1912 = vrot.lane.b32.xlu0 %v1911, 64
    %v1913 = vpop.permute.xlu0 %1912
    %v1914 = vsel %vm374, %v1913, 0
    %1916 = vmatprep.subr.mxu0 %v1280
    %1917 = vmatpush1.msra.mxu0 %v1279
    %1918 = vmatprep.subr.mxu0 %v1282
    %1919 = vmatpush1.msra.mxu0 %v1281
    %1920 = vmatprep.subr.mxu0 %v1284
    %1921 = vmatpush1.msra.mxu0 %v1283
    %1922 = vmatprep.subr.mxu0 %v1286
    %1923 = vmatpush1.msra.mxu0 %v1285
    %1924 = vmatprep.subr.mxu0 %v1288
    %1925 = vmatpush1.msra.mxu0 %v1287
    %1926 = vmatprep.subr.mxu0 %v1290
    %1927 = vmatpush1.msra.mxu0 %v1289
    %1928 = vmatprep.subr.mxu0 %v1292
    %1929 = vmatpush1.msra.mxu0 %v1291
    %1930 = vmatprep.subr.mxu0 %v1294
    %1931 = vmatpush1.msra.mxu0 %v1293
    %1932 = vmatprep.subr.mxu0 0.0
    %1933 = vmatpush1.msra.mxu0 0.0
    %1934 = vmatprep.subr.mxu0 0.0
    %1935 = vmatpush1.msra.mxu0 0.0
    %1936 = vmatprep.subr.mxu0 0.0
    %1937 = vmatpush1.msra.mxu0 0.0
    %1938 = vmatprep.subr.mxu0 0.0
    %1939 = vmatpush1.msra.mxu0 0.0
    %1940 = vmatprep.subr.mxu0 0.0
    %1941 = vmatpush1.msra.mxu0 0.0
    %1942 = vmatprep.subr.mxu0 0.0
    %1943 = vmatpush1.msra.mxu0 0.0
    %1944 = vmatprep.subr.mxu0 0.0
    %1945 = vmatpush1.msra.mxu0 0.0
    %1946 = vmatprep.subr.mxu0 0.0
    %1947 = vmatpush1.msra.mxu0 0.0
    %1948 = vmatprep.subr.mxu0 0.0
    %1949 = vmatpush1.msra.mxu0 0.0
    %1950 = vmatprep.subr.mxu0 0.0
    %1951 = vmatpush1.msra.mxu0 0.0
    %1952 = vmatprep.subr.mxu0 0.0
    %1953 = vmatpush1.msra.mxu0 0.0
    %1954 = vmatprep.subr.mxu0 0.0
    %1955 = vmatpush1.msra.mxu0 0.0
    %1956 = vmatprep.subr.mxu0 0.0
    %1957 = vmatpush1.msra.mxu0 0.0
    %1958 = vmatprep.subr.mxu0 0.0
    %1959 = vmatpush1.msra.mxu0 0.0
    %1960 = vmatprep.subr.mxu0 0.0
    %1961 = vmatpush1.msra.mxu0 0.0
    %1962 = vmatprep.subr.mxu0 0.0
    %1963 = vmatpush1.msra.mxu0 0.0
    %1964 = vmatprep.subr.mxu0 0.0
    %1965 = vmatpush1.msra.mxu0 0.0
    %1966 = vmatprep.subr.mxu0 0.0
    %1967 = vmatpush1.msra.mxu0 0.0
    %1968 = vmatprep.subr.mxu0 0.0
    %1969 = vmatpush1.msra.mxu0 0.0
    %1970 = vmatprep.subr.mxu0 0.0
    %1971 = vmatpush1.msra.mxu0 0.0
    %1972 = vmatprep.subr.mxu0 0.0
    %1973 = vmatpush1.msra.mxu0 0.0
    %1974 = vmatprep.subr.mxu0 0.0
    %1975 = vmatpush1.msra.mxu0 0.0
    %1976 = vmatprep.subr.mxu0 0.0
    %1977 = vmatpush1.msra.mxu0 0.0
    %1978 = vmatprep.subr.mxu0 0.0
    %1979 = vmatpush1.msra.mxu0 0.0
    %1980 = vmatprep.mubr.f32.mxu0 0.0
    %1981 = vmatmul.mubr.f32.gmra.mrb[0].mxu0 %v1914
    %v1982 = vpop.f32.mrb[0].mxu0
    %v1983 = vadd.f32 %v1476, %v1982
    %v1984 = vpop.f32.mrb[0].mxu0
    %v1985 = vadd.f32 %v1480, %v1984
    %1986 = vdwg.mxu0
    %v1987 = vadd.f32 %v1469, %v1983
    %v1988 = vxor.u32 %v1987, 2147483648
    %v1989 = vmul.f32 %v1988, 1.442695
    %v1990 = vpow.pop %v1989
    %v1991 = vadd.f32 %v1990, 1.0
    %v1992 = vrcp.pop %v1991
    %v1993 = vmul.f32 1.0, %v1992
    %v1994 = vmul.f32 %v1993, %v1985
    %v1995 = vadd.f32 %v1471, %v1994
    %v1996 = vtanh.pop %v1995
    %v1997 = vsub.f32 1.0, %v1993
    %1999 = vrot.lane.b32.xlu0 %v1996, 64
    %v2000 = vpop.permute.xlu0 %1999
    %v2002 = vmul.f32 %v1997, %v2000
    %v2004 = vmul.f32 %v1993, %v1911
    %v2005 = vadd.f32 %v2002, %v2004
    %2007 = vrot.lane.b32.xlu0 %v2005, 64
    %v2008 = vpop.permute.xlu0 %2007
    %2010 = vst.msk [vmem:[#allocation4 + $0x8] sm:$0x3] %vm489, %v2008
    %2011 = vrot.lane.b32.xlu0 %v2005, 32
    %v2012 = vpop.permute.xlu0 %2011
    %2014 = vst.msk [vmem:[#allocation5 + $0x6] sm:$0x3] %vm489, %v2012
    %v2015 = vsel %vm374, %v2008, 0
    %2017 = vmatprep.subr.mxu0 %v1280
    %2018 = vmatpush1.msra.mxu0 %v1279
    %2019 = vmatprep.subr.mxu0 %v1282
    %2020 = vmatpush1.msra.mxu0 %v1281
    %2021 = vmatprep.subr.mxu0 %v1284
    %2022 = vmatpush1.msra.mxu0 %v1283
    %2023 = vmatprep.subr.mxu0 %v1286
    %2024 = vmatpush1.msra.mxu0 %v1285
    %2025 = vmatprep.subr.mxu0 %v1288
    %2026 = vmatpush1.msra.mxu0 %v1287
    %2027 = vmatprep.subr.mxu0 %v1290
    %2028 = vmatpush1.msra.mxu0 %v1289
    %2029 = vmatprep.subr.mxu0 %v1292
    %2030 = vmatpush1.msra.mxu0 %v1291
    %2031 = vmatprep.subr.mxu0 %v1294
    %2032 = vmatpush1.msra.mxu0 %v1293
    %2033 = vmatprep.subr.mxu0 0.0
    %2034 = vmatpush1.msra.mxu0 0.0
    %2035 = vmatprep.subr.mxu0 0.0
    %2036 = vmatpush1.msra.mxu0 0.0
    %2037 = vmatprep.subr.mxu0 0.0
    %2038 = vmatpush1.msra.mxu0 0.0
    %2039 = vmatprep.subr.mxu0 0.0
    %2040 = vmatpush1.msra.mxu0 0.0
    %2041 = vmatprep.subr.mxu0 0.0
    %2042 = vmatpush1.msra.mxu0 0.0
    %2043 = vmatprep.subr.mxu0 0.0
    %2044 = vmatpush1.msra.mxu0 0.0
    %2045 = vmatprep.subr.mxu0 0.0
    %2046 = vmatpush1.msra.mxu0 0.0
    %2047 = vmatprep.subr.mxu0 0.0
    %2048 = vmatpush1.msra.mxu0 0.0
    %2049 = vmatprep.subr.mxu0 0.0
    %2050 = vmatpush1.msra.mxu0 0.0
    %2051 = vmatprep.subr.mxu0 0.0
    %2052 = vmatpush1.msra.mxu0 0.0
    %2053 = vmatprep.subr.mxu0 0.0
    %2054 = vmatpush1.msra.mxu0 0.0
    %2055 = vmatprep.subr.mxu0 0.0
    %2056 = vmatpush1.msra.mxu0 0.0
    %2057 = vmatprep.subr.mxu0 0.0
    %2058 = vmatpush1.msra.mxu0 0.0
    %2059 = vmatprep.subr.mxu0 0.0
    %2060 = vmatpush1.msra.mxu0 0.0
    %2061 = vmatprep.subr.mxu0 0.0
    %2062 = vmatpush1.msra.mxu0 0.0
    %2063 = vmatprep.subr.mxu0 0.0
    %2064 = vmatpush1.msra.mxu0 0.0
    %2065 = vmatprep.subr.mxu0 0.0
    %2066 = vmatpush1.msra.mxu0 0.0
    %2067 = vmatprep.subr.mxu0 0.0
    %2068 = vmatpush1.msra.mxu0 0.0
    %2069 = vmatprep.subr.mxu0 0.0
    %2070 = vmatpush1.msra.mxu0 0.0
    %2071 = vmatprep.subr.mxu0 0.0
    %2072 = vmatpush1.msra.mxu0 0.0
    %2073 = vmatprep.subr.mxu0 0.0
    %2074 = vmatpush1.msra.mxu0 0.0
    %2075 = vmatprep.subr.mxu0 0.0
    %2076 = vmatpush1.msra.mxu0 0.0
    %2077 = vmatprep.subr.mxu0 0.0
    %2078 = vmatpush1.msra.mxu0 0.0
    %2079 = vmatprep.subr.mxu0 0.0
    %2080 = vmatpush1.msra.mxu0 0.0
    %2081 = vmatprep.mubr.f32.mxu0 0.0
    %2082 = vmatmul.mubr.f32.gmra.mrb[0].mxu0 %v2015
    %v2083 = vpop.f32.mrb[0].mxu0
    %v2084 = vadd.f32 %v1476, %v2083
    %v2085 = vpop.f32.mrb[0].mxu0
    %v2086 = vadd.f32 %v1480, %v2085
    %2087 = vdwg.mxu0
    %v2089 = vrot.slane %v2084, 6
    %v2091 = vadd.f32 %v1469, %v2089
    %v2092 = vxor.u32 %v2091, 2147483648
    %v2093 = vmul.f32 %v2092, 1.442695
    %v2094 = vpow.pop %v2093
    %v2095 = vadd.f32 %v2094, 1.0
    %v2096 = vrcp.pop %v2095
    %v2097 = vmul.f32 1.0, %v2096
    %v2099 = vrot.slane %v2086, 6
    %v2101 = vmul.f32 %v2097, %v2099
    %v2102 = vadd.f32 %v1471, %v2101
    %v2103 = vtanh.pop %v2102
    %v2104 = vsub.f32 1.0, %v2097
    %2106 = vrot.lane.b32.xlu0 %v2103, 64
    %v2107 = vpop.permute.xlu0 %2106
    %v2109 = vmul.f32 %v2104, %v2107
    %v2110 = vrot.slane %v2005, 6
    %v2112 = vmul.f32 %v2097, %v2110
    %v2113 = vadd.f32 %v2109, %v2112
    %2115 = vrot.lane.b32.xlu0 %v2113, 64
    %v2116 = vpop.permute.xlu0 %2115
    %2118 = vst.msk [vmem:[#allocation4 + $0x8] sm:$0xc] %vm598, %v2116
    %2119 = vrot.lane.b32.xlu0 %v2113, 32
    %v2120 = vpop.permute.xlu0 %2119
    %2122 = vst.msk [vmem:[#allocation5 + $0x2] sm:$0xc] %vm598, %v2120
    %v2123 = vrot.slane %v2113, 2
    %2124 = vrot.lane.b32.xlu0 %v2123, 64
    %v2125 = vpop.permute.xlu0 %2124
    %v2126 = vsel %vm374, %v2125, 0
    %2128 = vmatprep.subr.mxu0 %v1280
    %2129 = vmatpush1.msra.mxu0 %v1279
    %2130 = vmatprep.subr.mxu0 %v1282
    %2131 = vmatpush1.msra.mxu0 %v1281
    %2132 = vmatprep.subr.mxu0 %v1284
    %2133 = vmatpush1.msra.mxu0 %v1283
    %2134 = vmatprep.subr.mxu0 %v1286
    %2135 = vmatpush1.msra.mxu0 %v1285
    %2136 = vmatprep.subr.mxu0 %v1288
    %2137 = vmatpush1.msra.mxu0 %v1287
    %2138 = vmatprep.subr.mxu0 %v1290
    %2139 = vmatpush1.msra.mxu0 %v1289
    %2140 = vmatprep.subr.mxu0 %v1292
    %2141 = vmatpush1.msra.mxu0 %v1291
    %2142 = vmatprep.subr.mxu0 %v1294
    %2143 = vmatpush1.msra.mxu0 %v1293
    %2144 = vmatprep.subr.mxu0 0.0
    %2145 = vmatpush1.msra.mxu0 0.0
    %2146 = vmatprep.subr.mxu0 0.0
    %2147 = vmatpush1.msra.mxu0 0.0
    %2148 = vmatprep.subr.mxu0 0.0
    %2149 = vmatpush1.msra.mxu0 0.0
    %2150 = vmatprep.subr.mxu0 0.0
    %2151 = vmatpush1.msra.mxu0 0.0
    %2152 = vmatprep.subr.mxu0 0.0
    %2153 = vmatpush1.msra.mxu0 0.0
    %2154 = vmatprep.subr.mxu0 0.0
    %2155 = vmatpush1.msra.mxu0 0.0
    %2156 = vmatprep.subr.mxu0 0.0
    %2157 = vmatpush1.msra.mxu0 0.0
    %2158 = vmatprep.subr.mxu0 0.0
    %2159 = vmatpush1.msra.mxu0 0.0
    %2160 = vmatprep.subr.mxu0 0.0
    %2161 = vmatpush1.msra.mxu0 0.0
    %2162 = vmatprep.subr.mxu0 0.0
    %2163 = vmatpush1.msra.mxu0 0.0
    %2164 = vmatprep.subr.mxu0 0.0
    %2165 = vmatpush1.msra.mxu0 0.0
    %2166 = vmatprep.subr.mxu0 0.0
    %2167 = vmatpush1.msra.mxu0 0.0
    %2168 = vmatprep.subr.mxu0 0.0
    %2169 = vmatpush1.msra.mxu0 0.0
    %2170 = vmatprep.subr.mxu0 0.0
    %2171 = vmatpush1.msra.mxu0 0.0
    %2172 = vmatprep.subr.mxu0 0.0
    %2173 = vmatpush1.msra.mxu0 0.0
    %2174 = vmatprep.subr.mxu0 0.0
    %2175 = vmatpush1.msra.mxu0 0.0
    %2176 = vmatprep.subr.mxu0 0.0
    %2177 = vmatpush1.msra.mxu0 0.0
    %2178 = vmatprep.subr.mxu0 0.0
    %2179 = vmatpush1.msra.mxu0 0.0
    %2180 = vmatprep.subr.mxu0 0.0
    %2181 = vmatpush1.msra.mxu0 0.0
    %2182 = vmatprep.subr.mxu0 0.0
    %2183 = vmatpush1.msra.mxu0 0.0
    %2184 = vmatprep.subr.mxu0 0.0
    %2185 = vmatpush1.msra.mxu0 0.0
    %2186 = vmatprep.subr.mxu0 0.0
    %2187 = vmatpush1.msra.mxu0 0.0
    %2188 = vmatprep.subr.mxu0 0.0
    %2189 = vmatpush1.msra.mxu0 0.0
    %2190 = vmatprep.subr.mxu0 0.0
    %2191 = vmatpush1.msra.mxu0 0.0
    %2192 = vmatprep.mubr.f32.mxu0 0.0
    %2193 = vmatmul.mubr.f32.gmra.mrb[0].mxu0 %v2126
    %v2194 = vpop.f32.mrb[0].mxu0
    %v2195 = vadd.f32 %v1476, %v2194
    %v2196 = vpop.f32.mrb[0].mxu0
    %v2197 = vadd.f32 %v1480, %v2196
    %2198 = vdwg.mxu0
    %v2200 = vrot.slane %v2195, 4
    %v2202 = vadd.f32 %v1469, %v2200
    %v2203 = vxor.u32 %v2202, 2147483648
    %v2204 = vmul.f32 %v2203, 1.442695
    %v2205 = vpow.pop %v2204
    %v2206 = vadd.f32 %v2205, 1.0
    %v2207 = vrcp.pop %v2206
    %v2208 = vmul.f32 1.0, %v2207
    %v2210 = vrot.slane %v2197, 4
    %v2212 = vmul.f32 %v2208, %v2210
    %v2213 = vadd.f32 %v1471, %v2212
    %v2214 = vtanh.pop %v2213
    %v2215 = vsub.f32 1.0, %v2208
    %2217 = vrot.lane.b32.xlu0 %v2214, 64
    %v2218 = vpop.permute.xlu0 %2217
    %v2220 = vmul.f32 %v2215, %v2218
    %v2221 = vrot.slane %v2113, 6
    %v2223 = vmul.f32 %v2208, %v2221
    %v2224 = vadd.f32 %v2220, %v2223
    %2226 = vrot.lane.b32.xlu0 %v2224, 64
    %v2227 = vpop.permute.xlu0 %2226
    %2229 = vst.msk [vmem:[#allocation4 + $0x8] sm:$0x30] %vm710, %v2227
    %2230 = vrot.lane.b32.xlu0 %v2224, 32
    %v2231 = vpop.permute.xlu0 %2230
    %2233 = vst.msk [vmem:[#allocation5 - $0x2] sm:$0x30] %vm710, %v2231
    %v2234 = vrot.slane %v2224, 4
    %2235 = vrot.lane.b32.xlu0 %v2234, 64
    %v2236 = vpop.permute.xlu0 %2235
    %v2237 = vsel %vm374, %v2236, 0
    %2239 = vmatprep.subr.mxu0 %v1280
    %2240 = vmatpush1.msra.mxu0 %v1279
    %2241 = vmatprep.subr.mxu0 %v1282
    %2242 = vmatpush1.msra.mxu0 %v1281
    %2243 = vmatprep.subr.mxu0 %v1284
    %2244 = vmatpush1.msra.mxu0 %v1283
    %2245 = vmatprep.subr.mxu0 %v1286
    %2246 = vmatpush1.msra.mxu0 %v1285
    %2247 = vmatprep.subr.mxu0 %v1288
    %2248 = vmatpush1.msra.mxu0 %v1287
    %2249 = vmatprep.subr.mxu0 %v1290
    %2250 = vmatpush1.msra.mxu0 %v1289
    %2251 = vmatprep.subr.mxu0 %v1292
    %2252 = vmatpush1.msra.mxu0 %v1291
    %2253 = vmatprep.subr.mxu0 %v1294
    %2254 = vmatpush1.msra.mxu0 %v1293
    %2255 = vmatprep.subr.mxu0 0.0
    %2256 = vmatpush1.msra.mxu0 0.0
    %2257 = vmatprep.subr.mxu0 0.0
    %2258 = vmatpush1.msra.mxu0 0.0
    %2259 = vmatprep.subr.mxu0 0.0
    %2260 = vmatpush1.msra.mxu0 0.0
    %2261 = vmatprep.subr.mxu0 0.0
    %2262 = vmatpush1.msra.mxu0 0.0
    %2263 = vmatprep.subr.mxu0 0.0
    %2264 = vmatpush1.msra.mxu0 0.0
    %2265 = vmatprep.subr.mxu0 0.0
    %2266 = vmatpush1.msra.mxu0 0.0
    %2267 = vmatprep.subr.mxu0 0.0
    %2268 = vmatpush1.msra.mxu0 0.0
    %2269 = vmatprep.subr.mxu0 0.0
    %2270 = vmatpush1.msra.mxu0 0.0
    %2271 = vmatprep.subr.mxu0 0.0
    %2272 = vmatpush1.msra.mxu0 0.0
    %2273 = vmatprep.subr.mxu0 0.0
    %2274 = vmatpush1.msra.mxu0 0.0
    %2275 = vmatprep.subr.mxu0 0.0
    %2276 = vmatpush1.msra.mxu0 0.0
    %2277 = vmatprep.subr.mxu0 0.0
    %2278 = vmatpush1.msra.mxu0 0.0
    %2279 = vmatprep.subr.mxu0 0.0
    %2280 = vmatpush1.msra.mxu0 0.0
    %2281 = vmatprep.subr.mxu0 0.0
    %2282 = vmatpush1.msra.mxu0 0.0
    %2283 = vmatprep.subr.mxu0 0.0
    %2284 = vmatpush1.msra.mxu0 0.0
    %2285 = vmatprep.subr.mxu0 0.0
    %2286 = vmatpush1.msra.mxu0 0.0
    %2287 = vmatprep.subr.mxu0 0.0
    %2288 = vmatpush1.msra.mxu0 0.0
    %2289 = vmatprep.subr.mxu0 0.0
    %2290 = vmatpush1.msra.mxu0 0.0
    %2291 = vmatprep.subr.mxu0 0.0
    %2292 = vmatpush1.msra.mxu0 0.0
    %2293 = vmatprep.subr.mxu0 0.0
    %2294 = vmatpush1.msra.mxu0 0.0
    %2295 = vmatprep.subr.mxu0 0.0
    %2296 = vmatpush1.msra.mxu0 0.0
    %2297 = vmatprep.subr.mxu0 0.0
    %2298 = vmatpush1.msra.mxu0 0.0
    %2299 = vmatprep.subr.mxu0 0.0
    %2300 = vmatpush1.msra.mxu0 0.0
    %2301 = vmatprep.subr.mxu0 0.0
    %2302 = vmatpush1.msra.mxu0 0.0
    %2303 = vmatprep.mubr.f32.mxu0 0.0
    %2304 = vmatmul.mubr.f32.gmra.mrb[0].mxu0 %v2237
    %v2305 = vpop.f32.mrb[0].mxu0
    %v2306 = vadd.f32 %v1476, %v2305
    %v2307 = vpop.f32.mrb[0].mxu0
    %v2308 = vadd.f32 %v1480, %v2307
    %2309 = vdwg.mxu0
    %v2311 = vrot.slane %v2306, 2
    %v2313 = vadd.f32 %v1469, %v2311
    %v2314 = vxor.u32 %v2313, 2147483648
    %v2315 = vmul.f32 %v2314, 1.442695
    %v2316 = vpow.pop %v2315
    %v2317 = vadd.f32 %v2316, 1.0
    %v2318 = vrcp.pop %v2317
    %v2319 = vmul.f32 1.0, %v2318
    %v2321 = vrot.slane %v2308, 2
    %v2323 = vmul.f32 %v2319, %v2321
    %v2324 = vadd.f32 %v1471, %v2323
    %v2325 = vtanh.pop %v2324
    %v2326 = vsub.f32 1.0, %v2319
    %2328 = vrot.lane.b32.xlu0 %v2325, 64
    %v2329 = vpop.permute.xlu0 %2328
    %v2331 = vmul.f32 %v2326, %v2329
    %v2332 = vrot.slane %v2224, 6
    %v2334 = vmul.f32 %v2319, %v2332
    %v2335 = vadd.f32 %v2331, %v2334
    %2337 = vrot.lane.b32.xlu0 %v2335, 64
    %v2338 = vpop.permute.xlu0 %2337
    %2340 = vst.msk [vmem:[#allocation4 + $0x8] sm:$0xc0] %vm822, %v2338
    %2341 = vrot.lane.b32.xlu0 %v2335, 32
    %v2342 = vpop.permute.xlu0 %2341
    %2344 = vst.msk [vmem:[#allocation5 - $0x6] sm:$0xc0] %vm822, %v2342
    %v2345 = vld [vmem:[%s9] sm:$0xff]
    %v2346 = vld [vmem:[%s9 + $0x8] sm:$0xff]
    %v2347 = vld [vmem:[%s9 + $0x10] sm:$0xff]
    %v2348 = vld [vmem:[%s9 + $0x18] sm:$0xff]
    %v2349 = vld [vmem:[#allocation18] sm:$0x1]
    %v2350 = vld [vmem:[#allocation20] sm:$0xff]
    %v2351 = vld [vmem:[#allocation20 + $0x8] sm:$0xff]
    %v2352 = vld [vmem:[#allocation20 + $0x10] sm:$0xff]
    %v2353 = vld [vmem:[#allocation20 + $0x18] sm:$0xff]
    %v2354 = vld [vmem:[#allocation21] sm:$0x1]
    %v2355 = vld [vmem:[%s13] sm:$0xff]
    %v2356 = vld [vmem:[%s13 + $0x8] sm:$0xff]
    %v2357 = vld [vmem:[%s13 + $0x10] sm:$0xff]
    %v2358 = vld [vmem:[%s13 + $0x18] sm:$0xff]
    %v2359 = vld [vmem:[%s13 + $0x20] sm:$0xff]
    %v2360 = vld [vmem:[%s13 + $0x28] sm:$0xff]
    %v2361 = vld [vmem:[%s13 + $0x30] sm:$0xff]
    %v2362 = vld [vmem:[%s13 + $0x38] sm:$0xff]
    %v2363 = vld [vmem:[#allocation23] sm:$0x1]
    %v2364 = vld [vmem:[#allocation4] sm:$0x1]
    %v2365 = vld [vmem:[#allocation4 + $0x2] sm:$0x1]
    %v2366 = vld [vmem:[#allocation4 + $0x4] sm:$0x1]
    %v2367 = vld [vmem:[#allocation4 + $0x6] sm:$0x1]
    %v2368 = vld [vmem:[#allocation4 + $0x8] sm:$0x1]
    %v2369 = vld [vmem:[#allocation4 + $0xa] sm:$0x1]
    %v2370 = vld [vmem:[#allocation4 + $0xc] sm:$0x1]
    %v2371 = vld [vmem:[#allocation4 + $0xe] sm:$0x1]
    %v2373 = vrot.slane %v2365, 7
    %v2376 = vrot.slane %v2366, 6
    %v2379 = vrot.slane %v2367, 5
    %v2382 = vrot.slane %v2368, 4
    %v2385 = vrot.slane %v2369, 3
    %v2388 = vrot.slane %v2370, 2
    %v2391 = vrot.slane %v2371, 1
    %vm2393 = vcmask 1040384
    %v2394 = vsel %vm2393, %v2364, %v2373
    %v2395 = vsel %vm328, %v2394, %v2376
    %vm2396 = vcmask 1042432
    %v2397 = vsel %vm2396, %v2395, %v2379
    %v2398 = vsel %vm331, %v2397, %v2382
    %vm2399 = vcmask 1044480
    %v2400 = vsel %vm2399, %v2398, %v2385
    %v2401 = vsel %vm334, %v2400, %v2388
    %vm2402 = vcmask 1046528
    %v2403 = vsel %vm2402, %v2401, %v2391
    %v2404 = vld [vmem:[#allocation5] sm:$0x1]
    %v2405 = vld [vmem:[#allocation5 + $0x2] sm:$0x1]
    %v2406 = vld [vmem:[#allocation5 + $0x4] sm:$0x1]
    %v2407 = vld [vmem:[#allocation5 + $0x6] sm:$0x1]
    %v2408 = vld [vmem:[#allocation5 + $0x8] sm:$0x1]
    %v2409 = vld [vmem:[#allocation5 + $0xa] sm:$0x1]
    %v2410 = vld [vmem:[#allocation5 + $0xc] sm:$0x1]
    %v2411 = vld [vmem:[#allocation5 + $0xe] sm:$0x1]
    %v2413 = vrot.slane %v2405, 7
    %v2416 = vrot.slane %v2406, 6
    %v2419 = vrot.slane %v2407, 5
    %v2422 = vrot.slane %v2408, 4
    %v2425 = vrot.slane %v2409, 3
    %v2428 = vrot.slane %v2410, 2
    %v2431 = vrot.slane %v2411, 1
    %v2433 = vsel %vm2393, %v2404, %v2413
    %v2434 = vsel %vm328, %v2433, %v2416
    %v2435 = vsel %vm2396, %v2434, %v2419
    %v2436 = vsel %vm331, %v2435, %v2422
    %v2437 = vsel %vm2399, %v2436, %v2425
    %v2438 = vsel %vm334, %v2437, %v2428
    %v2439 = vsel %vm2402, %v2438, %v2431
    %v2441 = vlaneseq
    %v2442 = vshrl.u32 %v2441, 7
    %v2443 = vsub.s32 0, %v2442
    %v2444 = vrot.slane %v2349, %v2443
    %v2447 = vsel %vm371, %v2403, 0
    %2449 = vmatprep.subr.mxu0 0.0
    %2450 = vmatpush1.msra.mxu0 %v2345
    %2451 = vmatprep.subr.mxu0 0.0
    %2452 = vmatpush1.msra.mxu0 %v2346
    %2453 = vmatprep.subr.mxu0 0.0
    %2454 = vmatpush1.msra.mxu0 %v2347
    %2455 = vmatprep.subr.mxu0 0.0
    %2456 = vmatpush1.msra.mxu0 %v2348
    %2457 = vmatprep.subr.mxu0 0.0
    %2458 = vmatpush1.msra.mxu0 0.0
    %2459 = vmatprep.subr.mxu0 0.0
    %2460 = vmatpush1.msra.mxu0 0.0
    %2461 = vmatprep.subr.mxu0 0.0
    %2462 = vmatpush1.msra.mxu0 0.0
    %2463 = vmatprep.subr.mxu0 0.0
    %2464 = vmatpush1.msra.mxu0 0.0
    %2465 = vmatprep.subr.mxu0 0.0
    %2466 = vmatpush1.msra.mxu0 0.0
    %2467 = vmatprep.subr.mxu0 0.0
    %2468 = vmatpush1.msra.mxu0 0.0
    %2469 = vmatprep.subr.mxu0 0.0
    %2470 = vmatpush1.msra.mxu0 0.0
    %2471 = vmatprep.subr.mxu0 0.0
    %2472 = vmatpush1.msra.mxu0 0.0
    %2473 = vmatprep.subr.mxu0 0.0
    %2474 = vmatpush1.msra.mxu0 0.0
    %2475 = vmatprep.subr.mxu0 0.0
    %2476 = vmatpush1.msra.mxu0 0.0
    %2477 = vmatprep.subr.mxu0 0.0
    %2478 = vmatpush1.msra.mxu0 0.0
    %2479 = vmatprep.subr.mxu0 0.0
    %2480 = vmatpush1.msra.mxu0 0.0
    %2481 = vmatprep.subr.mxu0 0.0
    %2482 = vmatpush1.msra.mxu0 0.0
    %2483 = vmatprep.subr.mxu0 0.0
    %2484 = vmatpush1.msra.mxu0 0.0
    %2485 = vmatprep.subr.mxu0 0.0
    %2486 = vmatpush1.msra.mxu0 0.0
    %2487 = vmatprep.subr.mxu0 0.0
    %2488 = vmatpush1.msra.mxu0 0.0
    %2489 = vmatprep.subr.mxu0 0.0
    %2490 = vmatpush1.msra.mxu0 0.0
    %2491 = vmatprep.subr.mxu0 0.0
    %2492 = vmatpush1.msra.mxu0 0.0
    %2493 = vmatprep.subr.mxu0 0.0
    %2494 = vmatpush1.msra.mxu0 0.0
    %2495 = vmatprep.subr.mxu0 0.0
    %2496 = vmatpush1.msra.mxu0 0.0
    %2497 = vmatprep.subr.mxu0 0.0
    %2498 = vmatpush1.msra.mxu0 0.0
    %2499 = vmatprep.subr.mxu0 0.0
    %2500 = vmatpush1.msra.mxu0 0.0
    %2501 = vmatprep.subr.mxu0 0.0
    %2502 = vmatpush1.msra.mxu0 0.0
    %2503 = vmatprep.subr.mxu0 0.0
    %2504 = vmatpush1.msra.mxu0 0.0
    %2505 = vmatprep.subr.mxu0 0.0
    %2506 = vmatpush1.msra.mxu0 0.0
    %2507 = vmatprep.subr.mxu0 0.0
    %2508 = vmatpush1.msra.mxu0 0.0
    %2509 = vmatprep.subr.mxu0 0.0
    %2510 = vmatpush1.msra.mxu0 0.0
    %2511 = vmatprep.subr.mxu0 0.0
    %2512 = vmatpush1.msra.mxu0 0.0
    %2513 = vmatprep.mubr.f32.mxu0 0.0
    %2514 = vmatmul.mubr.f32.gmra.mrb[0].mxu0 %v2447
    %v2515 = vpop.f32.mrb[0].mxu0
    %v2516 = vadd.f32 %v2444, %v2515
    %v2517 = vpop.f32.mrb[0].mxu0
    %2518 = vdwg.mxu0
    %v2520 = vlaneseq
    %v2521 = vshrl.u32 %v2520, 7
    %v2522 = vsub.s32 0, %v2521
    %v2523 = vrot.slane %v2354, %v2522
    %v2526 = vsel %vm371, %v2439, 0
    %2528 = vmatprep.subr.mxu0 0.0
    %2529 = vmatpush1.msra.mxu0 %v2350
    %2530 = vmatprep.subr.mxu0 0.0
    %2531 = vmatpush1.msra.mxu0 %v2351
    %2532 = vmatprep.subr.mxu0 0.0
    %2533 = vmatpush1.msra.mxu0 %v2352
    %2534 = vmatprep.subr.mxu0 0.0
    %2535 = vmatpush1.msra.mxu0 %v2353
    %2536 = vmatprep.subr.mxu0 0.0
    %2537 = vmatpush1.msra.mxu0 0.0
    %2538 = vmatprep.subr.mxu0 0.0
    %2539 = vmatpush1.msra.mxu0 0.0
    %2540 = vmatprep.subr.mxu0 0.0
    %2541 = vmatpush1.msra.mxu0 0.0
    %2542 = vmatprep.subr.mxu0 0.0
    %2543 = vmatpush1.msra.mxu0 0.0
    %2544 = vmatprep.subr.mxu0 0.0
    %2545 = vmatpush1.msra.mxu0 0.0
    %2546 = vmatprep.subr.mxu0 0.0
    %2547 = vmatpush1.msra.mxu0 0.0
    %2548 = vmatprep.subr.mxu0 0.0
    %2549 = vmatpush1.msra.mxu0 0.0
    %2550 = vmatprep.subr.mxu0 0.0
    %2551 = vmatpush1.msra.mxu0 0.0
    %2552 = vmatprep.subr.mxu0 0.0
    %2553 = vmatpush1.msra.mxu0 0.0
    %2554 = vmatprep.subr.mxu0 0.0
    %2555 = vmatpush1.msra.mxu0 0.0
    %2556 = vmatprep.subr.mxu0 0.0
    %2557 = vmatpush1.msra.mxu0 0.0
    %2558 = vmatprep.subr.mxu0 0.0
    %2559 = vmatpush1.msra.mxu0 0.0
    %2560 = vmatprep.subr.mxu0 0.0
    %2561 = vmatpush1.msra.mxu0 0.0
    %2562 = vmatprep.subr.mxu0 0.0
    %2563 = vmatpush1.msra.mxu0 0.0
    %2564 = vmatprep.subr.mxu0 0.0
    %2565 = vmatpush1.msra.mxu0 0.0
    %2566 = vmatprep.subr.mxu0 0.0
    %2567 = vmatpush1.msra.mxu0 0.0
    %2568 = vmatprep.subr.mxu0 0.0
    %2569 = vmatpush1.msra.mxu0 0.0
    %2570 = vmatprep.subr.mxu0 0.0
    %2571 = vmatpush1.msra.mxu0 0.0
    %2572 = vmatprep.subr.mxu0 0.0
    %2573 = vmatpush1.msra.mxu0 0.0
    %2574 = vmatprep.subr.mxu0 0.0
    %2575 = vmatpush1.msra.mxu0 0.0
    %2576 = vmatprep.subr.mxu0 0.0
    %2577 = vmatpush1.msra.mxu0 0.0
    %2578 = vmatprep.subr.mxu0 0.0
    %2579 = vmatpush1.msra.mxu0 0.0
    %2580 = vmatprep.subr.mxu0 0.0
    %2581 = vmatpush1.msra.mxu0 0.0
    %2582 = vmatprep.subr.mxu0 0.0
    %2583 = vmatpush1.msra.mxu0 0.0
    %2584 = vmatprep.subr.mxu0 0.0
    %2585 = vmatpush1.msra.mxu0 0.0
    %2586 = vmatprep.subr.mxu0 0.0
    %2587 = vmatpush1.msra.mxu0 0.0
    %2588 = vmatprep.subr.mxu0 0.0
    %2589 = vmatpush1.msra.mxu0 0.0
    %2590 = vmatprep.subr.mxu0 0.0
    %2591 = vmatpush1.msra.mxu0 0.0
    %2592 = vmatprep.mubr.f32.mxu0 0.0
    %2593 = vmatmul.mubr.f32.gmra.mrb[0].mxu0 %v2526
    %v2594 = vpop.f32.mrb[0].mxu0
    %v2595 = vadd.f32 %v2523, %v2594
    %v2596 = vpop.f32.mrb[0].mxu0
    %2597 = vdwg.mxu0
    %v2599 = vsel %vm371, %v2516, 0
    %2601 = vmatprep.subr.mxu0 0.0
    %2602 = vmatpush1.xpose.msra.mxu0 %v2599
    %2603 = vmatprep.subr.mxu0 0.0
    %2604 = vmatpush1.xpose.msra.mxu0 0.0
    %2605 = vmatprep.subr.mxu0 0.0
    %2606 = vmatpush1.xpose.msra.mxu0 0.0
    %2607 = vmatprep.subr.mxu0 0.0
    %2608 = vmatpush1.xpose.msra.mxu0 0.0
    %2609 = vmatprep.subr.mxu0 0.0
    %2610 = vmatpush1.xpose.msra.mxu0 0.0
    %2611 = vmatprep.subr.mxu0 0.0
    %2612 = vmatpush1.xpose.msra.mxu0 0.0
    %2613 = vmatprep.subr.mxu0 0.0
    %2614 = vmatpush1.xpose.msra.mxu0 0.0
    %2615 = vmatprep.subr.mxu0 0.0
    %2616 = vmatpush1.xpose.msra.mxu0 0.0
    %2617 = vmatprep.subr.mxu0 0.0
    %2618 = vmatpush1.xpose.msra.mxu0 0.0
    %2619 = vmatprep.subr.mxu0 0.0
    %2620 = vmatpush1.xpose.msra.mxu0 0.0
    %2621 = vmatprep.subr.mxu0 0.0
    %2622 = vmatpush1.xpose.msra.mxu0 0.0
    %2623 = vmatprep.subr.mxu0 0.0
    %2624 = vmatpush1.xpose.msra.mxu0 0.0
    %2625 = vmatprep.subr.mxu0 0.0
    %2626 = vmatpush1.xpose.msra.mxu0 0.0
    %2627 = vmatprep.subr.mxu0 0.0
    %2628 = vmatpush1.xpose.msra.mxu0 0.0
    %2629 = vmatprep.subr.mxu0 0.0
    %2630 = vmatpush1.xpose.msra.mxu0 0.0
    %2631 = vmatprep.subr.mxu0 0.0
    %2632 = vmatpush1.xpose.msra.mxu0 0.0
    %2633 = vmatprep.subr.mxu0 0.0
    %2634 = vmatpush1.xpose.msra.mxu0 0.0
    %2635 = vmatprep.subr.mxu0 0.0
    %2636 = vmatpush1.xpose.msra.mxu0 0.0
    %2637 = vmatprep.subr.mxu0 0.0
    %2638 = vmatpush1.xpose.msra.mxu0 0.0
    %2639 = vmatprep.subr.mxu0 0.0
    %2640 = vmatpush1.xpose.msra.mxu0 0.0
    %2641 = vmatprep.subr.mxu0 0.0
    %2642 = vmatpush1.xpose.msra.mxu0 0.0
    %2643 = vmatprep.subr.mxu0 0.0
    %2644 = vmatpush1.xpose.msra.mxu0 0.0
    %2645 = vmatprep.subr.mxu0 0.0
    %2646 = vmatpush1.xpose.msra.mxu0 0.0
    %2647 = vmatprep.subr.mxu0 0.0
    %2648 = vmatpush1.xpose.msra.mxu0 0.0
    %2649 = vmatprep.subr.mxu0 0.0
    %2650 = vmatpush1.xpose.msra.mxu0 0.0
    %2651 = vmatprep.subr.mxu0 0.0
    %2652 = vmatpush1.xpose.msra.mxu0 0.0
    %2653 = vmatprep.subr.mxu0 0.0
    %2654 = vmatpush1.xpose.msra.mxu0 0.0
    %2655 = vmatprep.subr.mxu0 0.0
    %2656 = vmatpush1.xpose.msra.mxu0 0.0
    %2657 = vmatprep.subr.mxu0 0.0
    %2658 = vmatpush1.xpose.msra.mxu0 0.0
    %2659 = vmatprep.subr.mxu0 0.0
    %2660 = vmatpush1.xpose.msra.mxu0 0.0
    %2661 = vmatprep.subr.mxu0 0.0
    %2662 = vmatpush1.xpose.msra.mxu0 0.0
    %2663 = vmatprep.subr.mxu0 0.0
    %2664 = vmatpush1.xpose.msra.mxu0 0.0
    %2665 = vmatprep.mubr.f32.mxu0 0.0
    %2666 = vmatmul.mubr.f32.gmra.mrb[0].mxu0 %v2599
    %v2667 = vpop.f32.mrb[0].mxu0
    %v2668 = vadd.f32 0.0, %v2667
    %v2669 = vpop.f32.mrb[0].mxu0
    %2670 = vdwg.mxu0
    %vm2671 = vcmask 64512
    %v2672 = vsel %vm2671, %v2668, -inf
    %v2673 = vrot.slane %v2672, 4
    %v2674 = vmax.f32 %v2672, %v2673
    %v2675 = vrot.slane %v2674, 2
    %v2676 = vmax.f32 %v2674, %v2675
    %v2677 = vrot.slane %v2676, 1
    %v2678 = vmax.f32 %v2676, %v2677
    %v2679 = vsub.f32 %v2668, %v2678
    %v2680 = vmul.f32 %v2679, 1.442695
    %v2681 = vpow.pop %v2680
    %v2682 = vsel %vm2671, %v2681, 0.0
    %v2683 = vrot.slane %v2682, 4
    %v2684 = vadd.f32 %v2682, %v2683
    %v2685 = vrot.slane %v2684, 2
    %v2686 = vadd.f32 %v2684, %v2685
    %v2687 = vrot.slane %v2686, 1
    %v2688 = vadd.f32 %v2686, %v2687
    %v2689 = vrcp.pop %v2688
    %v2690 = vmul.f32 %v2681, %v2689
    %v2692 = vsel %vm371, %v2595, 0
    %2694 = vmatprep.subr.mxu0 0.0
    %2695 = vmatpush1.xpose.msra.mxu0 %v2692
    %2696 = vmatprep.subr.mxu0 0.0
    %2697 = vmatpush1.xpose.msra.mxu0 0.0
    %2698 = vmatprep.subr.mxu0 0.0
    %2699 = vmatpush1.xpose.msra.mxu0 0.0
    %2700 = vmatprep.subr.mxu0 0.0
    %2701 = vmatpush1.xpose.msra.mxu0 0.0
    %2702 = vmatprep.subr.mxu0 0.0
    %2703 = vmatpush1.xpose.msra.mxu0 0.0
    %2704 = vmatprep.subr.mxu0 0.0
    %2705 = vmatpush1.xpose.msra.mxu0 0.0
    %2706 = vmatprep.subr.mxu0 0.0
    %2707 = vmatpush1.xpose.msra.mxu0 0.0
    %2708 = vmatprep.subr.mxu0 0.0
    %2709 = vmatpush1.xpose.msra.mxu0 0.0
    %2710 = vmatprep.subr.mxu0 0.0
    %2711 = vmatpush1.xpose.msra.mxu0 0.0
    %2712 = vmatprep.subr.mxu0 0.0
    %2713 = vmatpush1.xpose.msra.mxu0 0.0
    %2714 = vmatprep.subr.mxu0 0.0
    %2715 = vmatpush1.xpose.msra.mxu0 0.0
    %2716 = vmatprep.subr.mxu0 0.0
    %2717 = vmatpush1.xpose.msra.mxu0 0.0
    %2718 = vmatprep.subr.mxu0 0.0
    %2719 = vmatpush1.xpose.msra.mxu0 0.0
    %2720 = vmatprep.subr.mxu0 0.0
    %2721 = vmatpush1.xpose.msra.mxu0 0.0
    %2722 = vmatprep.subr.mxu0 0.0
    %2723 = vmatpush1.xpose.msra.mxu0 0.0
    %2724 = vmatprep.subr.mxu0 0.0
    %2725 = vmatpush1.xpose.msra.mxu0 0.0
    %2726 = vmatprep.subr.mxu0 0.0
    %2727 = vmatpush1.xpose.msra.mxu0 0.0
    %2728 = vmatprep.subr.mxu0 0.0
    %2729 = vmatpush1.xpose.msra.mxu0 0.0
    %2730 = vmatprep.subr.mxu0 0.0
    %2731 = vmatpush1.xpose.msra.mxu0 0.0
    %2732 = vmatprep.subr.mxu0 0.0
    %2733 = vmatpush1.xpose.msra.mxu0 0.0
    %2734 = vmatprep.subr.mxu0 0.0
    %2735 = vmatpush1.xpose.msra.mxu0 0.0
    %2736 = vmatprep.subr.mxu0 0.0
    %2737 = vmatpush1.xpose.msra.mxu0 0.0
    %2738 = vmatprep.subr.mxu0 0.0
    %2739 = vmatpush1.xpose.msra.mxu0 0.0
    %2740 = vmatprep.subr.mxu0 0.0
    %2741 = vmatpush1.xpose.msra.mxu0 0.0
    %2742 = vmatprep.subr.mxu0 0.0
    %2743 = vmatpush1.xpose.msra.mxu0 0.0
    %2744 = vmatprep.subr.mxu0 0.0
    %2745 = vmatpush1.xpose.msra.mxu0 0.0
    %2746 = vmatprep.subr.mxu0 0.0
    %2747 = vmatpush1.xpose.msra.mxu0 0.0
    %2748 = vmatprep.subr.mxu0 0.0
    %2749 = vmatpush1.xpose.msra.mxu0 0.0
    %2750 = vmatprep.subr.mxu0 0.0
    %2751 = vmatpush1.xpose.msra.mxu0 0.0
    %2752 = vmatprep.subr.mxu0 0.0
    %2753 = vmatpush1.xpose.msra.mxu0 0.0
    %2754 = vmatprep.subr.mxu0 0.0
    %2755 = vmatpush1.xpose.msra.mxu0 0.0
    %2756 = vmatprep.subr.mxu0 0.0
    %2757 = vmatpush1.xpose.msra.mxu0 0.0
    %2758 = vmatprep.mubr.f32.mxu0 0.0
    %2759 = vmatmul.mubr.f32.gmra.mrb[0].mxu0 %v2692
    %v2760 = vpop.f32.mrb[0].mxu0
    %v2761 = vadd.f32 0.0, %v2760
    %v2762 = vpop.f32.mrb[0].mxu0
    %2763 = vdwg.mxu0
    %v2764 = vsel %vm2671, %v2761, -inf
    %v2765 = vrot.slane %v2764, 4
    %v2766 = vmax.f32 %v2764, %v2765
    %v2767 = vrot.slane %v2766, 2
    %v2768 = vmax.f32 %v2766, %v2767
    %v2769 = vrot.slane %v2768, 1
    %v2770 = vmax.f32 %v2768, %v2769
    %v2771 = vsub.f32 %v2761, %v2770
    %v2772 = vmul.f32 %v2771, 1.442695
    %v2773 = vpow.pop %v2772
    %v2774 = vsel %vm2671, %v2773, 0.0
    %v2775 = vrot.slane %v2774, 4
    %v2776 = vadd.f32 %v2774, %v2775
    %v2777 = vrot.slane %v2776, 2
    %v2778 = vadd.f32 %v2776, %v2777
    %v2779 = vrot.slane %v2778, 1
    %v2780 = vadd.f32 %v2778, %v2779
    %v2781 = vrcp.pop %v2780
    %v2782 = vmul.f32 %v2773, %v2781
    %v2784 = vsel %vm2671, %v2690, 0
    %2786 = vmatprep.subr.mxu0 0.0
    %2787 = vmatpush1.msra.mxu0 %v2516
    %2788 = vmatprep.subr.mxu0 0.0
    %2789 = vmatpush1.msra.mxu0 0.0
    %2790 = vmatprep.subr.mxu0 0.0
    %2791 = vmatpush1.msra.mxu0 0.0
    %2792 = vmatprep.subr.mxu0 0.0
    %2793 = vmatpush1.msra.mxu0 0.0
    %2794 = vmatprep.subr.mxu0 0.0
    %2795 = vmatpush1.msra.mxu0 0.0
    %2796 = vmatprep.subr.mxu0 0.0
    %2797 = vmatpush1.msra.mxu0 0.0
    %2798 = vmatprep.subr.mxu0 0.0
    %2799 = vmatpush1.msra.mxu0 0.0
    %2800 = vmatprep.subr.mxu0 0.0
    %2801 = vmatpush1.msra.mxu0 0.0
    %2802 = vmatprep.subr.mxu0 0.0
    %2803 = vmatpush1.msra.mxu0 0.0
    %2804 = vmatprep.subr.mxu0 0.0
    %2805 = vmatpush1.msra.mxu0 0.0
    %2806 = vmatprep.subr.mxu0 0.0
    %2807 = vmatpush1.msra.mxu0 0.0
    %2808 = vmatprep.subr.mxu0 0.0
    %2809 = vmatpush1.msra.mxu0 0.0
    %2810 = vmatprep.subr.mxu0 0.0
    %2811 = vmatpush1.msra.mxu0 0.0
    %2812 = vmatprep.subr.mxu0 0.0
    %2813 = vmatpush1.msra.mxu0 0.0
    %2814 = vmatprep.subr.mxu0 0.0
    %2815 = vmatpush1.msra.mxu0 0.0
    %2816 = vmatprep.subr.mxu0 0.0
    %2817 = vmatpush1.msra.mxu0 0.0
    %2818 = vmatprep.subr.mxu0 0.0
    %2819 = vmatpush1.msra.mxu0 0.0
    %2820 = vmatprep.subr.mxu0 0.0
    %2821 = vmatpush1.msra.mxu0 0.0
    %2822 = vmatprep.subr.mxu0 0.0
    %2823 = vmatpush1.msra.mxu0 0.0
    %2824 = vmatprep.subr.mxu0 0.0
    %2825 = vmatpush1.msra.mxu0 0.0
    %2826 = vmatprep.subr.mxu0 0.0
    %2827 = vmatpush1.msra.mxu0 0.0
    %2828 = vmatprep.subr.mxu0 0.0
    %2829 = vmatpush1.msra.mxu0 0.0
    %2830 = vmatprep.subr.mxu0 0.0
    %2831 = vmatpush1.msra.mxu0 0.0
    %2832 = vmatprep.subr.mxu0 0.0
    %2833 = vmatpush1.msra.mxu0 0.0
    %2834 = vmatprep.subr.mxu0 0.0
    %2835 = vmatpush1.msra.mxu0 0.0
    %2836 = vmatprep.subr.mxu0 0.0
    %2837 = vmatpush1.msra.mxu0 0.0
    %2838 = vmatprep.subr.mxu0 0.0
    %2839 = vmatpush1.msra.mxu0 0.0
    %2840 = vmatprep.subr.mxu0 0.0
    %2841 = vmatpush1.msra.mxu0 0.0
    %2842 = vmatprep.subr.mxu0 0.0
    %2843 = vmatpush1.msra.mxu0 0.0
    %2844 = vmatprep.subr.mxu0 0.0
    %2845 = vmatpush1.msra.mxu0 0.0
    %2846 = vmatprep.subr.mxu0 0.0
    %2847 = vmatpush1.msra.mxu0 0.0
    %2848 = vmatprep.subr.mxu0 0.0
    %2849 = vmatpush1.msra.mxu0 0.0
    %2850 = vmatprep.mubr.f32.mxu0 0.0
    %2851 = vmatmul.mubr.f32.gmra.mrb[0].mxu0 %v2784
    %v2852 = vpop.f32.mrb[0].mxu0
    %v2853 = vadd.f32 0.0, %v2852
    %v2854 = vpop.f32.mrb[0].mxu0
    %2855 = vdwg.mxu0
    %v2857 = vsel %vm2671, %v2782, 0
    %2859 = vmatprep.subr.mxu0 0.0
    %2860 = vmatpush1.msra.mxu0 %v2595
    %2861 = vmatprep.subr.mxu0 0.0
    %2862 = vmatpush1.msra.mxu0 0.0
    %2863 = vmatprep.subr.mxu0 0.0
    %2864 = vmatpush1.msra.mxu0 0.0
    %2865 = vmatprep.subr.mxu0 0.0
    %2866 = vmatpush1.msra.mxu0 0.0
    %2867 = vmatprep.subr.mxu0 0.0
    %2868 = vmatpush1.msra.mxu0 0.0
    %2869 = vmatprep.subr.mxu0 0.0
    %2870 = vmatpush1.msra.mxu0 0.0
    %2871 = vmatprep.subr.mxu0 0.0
    %2872 = vmatpush1.msra.mxu0 0.0
    %2873 = vmatprep.subr.mxu0 0.0
    %2874 = vmatpush1.msra.mxu0 0.0
    %2875 = vmatprep.subr.mxu0 0.0
    %2876 = vmatpush1.msra.mxu0 0.0
    %2877 = vmatprep.subr.mxu0 0.0
    %2878 = vmatpush1.msra.mxu0 0.0
    %2879 = vmatprep.subr.mxu0 0.0
    %2880 = vmatpush1.msra.mxu0 0.0
    %2881 = vmatprep.subr.mxu0 0.0
    %2882 = vmatpush1.msra.mxu0 0.0
    %2883 = vmatprep.subr.mxu0 0.0
    %2884 = vmatpush1.msra.mxu0 0.0
    %2885 = vmatprep.subr.mxu0 0.0
    %2886 = vmatpush1.msra.mxu0 0.0
    %2887 = vmatprep.subr.mxu0 0.0
    %2888 = vmatpush1.msra.mxu0 0.0
    %2889 = vmatprep.subr.mxu0 0.0
    %2890 = vmatpush1.msra.mxu0 0.0
    %2891 = vmatprep.subr.mxu0 0.0
    %2892 = vmatpush1.msra.mxu0 0.0
    %2893 = vmatprep.subr.mxu0 0.0
    %2894 = vmatpush1.msra.mxu0 0.0
    %2895 = vmatprep.subr.mxu0 0.0
    %2896 = vmatpush1.msra.mxu0 0.0
    %2897 = vmatprep.subr.mxu0 0.0
    %2898 = vmatpush1.msra.mxu0 0.0
    %2899 = vmatprep.subr.mxu0 0.0
    %2900 = vmatpush1.msra.mxu0 0.0
    %2901 = vmatprep.subr.mxu0 0.0
    %2902 = vmatpush1.msra.mxu0 0.0
    %2903 = vmatprep.subr.mxu0 0.0
    %2904 = vmatpush1.msra.mxu0 0.0
    %2905 = vmatprep.subr.mxu0 0.0
    %2906 = vmatpush1.msra.mxu0 0.0
    %2907 = vmatprep.subr.mxu0 0.0
    %2908 = vmatpush1.msra.mxu0 0.0
    %2909 = vmatprep.subr.mxu0 0.0
    %2910 = vmatpush1.msra.mxu0 0.0
    %2911 = vmatprep.subr.mxu0 0.0
    %2912 = vmatpush1.msra.mxu0 0.0
    %2913 = vmatprep.subr.mxu0 0.0
    %2914 = vmatpush1.msra.mxu0 0.0
    %2915 = vmatprep.subr.mxu0 0.0
    %2916 = vmatpush1.msra.mxu0 0.0
    %2917 = vmatprep.subr.mxu0 0.0
    %2918 = vmatpush1.msra.mxu0 0.0
    %2919 = vmatprep.subr.mxu0 0.0
    %2920 = vmatpush1.msra.mxu0 0.0
    %2921 = vmatprep.subr.mxu0 0.0
    %2922 = vmatpush1.msra.mxu0 0.0
    %2923 = vmatprep.mubr.f32.mxu0 0.0
    %2924 = vmatmul.mubr.f32.gmra.mrb[0].mxu0 %v2857
    %v2925 = vpop.f32.mrb[0].mxu0
    %v2926 = vadd.f32 0.0, %v2925
    %v2927 = vpop.f32.mrb[0].mxu0
    %2928 = vdwg.mxu0
    %2930 = vrot.lane.b32.xlu0 %v2926, 32
    %v2931 = vpop.permute.xlu0 %2930
    %v2933 = vsel %vm371, %v2853, %v2931
    %2934 = vst.msk [vmem:[#allocation24] sm:$0xff] %vm374, %v2933
    %v2936 = vlaneseq
    %v2937 = vshrl.u32 %v2936, 7
    %v2938 = vsub.s32 0, %v2937
    %v2939 = vrot.slane %v2363, %v2938
    %v2942 = vsel %vm374, %v2933, 0
    %2944 = vmatprep.subr.mxu0 0.0
    %2945 = vmatpush1.msra.mxu0 %v2355
    %2946 = vmatprep.subr.mxu0 0.0
    %2947 = vmatpush1.msra.mxu0 %v2356
    %2948 = vmatprep.subr.mxu0 0.0
    %2949 = vmatpush1.msra.mxu0 %v2357
    %2950 = vmatprep.subr.mxu0 0.0
    %2951 = vmatpush1.msra.mxu0 %v2358
    %2952 = vmatprep.subr.mxu0 0.0
    %2953 = vmatpush1.msra.mxu0 %v2359
    %2954 = vmatprep.subr.mxu0 0.0
    %2955 = vmatpush1.msra.mxu0 %v2360
    %2956 = vmatprep.subr.mxu0 0.0
    %2957 = vmatpush1.msra.mxu0 %v2361
    %2958 = vmatprep.subr.mxu0 0.0
    %2959 = vmatpush1.msra.mxu0 %v2362
    %2960 = vmatprep.subr.mxu0 0.0
    %2961 = vmatpush1.msra.mxu0 0.0
    %2962 = vmatprep.subr.mxu0 0.0
    %2963 = vmatpush1.msra.mxu0 0.0
    %2964 = vmatprep.subr.mxu0 0.0
    %2965 = vmatpush1.msra.mxu0 0.0
    %2966 = vmatprep.subr.mxu0 0.0
    %2967 = vmatpush1.msra.mxu0 0.0
    %2968 = vmatprep.subr.mxu0 0.0
    %2969 = vmatpush1.msra.mxu0 0.0
    %2970 = vmatprep.subr.mxu0 0.0
    %2971 = vmatpush1.msra.mxu0 0.0
    %2972 = vmatprep.subr.mxu0 0.0
    %2973 = vmatpush1.msra.mxu0 0.0
    %2974 = vmatprep.subr.mxu0 0.0
    %2975 = vmatpush1.msra.mxu0 0.0
    %2976 = vmatprep.subr.mxu0 0.0
    %2977 = vmatpush1.msra.mxu0 0.0
    %2978 = vmatprep.subr.mxu0 0.0
    %2979 = vmatpush1.msra.mxu0 0.0
    %2980 = vmatprep.subr.mxu0 0.0
    %2981 = vmatpush1.msra.mxu0 0.0
    %2982 = vmatprep.subr.mxu0 0.0
    %2983 = vmatpush1.msra.mxu0 0.0
    %2984 = vmatprep.subr.mxu0 0.0
    %2985 = vmatpush1.msra.mxu0 0.0
    %2986 = vmatprep.subr.mxu0 0.0
    %2987 = vmatpush1.msra.mxu0 0.0
    %2988 = vmatprep.subr.mxu0 0.0
    %2989 = vmatpush1.msra.mxu0 0.0
    %2990 = vmatprep.subr.mxu0 0.0
    %2991 = vmatpush1.msra.mxu0 0.0
    %2992 = vmatprep.subr.mxu0 0.0
    %2993 = vmatpush1.msra.mxu0 0.0
    %2994 = vmatprep.subr.mxu0 0.0
    %2995 = vmatpush1.msra.mxu0 0.0
    %2996 = vmatprep.subr.mxu0 0.0
    %2997 = vmatpush1.msra.mxu0 0.0
    %2998 = vmatprep.subr.mxu0 0.0
    %2999 = vmatpush1.msra.mxu0 0.0
    %3000 = vmatprep.subr.mxu0 0.0
    %3001 = vmatpush1.msra.mxu0 0.0
    %3002 = vmatprep.subr.mxu0 0.0
    %3003 = vmatpush1.msra.mxu0 0.0
    %3004 = vmatprep.subr.mxu0 0.0
    %3005 = vmatpush1.msra.mxu0 0.0
    %3006 = vmatprep.subr.mxu0 0.0
    %3007 = vmatpush1.msra.mxu0 0.0
    %3008 = vmatprep.mubr.f32.mxu0 0.0
    %3009 = vmatmul.mubr.f32.gmra.mrb[0].mxu0 %v2942
    %v3010 = vpop.f32.mrb[0].mxu0
    %v3011 = vadd.f32 %v2939, %v3010
    %v3012 = vpop.f32.mrb[0].mxu0
    %3013 = vdwg.mxu0
    %3014 = vst.msk [vmem:[#allocation25] sm:$0xff] %vm2671, %v3011
    %v3015 = vld [vmem:[#allocation4 + $0x1] sm:$0x1]
    %v3016 = vld [vmem:[#allocation4 + $0x3] sm:$0x1]
    %v3017 = vld [vmem:[#allocation4 + $0x5] sm:$0x1]
    %v3018 = vld [vmem:[#allocation4 + $0x7] sm:$0x1]
    %v3019 = vld [vmem:[#allocation4 + $0x9] sm:$0x1]
    %v3020 = vld [vmem:[#allocation4 + $0xb] sm:$0x1]
    %v3021 = vld [vmem:[#allocation4 + $0xd] sm:$0x1]
    %v3022 = vld [vmem:[#allocation4 + $0xf] sm:$0x1]
    %v3024 = vrot.slane %v3016, 7
    %v3027 = vrot.slane %v3017, 6
    %v3030 = vrot.slane %v3018, 5
    %v3033 = vrot.slane %v3019, 4
    %v3036 = vrot.slane %v3020, 3
    %v3039 = vrot.slane %v3021, 2
    %v3042 = vrot.slane %v3022, 1
    %v3044 = vsel %vm2393, %v3015, %v3024
    %v3045 = vsel %vm328, %v3044, %v3027
    %v3046 = vsel %vm2396, %v3045, %v3030
    %v3047 = vsel %vm331, %v3046, %v3033
    %v3048 = vsel %vm2399, %v3047, %v3036
    %v3049 = vsel %vm334, %v3048, %v3039
    %v3050 = vsel %vm2402, %v3049, %v3042
    %v3051 = vld [vmem:[#allocation5 + $0x1] sm:$0x1]
    %v3052 = vld [vmem:[#allocation5 + $0x3] sm:$0x1]
    %v3053 = vld [vmem:[#allocation5 + $0x5] sm:$0x1]
    %v3054 = vld [vmem:[#allocation5 + $0x7] sm:$0x1]
    %v3055 = vld [vmem:[#allocation5 + $0x9] sm:$0x1]
    %v3056 = vld [vmem:[#allocation5 + $0xb] sm:$0x1]
    %v3057 = vld [vmem:[#allocation5 + $0xd] sm:$0x1]
    %v3058 = vld [vmem:[#allocation5 + $0xf] sm:$0x1]
    %v3060 = vrot.slane %v3052, 7
    %v3063 = vrot.slane %v3053, 6
    %v3066 = vrot.slane %v3054, 5
    %v3069 = vrot.slane %v3055, 4
    %v3072 = vrot.slane %v3056, 3
    %v3075 = vrot.slane %v3057, 2
    %v3078 = vrot.slane %v3058, 1
    %v3080 = vsel %vm2393, %v3051, %v3060
    %v3081 = vsel %vm328, %v3080, %v3063
    %v3082 = vsel %vm2396, %v3081, %v3066
    %v3083 = vsel %vm331, %v3082, %v3069
    %v3084 = vsel %vm2399, %v3083, %v3072
    %v3085 = vsel %vm334, %v3084, %v3075
    %v3086 = vsel %vm2402, %v3085, %v3078
    %v3088 = vsel %vm371, %v3050, 0
    %3090 = vmatprep.subr.mxu0 0.0
    %3091 = vmatpush1.msra.mxu0 %v2345
    %3092 = vmatprep.subr.mxu0 0.0
    %3093 = vmatpush1.msra.mxu0 %v2346
    %3094 = vmatprep.subr.mxu0 0.0
    %3095 = vmatpush1.msra.mxu0 %v2347
    %3096 = vmatprep.subr.mxu0 0.0
    %3097 = vmatpush1.msra.mxu0 %v2348
    %3098 = vmatprep.subr.mxu0 0.0
    %3099 = vmatpush1.msra.mxu0 0.0
    %3100 = vmatprep.subr.mxu0 0.0
    %3101 = vmatpush1.msra.mxu0 0.0
    %3102 = vmatprep.subr.mxu0 0.0
    %3103 = vmatpush1.msra.mxu0 0.0
    %3104 = vmatprep.subr.mxu0 0.0
    %3105 = vmatpush1.msra.mxu0 0.0
    %3106 = vmatprep.subr.mxu0 0.0
    %3107 = vmatpush1.msra.mxu0 0.0
    %3108 = vmatprep.subr.mxu0 0.0
    %3109 = vmatpush1.msra.mxu0 0.0
    %3110 = vmatprep.subr.mxu0 0.0
    %3111 = vmatpush1.msra.mxu0 0.0
    %3112 = vmatprep.subr.mxu0 0.0
    %3113 = vmatpush1.msra.mxu0 0.0
    %3114 = vmatprep.subr.mxu0 0.0
    %3115 = vmatpush1.msra.mxu0 0.0
    %3116 = vmatprep.subr.mxu0 0.0
    %3117 = vmatpush1.msra.mxu0 0.0
    %3118 = vmatprep.subr.mxu0 0.0
    %3119 = vmatpush1.msra.mxu0 0.0
    %3120 = vmatprep.subr.mxu0 0.0
    %3121 = vmatpush1.msra.mxu0 0.0
    %3122 = vmatprep.subr.mxu0 0.0
    %3123 = vmatpush1.msra.mxu0 0.0
    %3124 = vmatprep.subr.mxu0 0.0
    %3125 = vmatpush1.msra.mxu0 0.0
    %3126 = vmatprep.subr.mxu0 0.0
    %3127 = vmatpush1.msra.mxu0 0.0
    %3128 = vmatprep.subr.mxu0 0.0
    %3129 = vmatpush1.msra.mxu0 0.0
    %3130 = vmatprep.subr.mxu0 0.0
    %3131 = vmatpush1.msra.mxu0 0.0
    %3132 = vmatprep.subr.mxu0 0.0
    %3133 = vmatpush1.msra.mxu0 0.0
    %3134 = vmatprep.subr.mxu0 0.0
    %3135 = vmatpush1.msra.mxu0 0.0
    %3136 = vmatprep.subr.mxu0 0.0
    %3137 = vmatpush1.msra.mxu0 0.0
    %3138 = vmatprep.subr.mxu0 0.0
    %3139 = vmatpush1.msra.mxu0 0.0
    %3140 = vmatprep.subr.mxu0 0.0
    %3141 = vmatpush1.msra.mxu0 0.0
    %3142 = vmatprep.subr.mxu0 0.0
    %3143 = vmatpush1.msra.mxu0 0.0
    %3144 = vmatprep.subr.mxu0 0.0
    %3145 = vmatpush1.msra.mxu0 0.0
    %3146 = vmatprep.subr.mxu0 0.0
    %3147 = vmatpush1.msra.mxu0 0.0
    %3148 = vmatprep.subr.mxu0 0.0
    %3149 = vmatpush1.msra.mxu0 0.0
    %3150 = vmatprep.subr.mxu0 0.0
    %3151 = vmatpush1.msra.mxu0 0.0
    %3152 = vmatprep.subr.mxu0 0.0
    %3153 = vmatpush1.msra.mxu0 0.0
    %3154 = vmatprep.mubr.f32.mxu0 0.0
    %3155 = vmatmul.mubr.f32.gmra.mrb[0].mxu0 %v3088
    %v3156 = vpop.f32.mrb[0].mxu0
    %v3157 = vadd.f32 %v2444, %v3156
    %v3158 = vpop.f32.mrb[0].mxu0
    %3159 = vdwg.mxu0
    %v3161 = vsel %vm371, %v3086, 0
    %3163 = vmatprep.subr.mxu0 0.0
    %3164 = vmatpush1.msra.mxu0 %v2350
    %3165 = vmatprep.subr.mxu0 0.0
    %3166 = vmatpush1.msra.mxu0 %v2351
    %3167 = vmatprep.subr.mxu0 0.0
    %3168 = vmatpush1.msra.mxu0 %v2352
    %3169 = vmatprep.subr.mxu0 0.0
    %3170 = vmatpush1.msra.mxu0 %v2353
    %3171 = vmatprep.subr.mxu0 0.0
    %3172 = vmatpush1.msra.mxu0 0.0
    %3173 = vmatprep.subr.mxu0 0.0
    %3174 = vmatpush1.msra.mxu0 0.0
    %3175 = vmatprep.subr.mxu0 0.0
    %3176 = vmatpush1.msra.mxu0 0.0
    %3177 = vmatprep.subr.mxu0 0.0
    %3178 = vmatpush1.msra.mxu0 0.0
    %3179 = vmatprep.subr.mxu0 0.0
    %3180 = vmatpush1.msra.mxu0 0.0
    %3181 = vmatprep.subr.mxu0 0.0
    %3182 = vmatpush1.msra.mxu0 0.0
    %3183 = vmatprep.subr.mxu0 0.0
    %3184 = vmatpush1.msra.mxu0 0.0
    %3185 = vmatprep.subr.mxu0 0.0
    %3186 = vmatpush1.msra.mxu0 0.0
    %3187 = vmatprep.subr.mxu0 0.0
    %3188 = vmatpush1.msra.mxu0 0.0
    %3189 = vmatprep.subr.mxu0 0.0
    %3190 = vmatpush1.msra.mxu0 0.0
    %3191 = vmatprep.subr.mxu0 0.0
    %3192 = vmatpush1.msra.mxu0 0.0
    %3193 = vmatprep.subr.mxu0 0.0
    %3194 = vmatpush1.msra.mxu0 0.0
    %3195 = vmatprep.subr.mxu0 0.0
    %3196 = vmatpush1.msra.mxu0 0.0
    %3197 = vmatprep.subr.mxu0 0.0
    %3198 = vmatpush1.msra.mxu0 0.0
    %3199 = vmatprep.subr.mxu0 0.0
    %3200 = vmatpush1.msra.mxu0 0.0
    %3201 = vmatprep.subr.mxu0 0.0
    %3202 = vmatpush1.msra.mxu0 0.0
    %3203 = vmatprep.subr.mxu0 0.0
    %3204 = vmatpush1.msra.mxu0 0.0
    %3205 = vmatprep.subr.mxu0 0.0
    %3206 = vmatpush1.msra.mxu0 0.0
    %3207 = vmatprep.subr.mxu0 0.0
    %3208 = vmatpush1.msra.mxu0 0.0
    %3209 = vmatprep.subr.mxu0 0.0
    %3210 = vmatpush1.msra.mxu0 0.0
    %3211 = vmatprep.subr.mxu0 0.0
    %3212 = vmatpush1.msra.mxu0 0.0
    %3213 = vmatprep.subr.mxu0 0.0
    %3214 = vmatpush1.msra.mxu0 0.0
    %3215 = vmatprep.subr.mxu0 0.0
    %3216 = vmatpush1.msra.mxu0 0.0
    %3217 = vmatprep.subr.mxu0 0.0
    %3218 = vmatpush1.msra.mxu0 0.0
    %3219 = vmatprep.subr.mxu0 0.0
    %3220 = vmatpush1.msra.mxu0 0.0
    %3221 = vmatprep.subr.mxu0 0.0
    %3222 = vmatpush1.msra.mxu0 0.0
    %3223 = vmatprep.subr.mxu0 0.0
    %3224 = vmatpush1.msra.mxu0 0.0
    %3225 = vmatprep.subr.mxu0 0.0
    %3226 = vmatpush1.msra.mxu0 0.0
    %3227 = vmatprep.mubr.f32.mxu0 0.0
    %3228 = vmatmul.mubr.f32.gmra.mrb[0].mxu0 %v3161
    %v3229 = vpop.f32.mrb[0].mxu0
    %v3230 = vadd.f32 %v2523, %v3229
    %v3231 = vpop.f32.mrb[0].mxu0
    %3232 = vdwg.mxu0
    %v3234 = vsel %vm371, %v3157, 0
    %3236 = vmatprep.subr.mxu0 0.0
    %3237 = vmatpush1.xpose.msra.mxu0 %v3234
    %3238 = vmatprep.subr.mxu0 0.0
    %3239 = vmatpush1.xpose.msra.mxu0 0.0
    %3240 = vmatprep.subr.mxu0 0.0
    %3241 = vmatpush1.xpose.msra.mxu0 0.0
    %3242 = vmatprep.subr.mxu0 0.0
    %3243 = vmatpush1.xpose.msra.mxu0 0.0
    %3244 = vmatprep.subr.mxu0 0.0
    %3245 = vmatpush1.xpose.msra.mxu0 0.0
    %3246 = vmatprep.subr.mxu0 0.0
    %3247 = vmatpush1.xpose.msra.mxu0 0.0
    %3248 = vmatprep.subr.mxu0 0.0
    %3249 = vmatpush1.xpose.msra.mxu0 0.0
    %3250 = vmatprep.subr.mxu0 0.0
    %3251 = vmatpush1.xpose.msra.mxu0 0.0
    %3252 = vmatprep.subr.mxu0 0.0
    %3253 = vmatpush1.xpose.msra.mxu0 0.0
    %3254 = vmatprep.subr.mxu0 0.0
    %3255 = vmatpush1.xpose.msra.mxu0 0.0
    %3256 = vmatprep.subr.mxu0 0.0
    %3257 = vmatpush1.xpose.msra.mxu0 0.0
    %3258 = vmatprep.subr.mxu0 0.0
    %3259 = vmatpush1.xpose.msra.mxu0 0.0
    %3260 = vmatprep.subr.mxu0 0.0
    %3261 = vmatpush1.xpose.msra.mxu0 0.0
    %3262 = vmatprep.subr.mxu0 0.0
    %3263 = vmatpush1.xpose.msra.mxu0 0.0
    %3264 = vmatprep.subr.mxu0 0.0
    %3265 = vmatpush1.xpose.msra.mxu0 0.0
    %3266 = vmatprep.subr.mxu0 0.0
    %3267 = vmatpush1.xpose.msra.mxu0 0.0
    %3268 = vmatprep.subr.mxu0 0.0
    %3269 = vmatpush1.xpose.msra.mxu0 0.0
    %3270 = vmatprep.subr.mxu0 0.0
    %3271 = vmatpush1.xpose.msra.mxu0 0.0
    %3272 = vmatprep.subr.mxu0 0.0
    %3273 = vmatpush1.xpose.msra.mxu0 0.0
    %3274 = vmatprep.subr.mxu0 0.0
    %3275 = vmatpush1.xpose.msra.mxu0 0.0
    %3276 = vmatprep.subr.mxu0 0.0
    %3277 = vmatpush1.xpose.msra.mxu0 0.0
    %3278 = vmatprep.subr.mxu0 0.0
    %3279 = vmatpush1.xpose.msra.mxu0 0.0
    %3280 = vmatprep.subr.mxu0 0.0
    %3281 = vmatpush1.xpose.msra.mxu0 0.0
    %3282 = vmatprep.subr.mxu0 0.0
    %3283 = vmatpush1.xpose.msra.mxu0 0.0
    %3284 = vmatprep.subr.mxu0 0.0
    %3285 = vmatpush1.xpose.msra.mxu0 0.0
    %3286 = vmatprep.subr.mxu0 0.0
    %3287 = vmatpush1.xpose.msra.mxu0 0.0
    %3288 = vmatprep.subr.mxu0 0.0
    %3289 = vmatpush1.xpose.msra.mxu0 0.0
    %3290 = vmatprep.subr.mxu0 0.0
    %3291 = vmatpush1.xpose.msra.mxu0 0.0
    %3292 = vmatprep.subr.mxu0 0.0
    %3293 = vmatpush1.xpose.msra.mxu0 0.0
    %3294 = vmatprep.subr.mxu0 0.0
    %3295 = vmatpush1.xpose.msra.mxu0 0.0
    %3296 = vmatprep.subr.mxu0 0.0
    %3297 = vmatpush1.xpose.msra.mxu0 0.0
    %3298 = vmatprep.subr.mxu0 0.0
    %3299 = vmatpush1.xpose.msra.mxu0 0.0
    %3300 = vmatprep.mubr.f32.mxu0 0.0
    %3301 = vmatmul.mubr.f32.gmra.mrb[0].mxu0 %v3234
    %v3302 = vpop.f32.mrb[0].mxu0
    %v3303 = vadd.f32 0.0, %v3302
    %v3304 = vpop.f32.mrb[0].mxu0
    %3305 = vdwg.mxu0
    %v3306 = vsel %vm2671, %v3303, -inf
    %v3307 = vrot.slane %v3306, 4
    %v3308 = vmax.f32 %v3306, %v3307
    %v3309 = vrot.slane %v3308, 2
    %v3310 = vmax.f32 %v3308, %v3309
    %v3311 = vrot.slane %v3310, 1
    %v3312 = vmax.f32 %v3310, %v3311
    %v3313 = vsub.f32 %v3303, %v3312
    %v3314 = vmul.f32 %v3313, 1.442695
    %v3315 = vpow.pop %v3314
    %v3316 = vsel %vm2671, %v3315, 0.0
    %v3317 = vrot.slane %v3316, 4
    %v3318 = vadd.f32 %v3316, %v3317
    %v3319 = vrot.slane %v3318, 2
    %v3320 = vadd.f32 %v3318, %v3319
    %v3321 = vrot.slane %v3320, 1
    %v3322 = vadd.f32 %v3320, %v3321
    %v3323 = vrcp.pop %v3322
    %v3324 = vmul.f32 %v3315, %v3323
    %v3326 = vsel %vm371, %v3230, 0
    %3328 = vmatprep.subr.mxu0 0.0
    %3329 = vmatpush1.xpose.msra.mxu0 %v3326
    %3330 = vmatprep.subr.mxu0 0.0
    %3331 = vmatpush1.xpose.msra.mxu0 0.0
    %3332 = vmatprep.subr.mxu0 0.0
    %3333 = vmatpush1.xpose.msra.mxu0 0.0
    %3334 = vmatprep.subr.mxu0 0.0
    %3335 = vmatpush1.xpose.msra.mxu0 0.0
    %3336 = vmatprep.subr.mxu0 0.0
    %3337 = vmatpush1.xpose.msra.mxu0 0.0
    %3338 = vmatprep.subr.mxu0 0.0
    %3339 = vmatpush1.xpose.msra.mxu0 0.0
    %3340 = vmatprep.subr.mxu0 0.0
    %3341 = vmatpush1.xpose.msra.mxu0 0.0
    %3342 = vmatprep.subr.mxu0 0.0
    %3343 = vmatpush1.xpose.msra.mxu0 0.0
    %3344 = vmatprep.subr.mxu0 0.0
    %3345 = vmatpush1.xpose.msra.mxu0 0.0
    %3346 = vmatprep.subr.mxu0 0.0
    %3347 = vmatpush1.xpose.msra.mxu0 0.0
    %3348 = vmatprep.subr.mxu0 0.0
    %3349 = vmatpush1.xpose.msra.mxu0 0.0
    %3350 = vmatprep.subr.mxu0 0.0
    %3351 = vmatpush1.xpose.msra.mxu0 0.0
    %3352 = vmatprep.subr.mxu0 0.0
    %3353 = vmatpush1.xpose.msra.mxu0 0.0
    %3354 = vmatprep.subr.mxu0 0.0
    %3355 = vmatpush1.xpose.msra.mxu0 0.0
    %3356 = vmatprep.subr.mxu0 0.0
    %3357 = vmatpush1.xpose.msra.mxu0 0.0
    %3358 = vmatprep.subr.mxu0 0.0
    %3359 = vmatpush1.xpose.msra.mxu0 0.0
    %3360 = vmatprep.subr.mxu0 0.0
    %3361 = vmatpush1.xpose.msra.mxu0 0.0
    %3362 = vmatprep.subr.mxu0 0.0
    %3363 = vmatpush1.xpose.msra.mxu0 0.0
    %3364 = vmatprep.subr.mxu0 0.0
    %3365 = vmatpush1.xpose.msra.mxu0 0.0
    %3366 = vmatprep.subr.mxu0 0.0
    %3367 = vmatpush1.xpose.msra.mxu0 0.0
    %3368 = vmatprep.subr.mxu0 0.0
    %3369 = vmatpush1.xpose.msra.mxu0 0.0
    %3370 = vmatprep.subr.mxu0 0.0
    %3371 = vmatpush1.xpose.msra.mxu0 0.0
    %3372 = vmatprep.subr.mxu0 0.0
    %3373 = vmatpush1.xpose.msra.mxu0 0.0
    %3374 = vmatprep.subr.mxu0 0.0
    %3375 = vmatpush1.xpose.msra.mxu0 0.0
    %3376 = vmatprep.subr.mxu0 0.0
    %3377 = vmatpush1.xpose.msra.mxu0 0.0
    %3378 = vmatprep.subr.mxu0 0.0
    %3379 = vmatpush1.xpose.msra.mxu0 0.0
    %3380 = vmatprep.subr.mxu0 0.0
    %3381 = vmatpush1.xpose.msra.mxu0 0.0
    %3382 = vmatprep.subr.mxu0 0.0
    %3383 = vmatpush1.xpose.msra.mxu0 0.0
    %3384 = vmatprep.subr.mxu0 0.0
    %3385 = vmatpush1.xpose.msra.mxu0 0.0
    %3386 = vmatprep.subr.mxu0 0.0
    %3387 = vmatpush1.xpose.msra.mxu0 0.0
    %3388 = vmatprep.subr.mxu0 0.0
    %3389 = vmatpush1.xpose.msra.mxu0 0.0
    %3390 = vmatprep.subr.mxu0 0.0
    %3391 = vmatpush1.xpose.msra.mxu0 0.0
    %3392 = vmatprep.mubr.f32.mxu0 0.0
    %3393 = vmatmul.mubr.f32.gmra.mrb[0].mxu0 %v3326
    %v3394 = vpop.f32.mrb[0].mxu0
    %v3395 = vadd.f32 0.0, %v3394
    %v3396 = vpop.f32.mrb[0].mxu0
    %3397 = vdwg.mxu0
    %v3398 = vsel %vm2671, %v3395, -inf
    %v3399 = vrot.slane %v3398, 4
    %v3400 = vmax.f32 %v3398, %v3399
    %v3401 = vrot.slane %v3400, 2
    %v3402 = vmax.f32 %v3400, %v3401
    %v3403 = vrot.slane %v3402, 1
    %v3404 = vmax.f32 %v3402, %v3403
    %v3405 = vsub.f32 %v3395, %v3404
    %v3406 = vmul.f32 %v3405, 1.442695
    %v3407 = vpow.pop %v3406
    %v3408 = vsel %vm2671, %v3407, 0.0
    %v3409 = vrot.slane %v3408, 4
    %v3410 = vadd.f32 %v3408, %v3409
    %v3411 = vrot.slane %v3410, 2
    %v3412 = vadd.f32 %v3410, %v3411
    %v3413 = vrot.slane %v3412, 1
    %v3414 = vadd.f32 %v3412, %v3413
    %v3415 = vrcp.pop %v3414
    %v3416 = vmul.f32 %v3407, %v3415
    %v3418 = vsel %vm2671, %v3324, 0
    %3420 = vmatprep.subr.mxu0 0.0
    %3421 = vmatpush1.msra.mxu0 %v3157
    %3422 = vmatprep.subr.mxu0 0.0
    %3423 = vmatpush1.msra.mxu0 0.0
    %3424 = vmatprep.subr.mxu0 0.0
    %3425 = vmatpush1.msra.mxu0 0.0
    %3426 = vmatprep.subr.mxu0 0.0
    %3427 = vmatpush1.msra.mxu0 0.0
    %3428 = vmatprep.subr.mxu0 0.0
    %3429 = vmatpush1.msra.mxu0 0.0
    %3430 = vmatprep.subr.mxu0 0.0
    %3431 = vmatpush1.msra.mxu0 0.0
    %3432 = vmatprep.subr.mxu0 0.0
    %3433 = vmatpush1.msra.mxu0 0.0
    %3434 = vmatprep.subr.mxu0 0.0
    %3435 = vmatpush1.msra.mxu0 0.0
    %3436 = vmatprep.subr.mxu0 0.0
    %3437 = vmatpush1.msra.mxu0 0.0
    %3438 = vmatprep.subr.mxu0 0.0
    %3439 = vmatpush1.msra.mxu0 0.0
    %3440 = vmatprep.subr.mxu0 0.0
    %3441 = vmatpush1.msra.mxu0 0.0
    %3442 = vmatprep.subr.mxu0 0.0
    %3443 = vmatpush1.msra.mxu0 0.0
    %3444 = vmatprep.subr.mxu0 0.0
    %3445 = vmatpush1.msra.mxu0 0.0
    %3446 = vmatprep.subr.mxu0 0.0
    %3447 = vmatpush1.msra.mxu0 0.0
    %3448 = vmatprep.subr.mxu0 0.0
    %3449 = vmatpush1.msra.mxu0 0.0
    %3450 = vmatprep.subr.mxu0 0.0
    %3451 = vmatpush1.msra.mxu0 0.0
    %3452 = vmatprep.subr.mxu0 0.0
    %3453 = vmatpush1.msra.mxu0 0.0
    %3454 = vmatprep.subr.mxu0 0.0
    %3455 = vmatpush1.msra.mxu0 0.0
    %3456 = vmatprep.subr.mxu0 0.0
    %3457 = vmatpush1.msra.mxu0 0.0
    %3458 = vmatprep.subr.mxu0 0.0
    %3459 = vmatpush1.msra.mxu0 0.0
    %3460 = vmatprep.subr.mxu0 0.0
    %3461 = vmatpush1.msra.mxu0 0.0
    %3462 = vmatprep.subr.mxu0 0.0
    %3463 = vmatpush1.msra.mxu0 0.0
    %3464 = vmatprep.subr.mxu0 0.0
    %3465 = vmatpush1.msra.mxu0 0.0
    %3466 = vmatprep.subr.mxu0 0.0
    %3467 = vmatpush1.msra.mxu0 0.0
    %3468 = vmatprep.subr.mxu0 0.0
    %3469 = vmatpush1.msra.mxu0 0.0
    %3470 = vmatprep.subr.mxu0 0.0
    %3471 = vmatpush1.msra.mxu0 0.0
    %3472 = vmatprep.subr.mxu0 0.0
    %3473 = vmatpush1.msra.mxu0 0.0
    %3474 = vmatprep.subr.mxu0 0.0
    %3475 = vmatpush1.msra.mxu0 0.0
    %3476 = vmatprep.subr.mxu0 0.0
    %3477 = vmatpush1.msra.mxu0 0.0
    %3478 = vmatprep.subr.mxu0 0.0
    %3479 = vmatpush1.msra.mxu0 0.0
    %3480 = vmatprep.subr.mxu0 0.0
    %3481 = vmatpush1.msra.mxu0 0.0
    %3482 = vmatprep.subr.mxu0 0.0
    %3483 = vmatpush1.msra.mxu0 0.0
    %3484 = vmatprep.mubr.f32.mxu0 0.0
    %3485 = vmatmul.mubr.f32.gmra.mrb[0].mxu0 %v3418
    %v3486 = vpop.f32.mrb[0].mxu0
    %v3487 = vadd.f32 0.0, %v3486
    %v3488 = vpop.f32.mrb[0].mxu0
    %3489 = vdwg.mxu0
    %v3491 = vsel %vm2671, %v3416, 0
    %3493 = vmatprep.subr.mxu0 0.0
    %3494 = vmatpush1.msra.mxu0 %v3230
    %3495 = vmatprep.subr.mxu0 0.0
    %3496 = vmatpush1.msra.mxu0 0.0
    %3497 = vmatprep.subr.mxu0 0.0
    %3498 = vmatpush1.msra.mxu0 0.0
    %3499 = vmatprep.subr.mxu0 0.0
    %3500 = vmatpush1.msra.mxu0 0.0
    %3501 = vmatprep.subr.mxu0 0.0
    %3502 = vmatpush1.msra.mxu0 0.0
    %3503 = vmatprep.subr.mxu0 0.0
    %3504 = vmatpush1.msra.mxu0 0.0
    %3505 = vmatprep.subr.mxu0 0.0
    %3506 = vmatpush1.msra.mxu0 0.0
    %3507 = vmatprep.subr.mxu0 0.0
    %3508 = vmatpush1.msra.mxu0 0.0
    %3509 = vmatprep.subr.mxu0 0.0
    %3510 = vmatpush1.msra.mxu0 0.0
    %3511 = vmatprep.subr.mxu0 0.0
    %3512 = vmatpush1.msra.mxu0 0.0
    %3513 = vmatprep.subr.mxu0 0.0
    %3514 = vmatpush1.msra.mxu0 0.0
    %3515 = vmatprep.subr.mxu0 0.0
    %3516 = vmatpush1.msra.mxu0 0.0
    %3517 = vmatprep.subr.mxu0 0.0
    %3518 = vmatpush1.msra.mxu0 0.0
    %3519 = vmatprep.subr.mxu0 0.0
    %3520 = vmatpush1.msra.mxu0 0.0
    %3521 = vmatprep.subr.mxu0 0.0
    %3522 = vmatpush1.msra.mxu0 0.0
    %3523 = vmatprep.subr.mxu0 0.0
    %3524 = vmatpush1.msra.mxu0 0.0
    %3525 = vmatprep.subr.mxu0 0.0
    %3526 = vmatpush1.msra.mxu0 0.0
    %3527 = vmatprep.subr.mxu0 0.0
    %3528 = vmatpush1.msra.mxu0 0.0
    %3529 = vmatprep.subr.mxu0 0.0
    %3530 = vmatpush1.msra.mxu0 0.0
    %3531 = vmatprep.subr.mxu0 0.0
    %3532 = vmatpush1.msra.mxu0 0.0
    %3533 = vmatprep.subr.mxu0 0.0
    %3534 = vmatpush1.msra.mxu0 0.0
    %3535 = vmatprep.subr.mxu0 0.0
    %3536 = vmatpush1.msra.mxu0 0.0
    %3537 = vmatprep.subr.mxu0 0.0
    %3538 = vmatpush1.msra.mxu0 0.0
    %3539 = vmatprep.subr.mxu0 0.0
    %3540 = vmatpush1.msra.mxu0 0.0
    %3541 = vmatprep.subr.mxu0 0.0
    %3542 = vmatpush1.msra.mxu0 0.0
    %3543 = vmatprep.subr.mxu0 0.0
    %3544 = vmatpush1.msra.mxu0 0.0
    %3545 = vmatprep.subr.mxu0 0.0
    %3546 = vmatpush1.msra.mxu0 0.0
    %3547 = vmatprep.subr.mxu0 0.0
    %3548 = vmatpush1.msra.mxu0 0.0
    %3549 = vmatprep.subr.mxu0 0.0
    %3550 = vmatpush1.msra.mxu0 0.0
    %3551 = vmatprep.subr.mxu0 0.0
    %3552 = vmatpush1.msra.mxu0 0.0
    %3553 = vmatprep.subr.mxu0 0.0
    %3554 = vmatpush1.msra.mxu0 0.0
    %3555 = vmatprep.subr.mxu0 0.0
    %3556 = vmatpush1.msra.mxu0 0.0
    %3557 = vmatprep.mubr.f32.mxu0 0.0
    %3558 = vmatmul.mubr.f32.gmra.mrb[0].mxu0 %v3491
    %v3559 = vpop.f32.mrb[0].mxu0
    %v3560 = vadd.f32 0.0, %v3559
    %v3561 = vpop.f32.mrb[0].mxu0
    %3562 = vdwg.mxu0
    %3564 = vrot.lane.b32.xlu0 %v3560, 32
    %v3565 = vpop.permute.xlu0 %3564
    %v3567 = vsel %vm371, %v3487, %v3565
    %3568 = vst.msk [vmem:[#allocation24 + $0x8] sm:$0xff] %vm374, %v3567
    %v3570 = vsel %vm374, %v3567, 0
    %3572 = vmatprep.subr.mxu0 0.0
    %3573 = vmatpush1.msra.mxu0 %v2355
    %3574 = vmatprep.subr.mxu0 0.0
    %3575 = vmatpush1.msra.mxu0 %v2356
    %3576 = vmatprep.subr.mxu0 0.0
    %3577 = vmatpush1.msra.mxu0 %v2357
    %3578 = vmatprep.subr.mxu0 0.0
    %3579 = vmatpush1.msra.mxu0 %v2358
    %3580 = vmatprep.subr.mxu0 0.0
    %3581 = vmatpush1.msra.mxu0 %v2359
    %3582 = vmatprep.subr.mxu0 0.0
    %3583 = vmatpush1.msra.mxu0 %v2360
    %3584 = vmatprep.subr.mxu0 0.0
    %3585 = vmatpush1.msra.mxu0 %v2361
    %3586 = vmatprep.subr.mxu0 0.0
    %3587 = vmatpush1.msra.mxu0 %v2362
    %3588 = vmatprep.subr.mxu0 0.0
    %3589 = vmatpush1.msra.mxu0 0.0
    %3590 = vmatprep.subr.mxu0 0.0
    %3591 = vmatpush1.msra.mxu0 0.0
    %3592 = vmatprep.subr.mxu0 0.0
    %3593 = vmatpush1.msra.mxu0 0.0
    %3594 = vmatprep.subr.mxu0 0.0
    %3595 = vmatpush1.msra.mxu0 0.0
    %3596 = vmatprep.subr.mxu0 0.0
    %3597 = vmatpush1.msra.mxu0 0.0
    %3598 = vmatprep.subr.mxu0 0.0
    %3599 = vmatpush1.msra.mxu0 0.0
    %3600 = vmatprep.subr.mxu0 0.0
    %3601 = vmatpush1.msra.mxu0 0.0
    %3602 = vmatprep.subr.mxu0 0.0
    %3603 = vmatpush1.msra.mxu0 0.0
    %3604 = vmatprep.subr.mxu0 0.0
    %3605 = vmatpush1.msra.mxu0 0.0
    %3606 = vmatprep.subr.mxu0 0.0
    %3607 = vmatpush1.msra.mxu0 0.0
    %3608 = vmatprep.subr.mxu0 0.0
    %3609 = vmatpush1.msra.mxu0 0.0
    %3610 = vmatprep.subr.mxu0 0.0
    %3611 = vmatpush1.msra.mxu0 0.0
    %3612 = vmatprep.subr.mxu0 0.0
    %3613 = vmatpush1.msra.mxu0 0.0
    %3614 = vmatprep.subr.mxu0 0.0
    %3615 = vmatpush1.msra.mxu0 0.0
    %3616 = vmatprep.subr.mxu0 0.0
    %3617 = vmatpush1.msra.mxu0 0.0
    %3618 = vmatprep.subr.mxu0 0.0
    %3619 = vmatpush1.msra.mxu0 0.0
    %3620 = vmatprep.subr.mxu0 0.0
    %3621 = vmatpush1.msra.mxu0 0.0
    %3622 = vmatprep.subr.mxu0 0.0
    %3623 = vmatpush1.msra.mxu0 0.0
    %3624 = vmatprep.subr.mxu0 0.0
    %3625 = vmatpush1.msra.mxu0 0.0
    %3626 = vmatprep.subr.mxu0 0.0
    %3627 = vmatpush1.msra.mxu0 0.0
    %3628 = vmatprep.subr.mxu0 0.0
    %3629 = vmatpush1.msra.mxu0 0.0
    %3630 = vmatprep.subr.mxu0 0.0
    %3631 = vmatpush1.msra.mxu0 0.0
    %3632 = vmatprep.subr.mxu0 0.0
    %3633 = vmatpush1.msra.mxu0 0.0
    %3634 = vmatprep.subr.mxu0 0.0
    %3635 = vmatpush1.msra.mxu0 0.0
    %3636 = vmatprep.mubr.f32.mxu0 0.0
    %3637 = vmatmul.mubr.f32.gmra.mrb[0].mxu0 %v3570
    %v3638 = vpop.f32.mrb[0].mxu0
    %v3639 = vadd.f32 %v2939, %v3638
    %v3640 = vpop.f32.mrb[0].mxu0
    %3641 = vdwg.mxu0
    %3642 = vst.msk [vmem:[#allocation25 + $0x8] sm:$0xff] %vm2671, %v3639
    // Predicated region
    $region106: #{gru_model_forward.1} parent=1 // pred_check
      _
    $region107: #{gru_model_forward.1} parent=1 // pred_check_branch
      %3644 = sbr.rel (0) target = $region109
    $region108: #{gru_model_forward.1} parent=1 // pred_region
      %s3646 = ssub.s32 256, 256
      %3647 = vsyncadd [#allocation8], %s3646
      %s3648 = sshll.u32 [#allocation24], 4
      %s3649 = int_to_ptr.vmem [resolvable:$true] %s3648
      %3654 = dma.vmem_to_hbm [thread:$0]  %s3649, 256, %s15, [#allocation8], 128, 128, 8
    $region109: #{gru_model_forward.1} parent=1 // pred_fallthru
      _
    // Predicated region
    $region110: #{gru_model_forward.1} parent=1 // pred_check
      _
    $region111: #{gru_model_forward.1} parent=1 // pred_check_branch
      %3656 = sbr.rel (0) target = $region113
    $region112: #{gru_model_forward.1} parent=1 // pred_region
      %s3658 = ssub.s32 256, 256
      %3659 = vsyncadd [#allocation26], %s3658
      %s3660 = sshll.u32 [#allocation25], 4
      %s3661 = int_to_ptr.vmem [resolvable:$true] %s3660
      %3666 = dma.vmem_to_hbm [thread:$0]  %s3661, 256, %s16, [#allocation26], 128, 128, 8
    $region113: #{gru_model_forward.1} parent=1 // pred_fallthru
      _
    // Predicated region
    $region114: #{gru_model_forward.1} parent=1 // pred_check
      _
    $region115: #{gru_model_forward.1} parent=1 // pred_check_branch
      %3668 = sbr.rel (0) target = $region117
    $region116: #{gru_model_forward.1} parent=1 // pred_region
      %3669 = dma.done [#allocation8], 256
    $region117: #{gru_model_forward.1} parent=1 // pred_fallthru
      _
    // Predicated region
    $region118: #{gru_model_forward.1} parent=1 // pred_check
      _
    $region119: #{gru_model_forward.1} parent=1 // pred_check_branch
      %3671 = sbr.rel (0) target = $region121
    $region120: #{gru_model_forward.1} parent=1 // pred_region
      %3672 = dma.done [#allocation26], 256
    $region121: #{gru_model_forward.1} parent=1 // pred_fallthru
      _
    %3673 = vsyncpa [#allocation7], 1
    %3674 = vsyncpa [#allocation10], 1
    %3675 = vsyncpa [#allocation13], 1
    %3676 = vsyncpa [#allocation16], 1
    %3677 = vsyncpa [#allocation19], 1
    %3678 = vsyncpa [#allocation22], 1
    %3679 = vsyncpa [#allocation8], 1
    %3680 = vsyncpa [#allocation26], 1

</llo_original>
